<compile_context>
chip_gen: v5e
topology: v5e:2x2
jax: 0.10.0
libtpu: 0.0.40
codegen_flags: <defaults>
</compile_context>

<pallas_src>
import functools

import jax
import jax.numpy as jnp
from jax.experimental import pallas as pl
from jax.experimental.pallas import tpu as pltpu

BN_EPS = 1e-5


def nfm_kernel(embed_ref, xdense_ref,
               w1d_ref, w1e_ref, b1_ref,
               w2_ref, b2_ref,
               wo_ref, bo_ref,
               out_ref, *, reduce_head):
    # ---- Bi-interaction pooling (torch order): 0.5*(sum_f e)^2 - sum_f e^2
    emb = embed_ref[...]                       # [Tb, F, E] f32
    s = jnp.sum(emb, axis=1)                   # [Tb, E]
    sq = jnp.sum(emb * emb, axis=1)            # [Tb, E]
    bi = 0.5 * s * s - sq                      # [Tb, E]

    xd = xdense_ref[...]                       # [Tb, Dn]

    # ---- Layer 1 (BatchNorm already folded into W1/b1):
    #      cat([xd, bi]) @ W1 + b1 == xd @ W1[:Dn] + bi @ W1[Dn:] + b1
    h = (jnp.dot(xd, w1d_ref[...], preferred_element_type=jnp.float32)
         + jnp.dot(bi, w1e_ref[...], preferred_element_type=jnp.float32)
         + b1_ref[...])
    h = jnp.maximum(h, 0.0)                    # ReLU; dropout_1 = identity (eval)

    # ---- Layer 2 (BN folded)
    h = jnp.dot(h, w2_ref[...], preferred_element_type=jnp.float32) + b2_ref[...]
    h = jnp.maximum(h, 0.0)                    # ReLU; dropout_2 = identity (eval)

    # ---- Output head + sigmoid
    if reduce_head:
        # num_classes == 1: lane reduction on the VPU/XLU instead of an N=1
        # MXU matmul.  wo_ref is passed pre-transposed as [1, h2].
        logit = jnp.sum(h * wo_ref[...], axis=-1, keepdims=True) + bo_ref[...]
    else:
        logit = jnp.dot(h, wo_ref[...], preferred_element_type=jnp.float32) + bo_ref[...]
    out_ref[...] = 1.0 / (1.0 + jnp.exp(-logit))


def fold_batchnorm(params):
    """One-time param transform: fold eval-mode BatchNorm1d into the preceding
    Linear: scale = gamma * rsqrt(running_var + eps); W' = W*scale,
    b' = (b - running_mean)*scale + beta."""
    s1 = params["g1"] * jax.lax.rsqrt(params["rv1"] + BN_EPS)   # [1, h1]
    s2 = params["g2"] * jax.lax.rsqrt(params["rv2"] + BN_EPS)   # [1, h2]
    return dict(
        emb_tables=params["emb_tables"],
        w1_dense=params["w1_dense"] * s1,
        w1_emb=params["w1_emb"] * s1,
        b1=(params["b1"] - params["rm1"]) * s1 + params["be1"],
        w2=params["w2"] * s2,
        b2=(params["b2"] - params["rm2"]) * s2 + params["be2"],
        wo=params["wo"],
        bo=params["bo"],
    )


def _choose_batch_tile(B, F, E, Dn, h1, h2, C, vmem_budget_bytes=8 * 1024 * 1024):
    """Largest batch tile (multiple of 8) whose double-buffered streams +
    activation working set fit a conservative VMEM budget (safe for the 16 MiB
    scoped default on v5e and the 64 MiB physical VMEM on v7x)."""
    emb_row = max(F, 8) * max(E, 128)          # [F, E] slab padded to (8,128) tiling
    streamed = 2 * (emb_row + Dn + C)          # double-buffered in/out streams
    work = E + Dn + h1 + h2 + C                # in-kernel activations
    row_bytes = 4 * (streamed + work)
    tb = vmem_budget_bytes // max(row_bytes, 1)
    tb = int(max(8, min(2048, (tb // 8) * 8)))
    return tb


def nfm_forward(x_sparse, x_dense, fused, *, block_b=None):
    """x_sparse: [B, F] int32, x_dense: [B, Dn] f32, fused: fold_batchnorm(params)."""
    # Embedding gather (glue, plain JAX) -> [B, F, E]
    embed = jnp.stack(
        [tab[x_sparse[:, i]] for i, tab in enumerate(fused["emb_tables"])], axis=1
    ).astype(jnp.float32)
    x_dense = x_dense.astype(jnp.float32)

    B, F, E = embed.shape
    Dn = x_dense.shape[1]
    h1 = fused["w1_dense"].shape[1]
    h2 = fused["w2"].shape[1]
    C = fused["wo"].shape[1]
    reduce_head = (C == 1)

    # Head weight layout: [1, h2] row for the reduction head, [h2, C] otherwise.
    wo_arg = fused["wo"].reshape(1, h2) if reduce_head else fused["wo"]
    bo_arg = fused["bo"]                                   # [1, C]

    if block_b is None:
        block_b = _choose_batch_tile(B, F, E, Dn, h1, h2, C)
    tb = min(int(block_b), B)
    if B >= 8:
        tb = max(8, (tb // 8) * 8)
    grid = (pl.cdiv(B, tb),)

    def const2(shape):
        # Full-extent block, constant index -> fetched once, VMEM-resident.
        return pl.BlockSpec(shape, lambda i: (0, 0))

    in_specs = [
        pl.BlockSpec((tb, F, E), lambda i: (i, 0, 0)),     # embed: streamed per tile
        pl.BlockSpec((tb, Dn), lambda i: (i, 0)),          # x_dense: streamed per tile
        const2((Dn, h1)),                                  # w1_dense
        const2((E, h1)),                                   # w1_emb
        const2((1, h1)),                                   # b1
        const2((h1, h2)),                                  # w2
        const2((1, h2)),                                   # b2
        const2(wo_arg.shape),                              # wo
        const2((1, C)),                                    # bo
    ]
    out_specs = pl.BlockSpec((tb, C), lambda i: (i, 0))

    kernel = functools.partial(nfm_kernel, reduce_head=reduce_head)
    return pl.pallas_call(
        kernel,
        out_shape=jax.ShapeDtypeStruct((B, C), jnp.float32),
        grid=grid,
        in_specs=in_specs,
        out_specs=out_specs,
        compiler_params=pltpu.CompilerParams(
            dimension_semantics=("parallel",),             # megacore sharding on v7x
        ),
    )(embed, x_dense,
      fused["w1_dense"], fused["w1_emb"], fused["b1"],
      fused["w2"], fused["b2"], wo_arg, bo_arg)


def nfm_reference(x_sparse, x_dense, params):
    """Pure-JAX reference mirroring the PyTorch forward (eval mode, unfused BN)."""
    embed = jnp.stack(
        [tab[x_sparse[:, i]] for i, tab in enumerate(params["emb_tables"])], axis=1
    ).astype(jnp.float32)
    bi = 0.5 * jnp.sum(embed, axis=1) ** 2 - jnp.sum(embed ** 2, axis=1)
    x = jnp.concatenate([x_dense, bi], axis=-1)
    w1 = jnp.concatenate([params["w1_dense"], params["w1_emb"]], axis=0)
    h = x @ w1 + params["b1"]
    h = (h - params["rm1"]) / jnp.sqrt(params["rv1"] + BN_EPS) * params["g1"] + params["be1"]
    h = jnp.maximum(h, 0.0)
    h = h @ params["w2"] + params["b2"]
    h = (h - params["rm2"]) / jnp.sqrt(params["rv2"] + BN_EPS) * params["g2"] + params["be2"]
    h = jnp.maximum(h, 0.0)
    return jax.nn.sigmoid(h @ params["wo"] + params["bo"])


def make_params(key, cate_fea_uniques, num_fea_size, emb_size, hidden_dims, num_classes):
    h1, h2 = hidden_dims
    d0 = emb_size + num_fea_size
    nf = len(cate_fea_uniques)
    keys = jax.random.split(key, nf + 14)
    emb_tables = [
        0.1 * jax.random.normal(keys[i], (voc, emb_size), dtype=jnp.float32)
        for i, voc in enumerate(cate_fea_uniques)
    ]
    k = nf
    w1 = 0.1 * jax.random.normal(keys[k + 0], (d0, h1), dtype=jnp.float32)
    return dict(
        emb_tables=emb_tables,
        w1_dense=w1[:num_fea_size],                        # [Dn, h1]
        w1_emb=w1[num_fea_size:],                          # [E, h1]
        b1=0.1 * jax.random.normal(keys[k + 1], (1, h1), dtype=jnp.float32),
        g1=1.0 + 0.1 * jax.random.normal(keys[k + 2], (1, h1), dtype=jnp.float32),
        be1=0.1 * jax.random.normal(keys[k + 3], (1, h1), dtype=jnp.float32),
        rm1=0.1 * jax.random.normal(keys[k + 4], (1, h1), dtype=jnp.float32),
        rv1=1.0 + 0.1 * jax.random.uniform(keys[k + 5], (1, h1), dtype=jnp.float32),
        w2=0.1 * jax.random.normal(keys[k + 6], (h1, h2), dtype=jnp.float32),
        b2=0.1 * jax.random.normal(keys[k + 7], (1, h2), dtype=jnp.float32),
        g2=1.0 + 0.1 * jax.random.normal(keys[k + 8], (1, h2), dtype=jnp.float32),
        be2=0.1 * jax.random.normal(keys[k + 9], (1, h2), dtype=jnp.float32),
        rm2=0.1 * jax.random.normal(keys[k + 10], (1, h2), dtype=jnp.float32),
        rv2=1.0 + 0.1 * jax.random.uniform(keys[k + 11], (1, h2), dtype=jnp.float32),
        wo=0.1 * jax.random.normal(keys[k + 12], (h2, num_classes), dtype=jnp.float32),
        bo=0.1 * jax.random.normal(keys[k + 13], (1, num_classes), dtype=jnp.float32),
    )


if __name__ == "__main__":
    # Small deterministic configuration (module-default hidden dims 256/128,
    # which are lane-dense multiples of 128).
    cate_fea_uniques = [10, 20, 30, 40, 50, 60, 70, 80]    # 8 sparse features
    num_fea_size = 4                                       # 4 dense features
    emb_size = 8
    hidden_dims = [256, 128]
    num_classes = 1
    batch = 256
    block_b = 128                                          # 2 pipelined batch tiles

    key = jax.random.PRNGKey(0)
    k_par, k_sp, k_de = jax.random.split(key, 3)
    params = make_params(k_par, cate_fea_uniques, num_fea_size, emb_size,
                         hidden_dims, num_classes)
    fused = fold_batchnorm(params)

    keys_sp = jax.random.split(k_sp, len(cate_fea_uniques))
    x_sparse = jnp.stack(
        [jax.random.randint(keys_sp[i], (batch,), 0, v, dtype=jnp.int32)
         for i, v in enumerate(cate_fea_uniques)], axis=1)              # [B, F]
    x_dense = jax.random.normal(k_de, (batch, num_fea_size), dtype=jnp.float32)

    out = nfm_forward(x_sparse, x_dense, fused, block_b=block_b)
    out = jax.block_until_ready(out)

    ref = nfm_reference(x_sparse, x_dense, params)
    assert out.shape == (batch, num_classes), out.shape
    max_err = float(jnp.max(jnp.abs(out - ref)))
    assert jnp.allclose(out, ref, atol=1e-4, rtol=1e-4), max_err
    print("KERNEL_OK")
</pallas_src>

<mosaic_0001>
module attributes {stable_mosaic.version = 11 : i64} {
  func.func @nfm_kernel(%arg0: i32, %arg1: memref<128x8x8xf32, #tpu.memory_space<vmem>>, %arg2: memref<128x4xf32, #tpu.memory_space<vmem>>, %arg3: memref<4x256xf32, #tpu.memory_space<vmem>>, %arg4: memref<8x256xf32, #tpu.memory_space<vmem>>, %arg5: memref<1x256xf32, #tpu.memory_space<vmem>>, %arg6: memref<256x128xf32, #tpu.memory_space<vmem>>, %arg7: memref<1x128xf32, #tpu.memory_space<vmem>>, %arg8: memref<1x128xf32, #tpu.memory_space<vmem>>, %arg9: memref<1x1xf32, #tpu.memory_space<vmem>>, %arg10: memref<128x1xf32, #tpu.memory_space<vmem>>) attributes {dimension_semantics = [#tpu.dimension_semantics<parallel>], iteration_bounds = array<i64: 2>, scalar_prefetch = 0 : i64, scratch_operands = 0 : i64, tpu.core_type = #tpu.core_type<tc>, window_params = [{transform_indices = @transform_0, window_bounds = array<i64: 128, 8, 8>}, {transform_indices = @transform_1, window_bounds = array<i64: 128, 4>}, {pipeline_mode = #tpu.pipeline_mode<synchronous>, transform_indices = @transform_2, window_bounds = array<i64: 4, 256>}, {pipeline_mode = #tpu.pipeline_mode<synchronous>, transform_indices = @transform_3, window_bounds = array<i64: 8, 256>}, {pipeline_mode = #tpu.pipeline_mode<synchronous>, transform_indices = @transform_4, window_bounds = array<i64: 1, 256>}, {pipeline_mode = #tpu.pipeline_mode<synchronous>, transform_indices = @transform_5, window_bounds = array<i64: 256, 128>}, {pipeline_mode = #tpu.pipeline_mode<synchronous>, transform_indices = @transform_6, window_bounds = array<i64: 1, 128>}, {pipeline_mode = #tpu.pipeline_mode<synchronous>, transform_indices = @transform_7, window_bounds = array<i64: 1, 128>}, {pipeline_mode = #tpu.pipeline_mode<synchronous>, transform_indices = @transform_8, window_bounds = array<i64: 1, 1>}, {transform_indices = @transform_9, window_bounds = array<i64: 128, 1>}]} {
    %c0 = arith.constant 0 : index
    %c0_0 = arith.constant 0 : index
    %c0_1 = arith.constant 0 : index
    %0 = vector.load %arg1[%c0, %c0_0, %c0_1] : memref<128x8x8xf32, #tpu.memory_space<vmem>>, vector<128x8x8xf32>
    %cst = arith.constant dense<0.000000e+00> : vector<128x8xf32>
    %1 = vector.multi_reduction <add>, %0, %cst [1] : vector<128x8x8xf32> to vector<128x8xf32>
    %2 = arith.mulf %0, %0 : vector<128x8x8xf32>
    %cst_2 = arith.constant dense<0.000000e+00> : vector<128x8xf32>
    %3 = vector.multi_reduction <add>, %2, %cst_2 [1] : vector<128x8x8xf32> to vector<128x8xf32>
    %cst_3 = arith.constant 5.000000e-01 : f32
    %4 = vector.broadcast %cst_3 : f32 to vector<128x8xf32>
    %5 = arith.mulf %4, %1 : vector<128x8xf32>
    %6 = arith.mulf %5, %1 : vector<128x8xf32>
    %7 = arith.subf %6, %3 : vector<128x8xf32>
    %c0_4 = arith.constant 0 : index
    %c0_5 = arith.constant 0 : index
    %8 = vector.load %arg2[%c0_4, %c0_5] : memref<128x4xf32, #tpu.memory_space<vmem>>, vector<128x4xf32>
    %c0_6 = arith.constant 0 : index
    %c0_7 = arith.constant 0 : index
    %9 = vector.load %arg3[%c0_6, %c0_7] : memref<4x256xf32, #tpu.memory_space<vmem>>, vector<4x256xf32>
    %cst_8 = arith.constant dense<0.000000e+00> : vector<128x256xf32>
    %10 = tpu.matmul %8, %9, %cst_8 {dimension_numbers = #tpu.dot_dimension_numbers<[1], [0], [0], [1], [0, 0, 1, 1], [], []>} : vector<128x4xf32>, vector<4x256xf32>, vector<128x256xf32> -> vector<128x256xf32>
    %c0_9 = arith.constant 0 : index
    %c0_10 = arith.constant 0 : index
    %11 = vector.load %arg4[%c0_9, %c0_10] : memref<8x256xf32, #tpu.memory_space<vmem>>, vector<8x256xf32>
    %cst_11 = arith.constant dense<0.000000e+00> : vector<128x256xf32>
    %12 = tpu.matmul %7, %11, %cst_11 {dimension_numbers = #tpu.dot_dimension_numbers<[1], [0], [0], [1], [0, 0, 1, 1], [], []>} : vector<128x8xf32>, vector<8x256xf32>, vector<128x256xf32> -> vector<128x256xf32>
    %13 = arith.addf %10, %12 : vector<128x256xf32>
    %c0_12 = arith.constant 0 : index
    %c0_13 = arith.constant 0 : index
    %14 = vector.load %arg5[%c0_12, %c0_13] : memref<1x256xf32, #tpu.memory_space<vmem>>, vector<1x256xf32>
    %15 = vector.broadcast %14 : vector<1x256xf32> to vector<128x256xf32>
    %16 = arith.addf %13, %15 : vector<128x256xf32>
    %cst_14 = arith.constant 0.000000e+00 : f32
    %17 = vector.broadcast %cst_14 : f32 to vector<128x256xf32>
    %18 = arith.maximumf %16, %17 : vector<128x256xf32>
    %c0_15 = arith.constant 0 : index
    %c0_16 = arith.constant 0 : index
    %19 = vector.load %arg6[%c0_15, %c0_16] : memref<256x128xf32, #tpu.memory_space<vmem>>, vector<256x128xf32>
    %cst_17 = arith.constant dense<0.000000e+00> : vector<128x128xf32>
    %20 = tpu.matmul %18, %19, %cst_17 {dimension_numbers = #tpu.dot_dimension_numbers<[1], [0], [0], [1], [0, 0, 1, 1], [], []>} : vector<128x256xf32>, vector<256x128xf32>, vector<128x128xf32> -> vector<128x128xf32>
    %c0_18 = arith.constant 0 : index
    %c0_19 = arith.constant 0 : index
    %21 = vector.load %arg7[%c0_18, %c0_19] : memref<1x128xf32, #tpu.memory_space<vmem>>, vector<1x128xf32>
    %22 = vector.broadcast %21 : vector<1x128xf32> to vector<128x128xf32>
    %23 = arith.addf %20, %22 : vector<128x128xf32>
    %cst_20 = arith.constant 0.000000e+00 : f32
    %24 = vector.broadcast %cst_20 : f32 to vector<128x128xf32>
    %25 = arith.maximumf %23, %24 : vector<128x128xf32>
    %c0_21 = arith.constant 0 : index
    %c0_22 = arith.constant 0 : index
    %26 = vector.load %arg8[%c0_21, %c0_22] : memref<1x128xf32, #tpu.memory_space<vmem>>, vector<1x128xf32>
    %27 = vector.broadcast %26 : vector<1x128xf32> to vector<128x128xf32>
    %28 = arith.mulf %25, %27 : vector<128x128xf32>
    %cst_23 = arith.constant dense<0.000000e+00> : vector<128xf32>
    %29 = vector.multi_reduction <add>, %28, %cst_23 [1] : vector<128x128xf32> to vector<128xf32>
    %30 = vector.shape_cast %29 : vector<128xf32> to vector<128x1xf32>
    %c0_24 = arith.constant 0 : index
    %c0_25 = arith.constant 0 : index
    %31 = vector.load %arg9[%c0_24, %c0_25] : memref<1x1xf32, #tpu.memory_space<vmem>>, vector<1x1xf32>
    %32 = vector.broadcast %31 : vector<1x1xf32> to vector<128x1xf32>
    %33 = arith.addf %30, %32 : vector<128x1xf32>
    %cst_26 = arith.constant 0.000000e+00 : f32
    %34 = vector.broadcast %cst_26 : f32 to vector<128x1xf32>
    %35 = arith.subf %34, %33 : vector<128x1xf32>
    %36 = math.exp %35 : vector<128x1xf32>
    %cst_27 = arith.constant 1.000000e+00 : f32
    %37 = vector.broadcast %cst_27 : f32 to vector<128x1xf32>
    %38 = arith.addf %37, %36 : vector<128x1xf32>
    %cst_28 = arith.constant 1.000000e+00 : f32
    %39 = vector.broadcast %cst_28 : f32 to vector<128x1xf32>
    %40 = arith.divf %39, %38 : vector<128x1xf32>
    %c0_29 = arith.constant 0 : index
    %c0_30 = arith.constant 0 : index
    %41 = vector.load %arg10[%c0_29, %c0_30] : memref<128x1xf32, #tpu.memory_space<vmem>>, vector<128x1xf32>
    tpu.vector_store %arg10[%c0_29, %c0_30], %40 {strides = array<i32>} : memref<128x1xf32, #tpu.memory_space<vmem>>, vector<128x1xf32>,
    return
  }
  func.func @transform_0(%arg0: i32) -> (i32, i32, i32) {
    %c0_i32 = arith.constant 0 : i32
    %c0_i32_0 = arith.constant 0 : i32
    %c0_i32_1 = arith.constant 0 : i32
    return %arg0, %c0_i32, %c0_i32_0 : i32, i32, i32
  }
  func.func @transform_1(%arg0: i32) -> (i32, i32) {
    %c0_i32 = arith.constant 0 : i32
    %c0_i32_0 = arith.constant 0 : i32
    return %arg0, %c0_i32 : i32, i32
  }
  func.func @transform_2(%arg0: i32) -> (i32, i32) {
    %c0_i32 = arith.constant 0 : i32
    %c0_i32_0 = arith.constant 0 : i32
    %c0_i32_1 = arith.constant 0 : i32
    return %c0_i32, %c0_i32_0 : i32, i32
  }
  func.func @transform_3(%arg0: i32) -> (i32, i32) {
    %c0_i32 = arith.constant 0 : i32
    %c0_i32_0 = arith.constant 0 : i32
    %c0_i32_1 = arith.constant 0 : i32
    return %c0_i32, %c0_i32_0 : i32, i32
  }
  func.func @transform_4(%arg0: i32) -> (i32, i32) {
    %c0_i32 = arith.constant 0 : i32
    %c0_i32_0 = arith.constant 0 : i32
    %c0_i32_1 = arith.constant 0 : i32
    return %c0_i32, %c0_i32_0 : i32, i32
  }
  func.func @transform_5(%arg0: i32) -> (i32, i32) {
    %c0_i32 = arith.constant 0 : i32
    %c0_i32_0 = arith.constant 0 : i32
    %c0_i32_1 = arith.constant 0 : i32
    return %c0_i32, %c0_i32_0 : i32, i32
  }
  func.func @transform_6(%arg0: i32) -> (i32, i32) {
    %c0_i32 = arith.constant 0 : i32
    %c0_i32_0 = arith.constant 0 : i32
    %c0_i32_1 = arith.constant 0 : i32
    return %c0_i32, %c0_i32_0 : i32, i32
  }
  func.func @transform_7(%arg0: i32) -> (i32, i32) {
    %c0_i32 = arith.constant 0 : i32
    %c0_i32_0 = arith.constant 0 : i32
    %c0_i32_1 = arith.constant 0 : i32
    return %c0_i32, %c0_i32_0 : i32, i32
  }
  func.func @transform_8(%arg0: i32) -> (i32, i32) {
    %c0_i32 = arith.constant 0 : i32
    %c0_i32_0 = arith.constant 0 : i32
    %c0_i32_1 = arith.constant 0 : i32
    return %c0_i32, %c0_i32_0 : i32, i32
  }
  func.func @transform_9(%arg0: i32) -> (i32, i32) {
    %c0_i32 = arith.constant 0 : i32
    %c0_i32_0 = arith.constant 0 : i32
    return %arg0, %c0_i32 : i32, i32
  }
}

</mosaic_0001>

<llo_original>
// kernel: tpu_custom_call.1
$region0: #{tpu_custom_call.1}
  #allocation0 [shape = 'u32[]', space=smem, size = 0x4, offset = 0x4, fixed_abs, tag = 'smem constant byte address 0x4 - core index']
  #allocation1 [shape = 'u32[72,128]{1,0:T(1,128)}', space=vmem, size = 0x9000, scoped, tag = 'internal scratch']
  #allocation2 [shape = 'f32[1,1]{1,0:T(1,128)S(1)}', space=vmem, size = 0x200, scoped, tag = 'scoped memory for tpu_custom_call.1']
  %s0 = inlined_call_operand.vmem [shape: f32[256,8,8], index: 0, kind: input, shape index: {}]
  %s1 = inlined_call_operand.vmem [shape: f32[256,4], index: 1, kind: input, shape index: {}]
  %s2 = inlined_call_operand.vmem [shape: f32[4,256], index: 2, kind: input, shape index: {}]
  %s3 = inlined_call_operand.vmem [shape: f32[8,256], index: 3, kind: input, shape index: {}]
  %s4 = inlined_call_operand.vmem [shape: f32[1,256], index: 4, kind: input, shape index: {}]
  %s5 = inlined_call_operand.vmem [shape: f32[256,128], index: 5, kind: input, shape index: {}]
  %s6 = inlined_call_operand.vmem [shape: f32[1,128], index: 6, kind: input, shape index: {}]
  %s7 = inlined_call_operand.vmem [shape: f32[1,128], index: 7, kind: input, shape index: {}]
  %s8 = inlined_call_operand.<no memory space> [shape: f32[1,1], index: 8, kind: input, shape index: {}]
  %s9 = inlined_call_operand.vmem [shape: f32[256,1], index: 9, kind: output, shape index: {}]
  %s10 = sld [smem:[#allocation0]]
  $region69: #{tpu_custom_call.1} parent=0
    _
  %s12 = ssub.s32 1, %s10
  %s13 = scalar_select 0, %s12, %s10
  %v14 = vstv %s8
  %15 = vst [vmem:[#allocation2] sm:$0x1] %v14
  loop: start=0, step=1, limit=4
  $region2: #{tpu_custom_call.1} parent=0 // loop_pre_header
    _
  $region3: #{tpu_custom_call.1} parent=0 // loop_header
    %s17 = sphi 0, %s21
    %p18 = scmp.ge.s32.totalorder %s17, 4
    %s27 = sphi 0, %s29
    %s30 = sphi 0, %s27
    %s31 = sphi 0, %s30
    %s47 = sphi 0, %s31
    %s53 = sphi 0, %s55
    %s56 = sphi 0, %s53
    %s57 = sphi 0, %s56
    %s73 = sphi 0, %s57
    %s77 = sphi 0, %s77
    %s79 = sphi 0, %s77
    %s80 = sphi 0, %s79
    %s94 = sphi 0, %s80
    %s98 = sphi 0, %s98
    %s100 = sphi 0, %s98
    %s101 = sphi 0, %s100
    %s115 = sphi 0, %s101
    %s119 = sphi 0, %s119
    %s121 = sphi 0, %s119
    %s122 = sphi 0, %s121
    %s136 = sphi 0, %s122
    %s140 = sphi 0, %s140
    %s142 = sphi 0, %s140
    %s143 = sphi 0, %s142
    %s157 = sphi 0, %s143
    %s161 = sphi 0, %s161
    %s163 = sphi 0, %s161
    %s164 = sphi 0, %s163
    %s178 = sphi 0, %s164
    %s182 = sphi 0, %s182
    %s184 = sphi 0, %s182
    %s185 = sphi 0, %s184
    %s199 = sphi 0, %s185
    %s203 = sphi 0, %s203
    %s205 = sphi 0, %s203
    %s206 = sphi 0, %s205
    %s220 = sphi 0, %s206
    %s226 = sphi 0, %s228
    %s229 = sphi 0, %s226
    %s230 = sphi 0, %s229
    %s246 = sphi 0, %s230
  $region4: #{tpu_custom_call.1} parent=0 // loop_header_branch
    %20 = sbr.rel (%p18) target = $region8
  $region5: #{tpu_custom_call.1} parent=0 // loop_body
    %s22 = ssub.s32 %s17, 1
    %s23 = ssub.s32 %s17, 2
    %s24 = sadd.s32 %s17, 1
    %s25 = ssub.s32 %s17, %s24
    %p26 = scmp.eq.s32.totalorder %s25, 0
    %s28 = sadd.s32 %s27, 1
    %s29 = scalar_select %p26, %s27, %s28
    %p32 = pneg %p26
    %p33 = scmp.eq.s32.totalorder %s17, 1
    %p34 = por %p32, %p33
    %p35 = scmp.ne.s32.totalorder %s27, %s30
    %p36 = scmp.eq.s32.totalorder %s17, 0
    %p37 = por %p35, %p36
    %p38 = scmp.ne.s32.totalorder %s27, %s30
    %p39 = scmp.eq.s32.totalorder %s22, 1
    %p40 = por %p38, %p39
    %p41 = scmp.ne.s32.totalorder %s30, %s31
    %p42 = scmp.eq.s32.totalorder %s22, 0
    %p43 = por %p41, %p42
    %p44 = scmp.ne.s32.totalorder %s30, %s31
    %p45 = scmp.eq.s32.totalorder %s23, 1
    %p46 = por %p44, %p45
    %p48 = scmp.ne.s32.totalorder %s31, %s47
    %p49 = scmp.eq.s32.totalorder %s23, 0
    %p50 = por %p48, %p49
    %s51 = ssub.s32 %s17, %s24
    %p52 = scmp.eq.s32.totalorder %s51, 0
    %s54 = sadd.s32 %s53, 1
    %s55 = scalar_select %p52, %s53, %s54
    %p58 = pneg %p52
    %p59 = scmp.eq.s32.totalorder %s17, 1
    %p60 = por %p58, %p59
    %p61 = scmp.ne.s32.totalorder %s53, %s56
    %p62 = scmp.eq.s32.totalorder %s17, 0
    %p63 = por %p61, %p62
    %p64 = scmp.ne.s32.totalorder %s53, %s56
    %p65 = scmp.eq.s32.totalorder %s22, 1
    %p66 = por %p64, %p65
    %p67 = scmp.ne.s32.totalorder %s56, %s57
    %p68 = scmp.eq.s32.totalorder %s22, 0
    %p69 = por %p67, %p68
    %p70 = scmp.ne.s32.totalorder %s56, %s57
    %p71 = scmp.eq.s32.totalorder %s23, 1
    %p72 = por %p70, %p71
    %p74 = scmp.ne.s32.totalorder %s57, %s73
    %p75 = scmp.eq.s32.totalorder %s23, 0
    %p76 = por %p74, %p75
    %s78 = sadd.s32 %s77, 1
    %p81 = scmp.eq.s32.totalorder %s17, 1
    %p82 = scmp.ne.s32.totalorder %s77, %s79
    %p83 = scmp.eq.s32.totalorder %s17, 0
    %p84 = por %p82, %p83
    %p85 = scmp.ne.s32.totalorder %s77, %s79
    %p86 = scmp.eq.s32.totalorder %s22, 1
    %p87 = por %p85, %p86
    %p88 = scmp.ne.s32.totalorder %s79, %s80
    %p89 = scmp.eq.s32.totalorder %s22, 0
    %p90 = por %p88, %p89
    %p91 = scmp.ne.s32.totalorder %s79, %s80
    %p92 = scmp.eq.s32.totalorder %s23, 1
    %p93 = por %p91, %p92
    %p95 = scmp.ne.s32.totalorder %s80, %s94
    %p96 = scmp.eq.s32.totalorder %s23, 0
    %p97 = por %p95, %p96
    %s99 = sadd.s32 %s98, 1
    %p102 = scmp.eq.s32.totalorder %s17, 1
    %p103 = scmp.ne.s32.totalorder %s98, %s100
    %p104 = scmp.eq.s32.totalorder %s17, 0
    %p105 = por %p103, %p104
    %p106 = scmp.ne.s32.totalorder %s98, %s100
    %p107 = scmp.eq.s32.totalorder %s22, 1
    %p108 = por %p106, %p107
    %p109 = scmp.ne.s32.totalorder %s100, %s101
    %p110 = scmp.eq.s32.totalorder %s22, 0
    %p111 = por %p109, %p110
    %p112 = scmp.ne.s32.totalorder %s100, %s101
    %p113 = scmp.eq.s32.totalorder %s23, 1
    %p114 = por %p112, %p113
    %p116 = scmp.ne.s32.totalorder %s101, %s115
    %p117 = scmp.eq.s32.totalorder %s23, 0
    %p118 = por %p116, %p117
    %s120 = sadd.s32 %s119, 1
    %p123 = scmp.eq.s32.totalorder %s17, 1
    %p124 = scmp.ne.s32.totalorder %s119, %s121
    %p125 = scmp.eq.s32.totalorder %s17, 0
    %p126 = por %p124, %p125
    %p127 = scmp.ne.s32.totalorder %s119, %s121
    %p128 = scmp.eq.s32.totalorder %s22, 1
    %p129 = por %p127, %p128
    %p130 = scmp.ne.s32.totalorder %s121, %s122
    %p131 = scmp.eq.s32.totalorder %s22, 0
    %p132 = por %p130, %p131
    %p133 = scmp.ne.s32.totalorder %s121, %s122
    %p134 = scmp.eq.s32.totalorder %s23, 1
    %p135 = por %p133, %p134
    %p137 = scmp.ne.s32.totalorder %s122, %s136
    %p138 = scmp.eq.s32.totalorder %s23, 0
    %p139 = por %p137, %p138
    %s141 = sadd.s32 %s140, 1
    %p144 = scmp.eq.s32.totalorder %s17, 1
    %p145 = scmp.ne.s32.totalorder %s140, %s142
    %p146 = scmp.eq.s32.totalorder %s17, 0
    %p147 = por %p145, %p146
    %p148 = scmp.ne.s32.totalorder %s140, %s142
    %p149 = scmp.eq.s32.totalorder %s22, 1
    %p150 = por %p148, %p149
    %p151 = scmp.ne.s32.totalorder %s142, %s143
    %p152 = scmp.eq.s32.totalorder %s22, 0
    %p153 = por %p151, %p152
    %p154 = scmp.ne.s32.totalorder %s142, %s143
    %p155 = scmp.eq.s32.totalorder %s23, 1
    %p156 = por %p154, %p155
    %p158 = scmp.ne.s32.totalorder %s143, %s157
    %p159 = scmp.eq.s32.totalorder %s23, 0
    %p160 = por %p158, %p159
    %s162 = sadd.s32 %s161, 1
    %p165 = scmp.eq.s32.totalorder %s17, 1
    %p166 = scmp.ne.s32.totalorder %s161, %s163
    %p167 = scmp.eq.s32.totalorder %s17, 0
    %p168 = por %p166, %p167
    %p169 = scmp.ne.s32.totalorder %s161, %s163
    %p170 = scmp.eq.s32.totalorder %s22, 1
    %p171 = por %p169, %p170
    %p172 = scmp.ne.s32.totalorder %s163, %s164
    %p173 = scmp.eq.s32.totalorder %s22, 0
    %p174 = por %p172, %p173
    %p175 = scmp.ne.s32.totalorder %s163, %s164
    %p176 = scmp.eq.s32.totalorder %s23, 1
    %p177 = por %p175, %p176
    %p179 = scmp.ne.s32.totalorder %s164, %s178
    %p180 = scmp.eq.s32.totalorder %s23, 0
    %p181 = por %p179, %p180
    %s183 = sadd.s32 %s182, 1
    %p186 = scmp.eq.s32.totalorder %s17, 1
    %p187 = scmp.ne.s32.totalorder %s182, %s184
    %p188 = scmp.eq.s32.totalorder %s17, 0
    %p189 = por %p187, %p188
    %p190 = scmp.ne.s32.totalorder %s182, %s184
    %p191 = scmp.eq.s32.totalorder %s22, 1
    %p192 = por %p190, %p191
    %p193 = scmp.ne.s32.totalorder %s184, %s185
    %p194 = scmp.eq.s32.totalorder %s22, 0
    %p195 = por %p193, %p194
    %p196 = scmp.ne.s32.totalorder %s184, %s185
    %p197 = scmp.eq.s32.totalorder %s23, 1
    %p198 = por %p196, %p197
    %p200 = scmp.ne.s32.totalorder %s185, %s199
    %p201 = scmp.eq.s32.totalorder %s23, 0
    %p202 = por %p200, %p201
    %s204 = sadd.s32 %s203, 1
    %p207 = scmp.eq.s32.totalorder %s17, 1
    %p208 = scmp.ne.s32.totalorder %s203, %s205
    %p209 = scmp.eq.s32.totalorder %s17, 0
    %p210 = por %p208, %p209
    %p211 = scmp.ne.s32.totalorder %s203, %s205
    %p212 = scmp.eq.s32.totalorder %s22, 1
    %p213 = por %p211, %p212
    %p214 = scmp.ne.s32.totalorder %s205, %s206
    %p215 = scmp.eq.s32.totalorder %s22, 0
    %p216 = por %p214, %p215
    %p217 = scmp.ne.s32.totalorder %s205, %s206
    %p218 = scmp.eq.s32.totalorder %s23, 1
    %p219 = por %p217, %p218
    %p221 = scmp.ne.s32.totalorder %s206, %s220
    %p222 = scmp.eq.s32.totalorder %s23, 0
    %p223 = por %p221, %p222
    %s224 = ssub.s32 %s17, %s24
    %p225 = scmp.eq.s32.totalorder %s224, 0
    %s227 = sadd.s32 %s226, 1
    %s228 = scalar_select %p225, %s226, %s227
    %p231 = pneg %p225
    %p232 = scmp.eq.s32.totalorder %s17, 1
    %p233 = por %p231, %p232
    %p234 = scmp.ne.s32.totalorder %s226, %s229
    %p235 = scmp.eq.s32.totalorder %s17, 0
    %p236 = por %p234, %p235
    %p237 = scmp.ne.s32.totalorder %s226, %s229
    %p238 = scmp.eq.s32.totalorder %s22, 1
    %p239 = por %p237, %p238
    %p240 = scmp.ne.s32.totalorder %s229, %s230
    %p241 = scmp.eq.s32.totalorder %s22, 0
    %p242 = por %p240, %p241
    %p243 = scmp.ne.s32.totalorder %s229, %s230
    %p244 = scmp.eq.s32.totalorder %s23, 1
    %p245 = por %p243, %p244
    %p247 = scmp.ne.s32.totalorder %s230, %s246
    %p248 = scmp.eq.s32.totalorder %s23, 0
    %p249 = por %p247, %p248
    %p250 = scmp.le.s32.totalorder 1, %s17
    %p251 = scmp.lt.s32.totalorder %s17, 3
    %p252 = pnand %p250, %p251
    %p253 = pneg %p252
    // Predicated region
    $region9: #{tpu_custom_call.1} parent=5 // pred_check
      _
    $region10: #{tpu_custom_call.1} parent=5 // pred_check_branch
      %255 = sbr.rel (%p252) target = $region12
    $region11: #{tpu_custom_call.1} parent=5 // pred_region
      %s256 = ssub.s32 %s17, 1
      // Predicated region
      $region13: #{tpu_custom_call.1} parent=11 // pred_check
        %p257 = pneg %p90
      $region14: #{tpu_custom_call.1} parent=11 // pred_check_branch
        %259 = sbr.rel (%p257) target = $region16
      $region15: #{tpu_custom_call.1} parent=11 // pred_region
        _
      $region16: #{tpu_custom_call.1} parent=11 // pred_fallthru
        _
      // Predicated region
      $region17: #{tpu_custom_call.1} parent=11 // pred_check
        %p260 = pneg %p111
      $region18: #{tpu_custom_call.1} parent=11 // pred_check_branch
        %262 = sbr.rel (%p260) target = $region20
      $region19: #{tpu_custom_call.1} parent=11 // pred_region
        _
      $region20: #{tpu_custom_call.1} parent=11 // pred_fallthru
        _
      // Predicated region
      $region21: #{tpu_custom_call.1} parent=11 // pred_check
        %p263 = pneg %p132
      $region22: #{tpu_custom_call.1} parent=11 // pred_check_branch
        %265 = sbr.rel (%p263) target = $region24
      $region23: #{tpu_custom_call.1} parent=11 // pred_region
        _
      $region24: #{tpu_custom_call.1} parent=11 // pred_fallthru
        _
      // Predicated region
      $region25: #{tpu_custom_call.1} parent=11 // pred_check
        %p266 = pneg %p153
      $region26: #{tpu_custom_call.1} parent=11 // pred_check_branch
        %268 = sbr.rel (%p266) target = $region28
      $region27: #{tpu_custom_call.1} parent=11 // pred_region
        _
      $region28: #{tpu_custom_call.1} parent=11 // pred_fallthru
        _
      // Predicated region
      $region29: #{tpu_custom_call.1} parent=11 // pred_check
        %p269 = pneg %p174
      $region30: #{tpu_custom_call.1} parent=11 // pred_check_branch
        %271 = sbr.rel (%p269) target = $region32
      $region31: #{tpu_custom_call.1} parent=11 // pred_region
        _
      $region32: #{tpu_custom_call.1} parent=11 // pred_fallthru
        _
      // Predicated region
      $region33: #{tpu_custom_call.1} parent=11 // pred_check
        %p272 = pneg %p195
      $region34: #{tpu_custom_call.1} parent=11 // pred_check_branch
        %274 = sbr.rel (%p272) target = $region36
      $region35: #{tpu_custom_call.1} parent=11 // pred_region
        _
      $region36: #{tpu_custom_call.1} parent=11 // pred_fallthru
        _
      // Predicated region
      $region37: #{tpu_custom_call.1} parent=11 // pred_check
        %p275 = pneg %p216
      $region38: #{tpu_custom_call.1} parent=11 // pred_check_branch
        %277 = sbr.rel (%p275) target = $region40
      $region39: #{tpu_custom_call.1} parent=11 // pred_region
        _
      $region40: #{tpu_custom_call.1} parent=11 // pred_fallthru
        _
    $region12: #{tpu_custom_call.1} parent=5 // pred_fallthru
      _
    %p278 = scmp.lt.s32.totalorder %s17, 2
    // Predicated region
    $region41: #{tpu_custom_call.1} parent=5 // pred_check
      %p279 = pneg %p278
    $region42: #{tpu_custom_call.1} parent=5 // pred_check_branch
      %281 = sbr.rel (%p279) target = $region44
    $region43: #{tpu_custom_call.1} parent=5 // pred_region
      // Predicated region
      $region45: #{tpu_custom_call.1} parent=43 // pred_check
        %p282 = pneg %p37
      $region46: #{tpu_custom_call.1} parent=43 // pred_check_branch
        %284 = sbr.rel (%p282) target = $region48
      $region47: #{tpu_custom_call.1} parent=43 // pred_region
        %s285 = smul.u32 128, %s17
        %p286 = scmp.lt.s32.totalorder %s285, 255
        %s287 = scalar_select %p286, %s285, 255
        %s288 = smul.addr %s287, 8
        %s289 = scalar_lea.vmem %s0, %s288
        %s290 = smul.u32 128, %s17
      $region48: #{tpu_custom_call.1} parent=43 // pred_fallthru
        _
      // Predicated region
      $region49: #{tpu_custom_call.1} parent=43 // pred_check
        %p291 = pneg %p63
      $region50: #{tpu_custom_call.1} parent=43 // pred_check_branch
        %293 = sbr.rel (%p291) target = $region52
      $region51: #{tpu_custom_call.1} parent=43 // pred_region
        %s294 = smul.u32 16, %s17
        %p295 = scmp.lt.s32.totalorder %s294, 31
        %s296 = scalar_select %p295, %s294, 31
        %s297 = smul.addr %s296, 8
        %s298 = scalar_lea.vmem %s1, %s297
        %s299 = smul.u32 16, %s17
      $region52: #{tpu_custom_call.1} parent=43 // pred_fallthru
        _
    $region44: #{tpu_custom_call.1} parent=5 // pred_fallthru
      _
    %p300 = scmp.le.s32.totalorder 1, %s17
    %p301 = scmp.lt.s32.totalorder %s17, 3
    %p302 = pnand %p300, %p301
    %p303 = pneg %p302
    // Predicated region
    $region53: #{tpu_custom_call.1} parent=5 // pred_check
      _
    $region54: #{tpu_custom_call.1} parent=5 // pred_check_branch
      %305 = sbr.rel (%p302) target = $region56
    $region55: #{tpu_custom_call.1} parent=5 // pred_region
      %s306 = ssub.s32 %s17, 1
      %s307 = smul.u32 128, %s22
      %p308 = scmp.lt.s32.totalorder %s307, 255
      %s309 = scalar_select %p308, %s307, 255
      %s310 = smul.addr %s309, 8
      %s311 = scalar_lea.vmem %s0, %s310
      %p312 = pneg %p43
      %p313 = pneg %p40
      %s314 = smul.u32 16, %s22
      %p315 = scmp.lt.s32.totalorder %s314, 31
      %s316 = scalar_select %p315, %s314, 31
      %s317 = smul.addr %s316, 8
      %s318 = scalar_lea.vmem %s1, %s317
      %p319 = pneg %p69
      %p320 = pneg %p66
      %p321 = pneg %p90
      %p322 = pneg %p87
      %p323 = pneg %p111
      %p324 = pneg %p108
      %p325 = pneg %p132
      %p326 = pneg %p129
      %p327 = pneg %p153
      %p328 = pneg %p150
      %p329 = pneg %p174
      %p330 = pneg %p171
      %p331 = pneg %p195
      %p332 = pneg %p192
      %p333 = pneg %p216
      %p334 = pneg %p213
      %p335 = pneg %p242
      %p336 = pneg %p239
      %s337 = smul.u32 16, %s22
      %p338 = scmp.lt.s32.totalorder %s337, 31
      %s339 = scalar_select %p338, %s337, 31
      %s340 = smul.addr %s339, 8
      %s341 = scalar_lea.vmem %s9, %s340
      %s342 = smul.u32 128, %s22
      %p343 = scmp.lt.s32.totalorder %s342, 255
      %s344 = scalar_select %p343, %s342, 255
      %s345 = smul.addr %s344, 8
      %s346 = scalar_lea.vmem %s0, %s345
      %s347 = smul.u32 128, %s22
      %s348 = smul.u32 16, %s22
      %p349 = scmp.lt.s32.totalorder %s348, 31
      %s350 = scalar_select %p349, %s348, 31
      %s351 = smul.addr %s350, 8
      %s352 = scalar_lea.vmem %s1, %s351
      %s353 = smul.u32 16, %s22
      %s354 = smul.u32 16, %s22
      %p355 = scmp.lt.s32.totalorder %s354, 31
      %s356 = scalar_select %p355, %s354, 31
      %s357 = smul.addr %s356, 8
      %s358 = scalar_lea.vmem %s9, %s357
      %s359 = smul.u32 16, %s22
      %v360 = vld [vmem:[%s346] sm:$0xff]
      %v361 = vld [vmem:[%s346 + $0x8] sm:$0xff]
      %v362 = vld [vmem:[%s346 + $0x10] sm:$0xff]
      %v363 = vld [vmem:[%s346 + $0x18] sm:$0xff]
      %v364 = vld [vmem:[%s346 + $0x20] sm:$0xff]
      %v365 = vld [vmem:[%s346 + $0x28] sm:$0xff]
      %v366 = vld [vmem:[%s346 + $0x30] sm:$0xff]
      %v367 = vld [vmem:[%s346 + $0x38] sm:$0xff]
      %v368 = vld [vmem:[%s346 + $0x40] sm:$0xff]
      %v369 = vld [vmem:[%s346 + $0x48] sm:$0xff]
      %v370 = vld [vmem:[%s346 + $0x50] sm:$0xff]
      %v371 = vld [vmem:[%s346 + $0x58] sm:$0xff]
      %v372 = vld [vmem:[%s346 + $0x60] sm:$0xff]
      %v373 = vld [vmem:[%s346 + $0x68] sm:$0xff]
      %v374 = vld [vmem:[%s346 + $0x70] sm:$0xff]
      %v375 = vld [vmem:[%s346 + $0x78] sm:$0xff]
      %v376 = vld [vmem:[%s346 + $0x80] sm:$0xff]
      %v377 = vld [vmem:[%s346 + $0x88] sm:$0xff]
      %v378 = vld [vmem:[%s346 + $0x90] sm:$0xff]
      %v379 = vld [vmem:[%s346 + $0x98] sm:$0xff]
      %v380 = vld [vmem:[%s346 + $0xa0] sm:$0xff]
      %v381 = vld [vmem:[%s346 + $0xa8] sm:$0xff]
      %v382 = vld [vmem:[%s346 + $0xb0] sm:$0xff]
      %v383 = vld [vmem:[%s346 + $0xb8] sm:$0xff]
      %v384 = vld [vmem:[%s346 + $0xc0] sm:$0xff]
      %v385 = vld [vmem:[%s346 + $0xc8] sm:$0xff]
      %v386 = vld [vmem:[%s346 + $0xd0] sm:$0xff]
      %v387 = vld [vmem:[%s346 + $0xd8] sm:$0xff]
      %v388 = vld [vmem:[%s346 + $0xe0] sm:$0xff]
      %v389 = vld [vmem:[%s346 + $0xe8] sm:$0xff]
      %v390 = vld [vmem:[%s346 + $0xf0] sm:$0xff]
      %v391 = vld [vmem:[%s346 + $0xf8] sm:$0xff]
      %v392 = vld [vmem:[%s346 + $0x100] sm:$0xff]
      %v393 = vld [vmem:[%s346 + $0x108] sm:$0xff]
      %v394 = vld [vmem:[%s346 + $0x110] sm:$0xff]
      %v395 = vld [vmem:[%s346 + $0x118] sm:$0xff]
      %v396 = vld [vmem:[%s346 + $0x120] sm:$0xff]
      %v397 = vld [vmem:[%s346 + $0x128] sm:$0xff]
      %v398 = vld [vmem:[%s346 + $0x130] sm:$0xff]
      %v399 = vld [vmem:[%s346 + $0x138] sm:$0xff]
      %v400 = vld [vmem:[%s346 + $0x140] sm:$0xff]
      %v401 = vld [vmem:[%s346 + $0x148] sm:$0xff]
      %v402 = vld [vmem:[%s346 + $0x150] sm:$0xff]
      %v403 = vld [vmem:[%s346 + $0x158] sm:$0xff]
      %v404 = vld [vmem:[%s346 + $0x160] sm:$0xff]
      %v405 = vld [vmem:[%s346 + $0x168] sm:$0xff]
      %v406 = vld [vmem:[%s346 + $0x170] sm:$0xff]
      %v407 = vld [vmem:[%s346 + $0x178] sm:$0xff]
      %v408 = vld [vmem:[%s346 + $0x180] sm:$0xff]
      %v409 = vld [vmem:[%s346 + $0x188] sm:$0xff]
      %v410 = vld [vmem:[%s346 + $0x190] sm:$0xff]
      %v411 = vld [vmem:[%s346 + $0x198] sm:$0xff]
      %v412 = vld [vmem:[%s346 + $0x1a0] sm:$0xff]
      %v413 = vld [vmem:[%s346 + $0x1a8] sm:$0xff]
      %v414 = vld [vmem:[%s346 + $0x1b0] sm:$0xff]
      %v415 = vld [vmem:[%s346 + $0x1b8] sm:$0xff]
      %v416 = vld [vmem:[%s346 + $0x1c0] sm:$0xff]
      %v417 = vld [vmem:[%s346 + $0x1c8] sm:$0xff]
      %v418 = vld [vmem:[%s346 + $0x1d0] sm:$0xff]
      %v419 = vld [vmem:[%s346 + $0x1d8] sm:$0xff]
      %v420 = vld [vmem:[%s346 + $0x1e0] sm:$0xff]
      %v421 = vld [vmem:[%s346 + $0x1e8] sm:$0xff]
      %v422 = vld [vmem:[%s346 + $0x1f0] sm:$0xff]
      %v423 = vld [vmem:[%s346 + $0x1f8] sm:$0xff]
      %v424 = vld [vmem:[%s346 + $0x200] sm:$0xff]
      %v425 = vld [vmem:[%s346 + $0x208] sm:$0xff]
      %v426 = vld [vmem:[%s346 + $0x210] sm:$0xff]
      %v427 = vld [vmem:[%s346 + $0x218] sm:$0xff]
      %v428 = vld [vmem:[%s346 + $0x220] sm:$0xff]
      %v429 = vld [vmem:[%s346 + $0x228] sm:$0xff]
      %v430 = vld [vmem:[%s346 + $0x230] sm:$0xff]
      %v431 = vld [vmem:[%s346 + $0x238] sm:$0xff]
      %v432 = vld [vmem:[%s346 + $0x240] sm:$0xff]
      %v433 = vld [vmem:[%s346 + $0x248] sm:$0xff]
      %v434 = vld [vmem:[%s346 + $0x250] sm:$0xff]
      %v435 = vld [vmem:[%s346 + $0x258] sm:$0xff]
      %v436 = vld [vmem:[%s346 + $0x260] sm:$0xff]
      %v437 = vld [vmem:[%s346 + $0x268] sm:$0xff]
      %v438 = vld [vmem:[%s346 + $0x270] sm:$0xff]
      %v439 = vld [vmem:[%s346 + $0x278] sm:$0xff]
      %v440 = vld [vmem:[%s346 + $0x280] sm:$0xff]
      %v441 = vld [vmem:[%s346 + $0x288] sm:$0xff]
      %v442 = vld [vmem:[%s346 + $0x290] sm:$0xff]
      %v443 = vld [vmem:[%s346 + $0x298] sm:$0xff]
      %v444 = vld [vmem:[%s346 + $0x2a0] sm:$0xff]
      %v445 = vld [vmem:[%s346 + $0x2a8] sm:$0xff]
      %v446 = vld [vmem:[%s346 + $0x2b0] sm:$0xff]
      %v447 = vld [vmem:[%s346 + $0x2b8] sm:$0xff]
      %v448 = vld [vmem:[%s346 + $0x2c0] sm:$0xff]
      %v449 = vld [vmem:[%s346 + $0x2c8] sm:$0xff]
      %v450 = vld [vmem:[%s346 + $0x2d0] sm:$0xff]
      %v451 = vld [vmem:[%s346 + $0x2d8] sm:$0xff]
      %v452 = vld [vmem:[%s346 + $0x2e0] sm:$0xff]
      %v453 = vld [vmem:[%s346 + $0x2e8] sm:$0xff]
      %v454 = vld [vmem:[%s346 + $0x2f0] sm:$0xff]
      %v455 = vld [vmem:[%s346 + $0x2f8] sm:$0xff]
      %v456 = vld [vmem:[%s346 + $0x300] sm:$0xff]
      %v457 = vld [vmem:[%s346 + $0x308] sm:$0xff]
      %v458 = vld [vmem:[%s346 + $0x310] sm:$0xff]
      %v459 = vld [vmem:[%s346 + $0x318] sm:$0xff]
      %v460 = vld [vmem:[%s346 + $0x320] sm:$0xff]
      %v461 = vld [vmem:[%s346 + $0x328] sm:$0xff]
      %v462 = vld [vmem:[%s346 + $0x330] sm:$0xff]
      %v463 = vld [vmem:[%s346 + $0x338] sm:$0xff]
      %v464 = vld [vmem:[%s346 + $0x340] sm:$0xff]
      %v465 = vld [vmem:[%s346 + $0x348] sm:$0xff]
      %v466 = vld [vmem:[%s346 + $0x350] sm:$0xff]
      %v467 = vld [vmem:[%s346 + $0x358] sm:$0xff]
      %v468 = vld [vmem:[%s346 + $0x360] sm:$0xff]
      %v469 = vld [vmem:[%s346 + $0x368] sm:$0xff]
      %v470 = vld [vmem:[%s346 + $0x370] sm:$0xff]
      %v471 = vld [vmem:[%s346 + $0x378] sm:$0xff]
      %v472 = vld [vmem:[%s346 + $0x380] sm:$0xff]
      %v473 = vld [vmem:[%s346 + $0x388] sm:$0xff]
      %v474 = vld [vmem:[%s346 + $0x390] sm:$0xff]
      %v475 = vld [vmem:[%s346 + $0x398] sm:$0xff]
      %v476 = vld [vmem:[%s346 + $0x3a0] sm:$0xff]
      %v477 = vld [vmem:[%s346 + $0x3a8] sm:$0xff]
      %v478 = vld [vmem:[%s346 + $0x3b0] sm:$0xff]
      %v479 = vld [vmem:[%s346 + $0x3b8] sm:$0xff]
      %v480 = vld [vmem:[%s346 + $0x3c0] sm:$0xff]
      %v481 = vld [vmem:[%s346 + $0x3c8] sm:$0xff]
      %v482 = vld [vmem:[%s346 + $0x3d0] sm:$0xff]
      %v483 = vld [vmem:[%s346 + $0x3d8] sm:$0xff]
      %v484 = vld [vmem:[%s346 + $0x3e0] sm:$0xff]
      %v485 = vld [vmem:[%s346 + $0x3e8] sm:$0xff]
      %v486 = vld [vmem:[%s346 + $0x3f0] sm:$0xff]
      %v487 = vld [vmem:[%s346 + $0x3f8] sm:$0xff]
      %vm488 = vcmask 64512
      %v489 = vsel %vm488, %v360, 0.0
      %v490 = vrot.slane %v489, 4
      %v491 = vadd.f32 %v489, %v490
      %v492 = vrot.slane %v491, 2
      %v493 = vadd.f32 %v491, %v492
      %v494 = vrot.slane %v493, 1
      %v495 = vadd.f32 %v493, %v494
      %v496 = vsel %vm488, %v361, 0.0
      %v497 = vrot.slane %v496, 4
      %v498 = vadd.f32 %v496, %v497
      %v499 = vrot.slane %v498, 2
      %v500 = vadd.f32 %v498, %v499
      %v501 = vrot.slane %v500, 1
      %v502 = vadd.f32 %v500, %v501
      %v503 = vsel %vm488, %v362, 0.0
      %v504 = vrot.slane %v503, 4
      %v505 = vadd.f32 %v503, %v504
      %v506 = vrot.slane %v505, 2
      %v507 = vadd.f32 %v505, %v506
      %v508 = vrot.slane %v507, 1
      %v509 = vadd.f32 %v507, %v508
      %v510 = vsel %vm488, %v363, 0.0
      %v511 = vrot.slane %v510, 4
      %v512 = vadd.f32 %v510, %v511
      %v513 = vrot.slane %v512, 2
      %v514 = vadd.f32 %v512, %v513
      %v515 = vrot.slane %v514, 1
      %v516 = vadd.f32 %v514, %v515
      %v517 = vsel %vm488, %v364, 0.0
      %v518 = vrot.slane %v517, 4
      %v519 = vadd.f32 %v517, %v518
      %v520 = vrot.slane %v519, 2
      %v521 = vadd.f32 %v519, %v520
      %v522 = vrot.slane %v521, 1
      %v523 = vadd.f32 %v521, %v522
      %v524 = vsel %vm488, %v365, 0.0
      %v525 = vrot.slane %v524, 4
      %v526 = vadd.f32 %v524, %v525
      %v527 = vrot.slane %v526, 2
      %v528 = vadd.f32 %v526, %v527
      %v529 = vrot.slane %v528, 1
      %v530 = vadd.f32 %v528, %v529
      %v531 = vsel %vm488, %v366, 0.0
      %v532 = vrot.slane %v531, 4
      %v533 = vadd.f32 %v531, %v532
      %v534 = vrot.slane %v533, 2
      %v535 = vadd.f32 %v533, %v534
      %v536 = vrot.slane %v535, 1
      %v537 = vadd.f32 %v535, %v536
      %v538 = vsel %vm488, %v367, 0.0
      %v539 = vrot.slane %v538, 4
      %v540 = vadd.f32 %v538, %v539
      %v541 = vrot.slane %v540, 2
      %v542 = vadd.f32 %v540, %v541
      %v543 = vrot.slane %v542, 1
      %v544 = vadd.f32 %v542, %v543
      %v545 = vsel %vm488, %v368, 0.0
      %v546 = vrot.slane %v545, 4
      %v547 = vadd.f32 %v545, %v546
      %v548 = vrot.slane %v547, 2
      %v549 = vadd.f32 %v547, %v548
      %v550 = vrot.slane %v549, 1
      %v551 = vadd.f32 %v549, %v550
      %v552 = vsel %vm488, %v369, 0.0
      %v553 = vrot.slane %v552, 4
      %v554 = vadd.f32 %v552, %v553
      %v555 = vrot.slane %v554, 2
      %v556 = vadd.f32 %v554, %v555
      %v557 = vrot.slane %v556, 1
      %v558 = vadd.f32 %v556, %v557
      %v559 = vsel %vm488, %v370, 0.0
      %v560 = vrot.slane %v559, 4
      %v561 = vadd.f32 %v559, %v560
      %v562 = vrot.slane %v561, 2
      %v563 = vadd.f32 %v561, %v562
      %v564 = vrot.slane %v563, 1
      %v565 = vadd.f32 %v563, %v564
      %v566 = vsel %vm488, %v371, 0.0
      %v567 = vrot.slane %v566, 4
      %v568 = vadd.f32 %v566, %v567
      %v569 = vrot.slane %v568, 2
      %v570 = vadd.f32 %v568, %v569
      %v571 = vrot.slane %v570, 1
      %v572 = vadd.f32 %v570, %v571
      %v573 = vsel %vm488, %v372, 0.0
      %v574 = vrot.slane %v573, 4
      %v575 = vadd.f32 %v573, %v574
      %v576 = vrot.slane %v575, 2
      %v577 = vadd.f32 %v575, %v576
      %v578 = vrot.slane %v577, 1
      %v579 = vadd.f32 %v577, %v578
      %v580 = vsel %vm488, %v373, 0.0
      %v581 = vrot.slane %v580, 4
      %v582 = vadd.f32 %v580, %v581
      %v583 = vrot.slane %v582, 2
      %v584 = vadd.f32 %v582, %v583
      %v585 = vrot.slane %v584, 1
      %v586 = vadd.f32 %v584, %v585
      %v587 = vsel %vm488, %v374, 0.0
      %v588 = vrot.slane %v587, 4
      %v589 = vadd.f32 %v587, %v588
      %v590 = vrot.slane %v589, 2
      %v591 = vadd.f32 %v589, %v590
      %v592 = vrot.slane %v591, 1
      %v593 = vadd.f32 %v591, %v592
      %v594 = vsel %vm488, %v375, 0.0
      %v595 = vrot.slane %v594, 4
      %v596 = vadd.f32 %v594, %v595
      %v597 = vrot.slane %v596, 2
      %v598 = vadd.f32 %v596, %v597
      %v599 = vrot.slane %v598, 1
      %v600 = vadd.f32 %v598, %v599
      %v601 = vsel %vm488, %v376, 0.0
      %v602 = vrot.slane %v601, 4
      %v603 = vadd.f32 %v601, %v602
      %v604 = vrot.slane %v603, 2
      %v605 = vadd.f32 %v603, %v604
      %v606 = vrot.slane %v605, 1
      %v607 = vadd.f32 %v605, %v606
      %v608 = vsel %vm488, %v377, 0.0
      %v609 = vrot.slane %v608, 4
      %v610 = vadd.f32 %v608, %v609
      %v611 = vrot.slane %v610, 2
      %v612 = vadd.f32 %v610, %v611
      %v613 = vrot.slane %v612, 1
      %v614 = vadd.f32 %v612, %v613
      %v615 = vsel %vm488, %v378, 0.0
      %v616 = vrot.slane %v615, 4
      %v617 = vadd.f32 %v615, %v616
      %v618 = vrot.slane %v617, 2
      %v619 = vadd.f32 %v617, %v618
      %v620 = vrot.slane %v619, 1
      %v621 = vadd.f32 %v619, %v620
      %v622 = vsel %vm488, %v379, 0.0
      %v623 = vrot.slane %v622, 4
      %v624 = vadd.f32 %v622, %v623
      %v625 = vrot.slane %v624, 2
      %v626 = vadd.f32 %v624, %v625
      %v627 = vrot.slane %v626, 1
      %v628 = vadd.f32 %v626, %v627
      %v629 = vsel %vm488, %v380, 0.0
      %v630 = vrot.slane %v629, 4
      %v631 = vadd.f32 %v629, %v630
      %v632 = vrot.slane %v631, 2
      %v633 = vadd.f32 %v631, %v632
      %v634 = vrot.slane %v633, 1
      %v635 = vadd.f32 %v633, %v634
      %v636 = vsel %vm488, %v381, 0.0
      %v637 = vrot.slane %v636, 4
      %v638 = vadd.f32 %v636, %v637
      %v639 = vrot.slane %v638, 2
      %v640 = vadd.f32 %v638, %v639
      %v641 = vrot.slane %v640, 1
      %v642 = vadd.f32 %v640, %v641
      %v643 = vsel %vm488, %v382, 0.0
      %v644 = vrot.slane %v643, 4
      %v645 = vadd.f32 %v643, %v644
      %v646 = vrot.slane %v645, 2
      %v647 = vadd.f32 %v645, %v646
      %v648 = vrot.slane %v647, 1
      %v649 = vadd.f32 %v647, %v648
      %v650 = vsel %vm488, %v383, 0.0
      %v651 = vrot.slane %v650, 4
      %v652 = vadd.f32 %v650, %v651
      %v653 = vrot.slane %v652, 2
      %v654 = vadd.f32 %v652, %v653
      %v655 = vrot.slane %v654, 1
      %v656 = vadd.f32 %v654, %v655
      %v657 = vsel %vm488, %v384, 0.0
      %v658 = vrot.slane %v657, 4
      %v659 = vadd.f32 %v657, %v658
      %v660 = vrot.slane %v659, 2
      %v661 = vadd.f32 %v659, %v660
      %v662 = vrot.slane %v661, 1
      %v663 = vadd.f32 %v661, %v662
      %v664 = vsel %vm488, %v385, 0.0
      %v665 = vrot.slane %v664, 4
      %v666 = vadd.f32 %v664, %v665
      %v667 = vrot.slane %v666, 2
      %v668 = vadd.f32 %v666, %v667
      %v669 = vrot.slane %v668, 1
      %v670 = vadd.f32 %v668, %v669
      %v671 = vsel %vm488, %v386, 0.0
      %v672 = vrot.slane %v671, 4
      %v673 = vadd.f32 %v671, %v672
      %v674 = vrot.slane %v673, 2
      %v675 = vadd.f32 %v673, %v674
      %v676 = vrot.slane %v675, 1
      %v677 = vadd.f32 %v675, %v676
      %v678 = vsel %vm488, %v387, 0.0
      %v679 = vrot.slane %v678, 4
      %v680 = vadd.f32 %v678, %v679
      %v681 = vrot.slane %v680, 2
      %v682 = vadd.f32 %v680, %v681
      %v683 = vrot.slane %v682, 1
      %v684 = vadd.f32 %v682, %v683
      %v685 = vsel %vm488, %v388, 0.0
      %v686 = vrot.slane %v685, 4
      %v687 = vadd.f32 %v685, %v686
      %v688 = vrot.slane %v687, 2
      %v689 = vadd.f32 %v687, %v688
      %v690 = vrot.slane %v689, 1
      %v691 = vadd.f32 %v689, %v690
      %v692 = vsel %vm488, %v389, 0.0
      %v693 = vrot.slane %v692, 4
      %v694 = vadd.f32 %v692, %v693
      %v695 = vrot.slane %v694, 2
      %v696 = vadd.f32 %v694, %v695
      %v697 = vrot.slane %v696, 1
      %v698 = vadd.f32 %v696, %v697
      %v699 = vsel %vm488, %v390, 0.0
      %v700 = vrot.slane %v699, 4
      %v701 = vadd.f32 %v699, %v700
      %v702 = vrot.slane %v701, 2
      %v703 = vadd.f32 %v701, %v702
      %v704 = vrot.slane %v703, 1
      %v705 = vadd.f32 %v703, %v704
      %v706 = vsel %vm488, %v391, 0.0
      %v707 = vrot.slane %v706, 4
      %v708 = vadd.f32 %v706, %v707
      %v709 = vrot.slane %v708, 2
      %v710 = vadd.f32 %v708, %v709
      %v711 = vrot.slane %v710, 1
      %v712 = vadd.f32 %v710, %v711
      %v713 = vsel %vm488, %v392, 0.0
      %v714 = vrot.slane %v713, 4
      %v715 = vadd.f32 %v713, %v714
      %v716 = vrot.slane %v715, 2
      %v717 = vadd.f32 %v715, %v716
      %v718 = vrot.slane %v717, 1
      %v719 = vadd.f32 %v717, %v718
      %v720 = vsel %vm488, %v393, 0.0
      %v721 = vrot.slane %v720, 4
      %v722 = vadd.f32 %v720, %v721
      %v723 = vrot.slane %v722, 2
      %v724 = vadd.f32 %v722, %v723
      %v725 = vrot.slane %v724, 1
      %v726 = vadd.f32 %v724, %v725
      %v727 = vsel %vm488, %v394, 0.0
      %v728 = vrot.slane %v727, 4
      %v729 = vadd.f32 %v727, %v728
      %v730 = vrot.slane %v729, 2
      %v731 = vadd.f32 %v729, %v730
      %v732 = vrot.slane %v731, 1
      %v733 = vadd.f32 %v731, %v732
      %v734 = vsel %vm488, %v395, 0.0
      %v735 = vrot.slane %v734, 4
      %v736 = vadd.f32 %v734, %v735
      %v737 = vrot.slane %v736, 2
      %v738 = vadd.f32 %v736, %v737
      %v739 = vrot.slane %v738, 1
      %v740 = vadd.f32 %v738, %v739
      %v741 = vsel %vm488, %v396, 0.0
      %v742 = vrot.slane %v741, 4
      %v743 = vadd.f32 %v741, %v742
      %v744 = vrot.slane %v743, 2
      %v745 = vadd.f32 %v743, %v744
      %v746 = vrot.slane %v745, 1
      %v747 = vadd.f32 %v745, %v746
      %v748 = vsel %vm488, %v397, 0.0
      %v749 = vrot.slane %v748, 4
      %v750 = vadd.f32 %v748, %v749
      %v751 = vrot.slane %v750, 2
      %v752 = vadd.f32 %v750, %v751
      %v753 = vrot.slane %v752, 1
      %v754 = vadd.f32 %v752, %v753
      %v755 = vsel %vm488, %v398, 0.0
      %v756 = vrot.slane %v755, 4
      %v757 = vadd.f32 %v755, %v756
      %v758 = vrot.slane %v757, 2
      %v759 = vadd.f32 %v757, %v758
      %v760 = vrot.slane %v759, 1
      %v761 = vadd.f32 %v759, %v760
      %v762 = vsel %vm488, %v399, 0.0
      %v763 = vrot.slane %v762, 4
      %v764 = vadd.f32 %v762, %v763
      %v765 = vrot.slane %v764, 2
      %v766 = vadd.f32 %v764, %v765
      %v767 = vrot.slane %v766, 1
      %v768 = vadd.f32 %v766, %v767
      %v769 = vsel %vm488, %v400, 0.0
      %v770 = vrot.slane %v769, 4
      %v771 = vadd.f32 %v769, %v770
      %v772 = vrot.slane %v771, 2
      %v773 = vadd.f32 %v771, %v772
      %v774 = vrot.slane %v773, 1
      %v775 = vadd.f32 %v773, %v774
      %v776 = vsel %vm488, %v401, 0.0
      %v777 = vrot.slane %v776, 4
      %v778 = vadd.f32 %v776, %v777
      %v779 = vrot.slane %v778, 2
      %v780 = vadd.f32 %v778, %v779
      %v781 = vrot.slane %v780, 1
      %v782 = vadd.f32 %v780, %v781
      %v783 = vsel %vm488, %v402, 0.0
      %v784 = vrot.slane %v783, 4
      %v785 = vadd.f32 %v783, %v784
      %v786 = vrot.slane %v785, 2
      %v787 = vadd.f32 %v785, %v786
      %v788 = vrot.slane %v787, 1
      %v789 = vadd.f32 %v787, %v788
      %v790 = vsel %vm488, %v403, 0.0
      %v791 = vrot.slane %v790, 4
      %v792 = vadd.f32 %v790, %v791
      %v793 = vrot.slane %v792, 2
      %v794 = vadd.f32 %v792, %v793
      %v795 = vrot.slane %v794, 1
      %v796 = vadd.f32 %v794, %v795
      %v797 = vsel %vm488, %v404, 0.0
      %v798 = vrot.slane %v797, 4
      %v799 = vadd.f32 %v797, %v798
      %v800 = vrot.slane %v799, 2
      %v801 = vadd.f32 %v799, %v800
      %v802 = vrot.slane %v801, 1
      %v803 = vadd.f32 %v801, %v802
      %v804 = vsel %vm488, %v405, 0.0
      %v805 = vrot.slane %v804, 4
      %v806 = vadd.f32 %v804, %v805
      %v807 = vrot.slane %v806, 2
      %v808 = vadd.f32 %v806, %v807
      %v809 = vrot.slane %v808, 1
      %v810 = vadd.f32 %v808, %v809
      %v811 = vsel %vm488, %v406, 0.0
      %v812 = vrot.slane %v811, 4
      %v813 = vadd.f32 %v811, %v812
      %v814 = vrot.slane %v813, 2
      %v815 = vadd.f32 %v813, %v814
      %v816 = vrot.slane %v815, 1
      %v817 = vadd.f32 %v815, %v816
      %v818 = vsel %vm488, %v407, 0.0
      %v819 = vrot.slane %v818, 4
      %v820 = vadd.f32 %v818, %v819
      %v821 = vrot.slane %v820, 2
      %v822 = vadd.f32 %v820, %v821
      %v823 = vrot.slane %v822, 1
      %v824 = vadd.f32 %v822, %v823
      %v825 = vsel %vm488, %v408, 0.0
      %v826 = vrot.slane %v825, 4
      %v827 = vadd.f32 %v825, %v826
      %v828 = vrot.slane %v827, 2
      %v829 = vadd.f32 %v827, %v828
      %v830 = vrot.slane %v829, 1
      %v831 = vadd.f32 %v829, %v830
      %v832 = vsel %vm488, %v409, 0.0
      %v833 = vrot.slane %v832, 4
      %v834 = vadd.f32 %v832, %v833
      %v835 = vrot.slane %v834, 2
      %v836 = vadd.f32 %v834, %v835
      %v837 = vrot.slane %v836, 1
      %v838 = vadd.f32 %v836, %v837
      %v839 = vsel %vm488, %v410, 0.0
      %v840 = vrot.slane %v839, 4
      %v841 = vadd.f32 %v839, %v840
      %v842 = vrot.slane %v841, 2
      %v843 = vadd.f32 %v841, %v842
      %v844 = vrot.slane %v843, 1
      %v845 = vadd.f32 %v843, %v844
      %v846 = vsel %vm488, %v411, 0.0
      %v847 = vrot.slane %v846, 4
      %v848 = vadd.f32 %v846, %v847
      %v849 = vrot.slane %v848, 2
      %v850 = vadd.f32 %v848, %v849
      %v851 = vrot.slane %v850, 1
      %v852 = vadd.f32 %v850, %v851
      %v853 = vsel %vm488, %v412, 0.0
      %v854 = vrot.slane %v853, 4
      %v855 = vadd.f32 %v853, %v854
      %v856 = vrot.slane %v855, 2
      %v857 = vadd.f32 %v855, %v856
      %v858 = vrot.slane %v857, 1
      %v859 = vadd.f32 %v857, %v858
      %v860 = vsel %vm488, %v413, 0.0
      %v861 = vrot.slane %v860, 4
      %v862 = vadd.f32 %v860, %v861
      %v863 = vrot.slane %v862, 2
      %v864 = vadd.f32 %v862, %v863
      %v865 = vrot.slane %v864, 1
      %v866 = vadd.f32 %v864, %v865
      %v867 = vsel %vm488, %v414, 0.0
      %v868 = vrot.slane %v867, 4
      %v869 = vadd.f32 %v867, %v868
      %v870 = vrot.slane %v869, 2
      %v871 = vadd.f32 %v869, %v870
      %v872 = vrot.slane %v871, 1
      %v873 = vadd.f32 %v871, %v872
      %v874 = vsel %vm488, %v415, 0.0
      %v875 = vrot.slane %v874, 4
      %v876 = vadd.f32 %v874, %v875
      %v877 = vrot.slane %v876, 2
      %v878 = vadd.f32 %v876, %v877
      %v879 = vrot.slane %v878, 1
      %v880 = vadd.f32 %v878, %v879
      %v881 = vsel %vm488, %v416, 0.0
      %v882 = vrot.slane %v881, 4
      %v883 = vadd.f32 %v881, %v882
      %v884 = vrot.slane %v883, 2
      %v885 = vadd.f32 %v883, %v884
      %v886 = vrot.slane %v885, 1
      %v887 = vadd.f32 %v885, %v886
      %v888 = vsel %vm488, %v417, 0.0
      %v889 = vrot.slane %v888, 4
      %v890 = vadd.f32 %v888, %v889
      %v891 = vrot.slane %v890, 2
      %v892 = vadd.f32 %v890, %v891
      %v893 = vrot.slane %v892, 1
      %v894 = vadd.f32 %v892, %v893
      %v895 = vsel %vm488, %v418, 0.0
      %v896 = vrot.slane %v895, 4
      %v897 = vadd.f32 %v895, %v896
      %v898 = vrot.slane %v897, 2
      %v899 = vadd.f32 %v897, %v898
      %v900 = vrot.slane %v899, 1
      %v901 = vadd.f32 %v899, %v900
      %v902 = vsel %vm488, %v419, 0.0
      %v903 = vrot.slane %v902, 4
      %v904 = vadd.f32 %v902, %v903
      %v905 = vrot.slane %v904, 2
      %v906 = vadd.f32 %v904, %v905
      %v907 = vrot.slane %v906, 1
      %v908 = vadd.f32 %v906, %v907
      %v909 = vsel %vm488, %v420, 0.0
      %v910 = vrot.slane %v909, 4
      %v911 = vadd.f32 %v909, %v910
      %v912 = vrot.slane %v911, 2
      %v913 = vadd.f32 %v911, %v912
      %v914 = vrot.slane %v913, 1
      %v915 = vadd.f32 %v913, %v914
      %v916 = vsel %vm488, %v421, 0.0
      %v917 = vrot.slane %v916, 4
      %v918 = vadd.f32 %v916, %v917
      %v919 = vrot.slane %v918, 2
      %v920 = vadd.f32 %v918, %v919
      %v921 = vrot.slane %v920, 1
      %v922 = vadd.f32 %v920, %v921
      %v923 = vsel %vm488, %v422, 0.0
      %v924 = vrot.slane %v923, 4
      %v925 = vadd.f32 %v923, %v924
      %v926 = vrot.slane %v925, 2
      %v927 = vadd.f32 %v925, %v926
      %v928 = vrot.slane %v927, 1
      %v929 = vadd.f32 %v927, %v928
      %v930 = vsel %vm488, %v423, 0.0
      %v931 = vrot.slane %v930, 4
      %v932 = vadd.f32 %v930, %v931
      %v933 = vrot.slane %v932, 2
      %v934 = vadd.f32 %v932, %v933
      %v935 = vrot.slane %v934, 1
      %v936 = vadd.f32 %v934, %v935
      %v937 = vsel %vm488, %v424, 0.0
      %v938 = vrot.slane %v937, 4
      %v939 = vadd.f32 %v937, %v938
      %v940 = vrot.slane %v939, 2
      %v941 = vadd.f32 %v939, %v940
      %v942 = vrot.slane %v941, 1
      %v943 = vadd.f32 %v941, %v942
      %v944 = vsel %vm488, %v425, 0.0
      %v945 = vrot.slane %v944, 4
      %v946 = vadd.f32 %v944, %v945
      %v947 = vrot.slane %v946, 2
      %v948 = vadd.f32 %v946, %v947
      %v949 = vrot.slane %v948, 1
      %v950 = vadd.f32 %v948, %v949
      %v951 = vsel %vm488, %v426, 0.0
      %v952 = vrot.slane %v951, 4
      %v953 = vadd.f32 %v951, %v952
      %v954 = vrot.slane %v953, 2
      %v955 = vadd.f32 %v953, %v954
      %v956 = vrot.slane %v955, 1
      %v957 = vadd.f32 %v955, %v956
      %v958 = vsel %vm488, %v427, 0.0
      %v959 = vrot.slane %v958, 4
      %v960 = vadd.f32 %v958, %v959
      %v961 = vrot.slane %v960, 2
      %v962 = vadd.f32 %v960, %v961
      %v963 = vrot.slane %v962, 1
      %v964 = vadd.f32 %v962, %v963
      %v965 = vsel %vm488, %v428, 0.0
      %v966 = vrot.slane %v965, 4
      %v967 = vadd.f32 %v965, %v966
      %v968 = vrot.slane %v967, 2
      %v969 = vadd.f32 %v967, %v968
      %v970 = vrot.slane %v969, 1
      %v971 = vadd.f32 %v969, %v970
      %v972 = vsel %vm488, %v429, 0.0
      %v973 = vrot.slane %v972, 4
      %v974 = vadd.f32 %v972, %v973
      %v975 = vrot.slane %v974, 2
      %v976 = vadd.f32 %v974, %v975
      %v977 = vrot.slane %v976, 1
      %v978 = vadd.f32 %v976, %v977
      %v979 = vsel %vm488, %v430, 0.0
      %v980 = vrot.slane %v979, 4
      %v981 = vadd.f32 %v979, %v980
      %v982 = vrot.slane %v981, 2
      %v983 = vadd.f32 %v981, %v982
      %v984 = vrot.slane %v983, 1
      %v985 = vadd.f32 %v983, %v984
      %v986 = vsel %vm488, %v431, 0.0
      %v987 = vrot.slane %v986, 4
      %v988 = vadd.f32 %v986, %v987
      %v989 = vrot.slane %v988, 2
      %v990 = vadd.f32 %v988, %v989
      %v991 = vrot.slane %v990, 1
      %v992 = vadd.f32 %v990, %v991
      %v993 = vsel %vm488, %v432, 0.0
      %v994 = vrot.slane %v993, 4
      %v995 = vadd.f32 %v993, %v994
      %v996 = vrot.slane %v995, 2
      %v997 = vadd.f32 %v995, %v996
      %v998 = vrot.slane %v997, 1
      %v999 = vadd.f32 %v997, %v998
      %v1000 = vsel %vm488, %v433, 0.0
      %v1001 = vrot.slane %v1000, 4
      %v1002 = vadd.f32 %v1000, %v1001
      %v1003 = vrot.slane %v1002, 2
      %v1004 = vadd.f32 %v1002, %v1003
      %v1005 = vrot.slane %v1004, 1
      %v1006 = vadd.f32 %v1004, %v1005
      %v1007 = vsel %vm488, %v434, 0.0
      %v1008 = vrot.slane %v1007, 4
      %v1009 = vadd.f32 %v1007, %v1008
      %v1010 = vrot.slane %v1009, 2
      %v1011 = vadd.f32 %v1009, %v1010
      %v1012 = vrot.slane %v1011, 1
      %v1013 = vadd.f32 %v1011, %v1012
      %v1014 = vsel %vm488, %v435, 0.0
      %v1015 = vrot.slane %v1014, 4
      %v1016 = vadd.f32 %v1014, %v1015
      %v1017 = vrot.slane %v1016, 2
      %v1018 = vadd.f32 %v1016, %v1017
      %v1019 = vrot.slane %v1018, 1
      %v1020 = vadd.f32 %v1018, %v1019
      %v1021 = vsel %vm488, %v436, 0.0
      %v1022 = vrot.slane %v1021, 4
      %v1023 = vadd.f32 %v1021, %v1022
      %v1024 = vrot.slane %v1023, 2
      %v1025 = vadd.f32 %v1023, %v1024
      %v1026 = vrot.slane %v1025, 1
      %v1027 = vadd.f32 %v1025, %v1026
      %v1028 = vsel %vm488, %v437, 0.0
      %v1029 = vrot.slane %v1028, 4
      %v1030 = vadd.f32 %v1028, %v1029
      %v1031 = vrot.slane %v1030, 2
      %v1032 = vadd.f32 %v1030, %v1031
      %v1033 = vrot.slane %v1032, 1
      %v1034 = vadd.f32 %v1032, %v1033
      %v1035 = vsel %vm488, %v438, 0.0
      %v1036 = vrot.slane %v1035, 4
      %v1037 = vadd.f32 %v1035, %v1036
      %v1038 = vrot.slane %v1037, 2
      %v1039 = vadd.f32 %v1037, %v1038
      %v1040 = vrot.slane %v1039, 1
      %v1041 = vadd.f32 %v1039, %v1040
      %v1042 = vsel %vm488, %v439, 0.0
      %v1043 = vrot.slane %v1042, 4
      %v1044 = vadd.f32 %v1042, %v1043
      %v1045 = vrot.slane %v1044, 2
      %v1046 = vadd.f32 %v1044, %v1045
      %v1047 = vrot.slane %v1046, 1
      %v1048 = vadd.f32 %v1046, %v1047
      %v1049 = vsel %vm488, %v440, 0.0
      %v1050 = vrot.slane %v1049, 4
      %v1051 = vadd.f32 %v1049, %v1050
      %v1052 = vrot.slane %v1051, 2
      %v1053 = vadd.f32 %v1051, %v1052
      %v1054 = vrot.slane %v1053, 1
      %v1055 = vadd.f32 %v1053, %v1054
      %v1056 = vsel %vm488, %v441, 0.0
      %v1057 = vrot.slane %v1056, 4
      %v1058 = vadd.f32 %v1056, %v1057
      %v1059 = vrot.slane %v1058, 2
      %v1060 = vadd.f32 %v1058, %v1059
      %v1061 = vrot.slane %v1060, 1
      %v1062 = vadd.f32 %v1060, %v1061
      %v1063 = vsel %vm488, %v442, 0.0
      %v1064 = vrot.slane %v1063, 4
      %v1065 = vadd.f32 %v1063, %v1064
      %v1066 = vrot.slane %v1065, 2
      %v1067 = vadd.f32 %v1065, %v1066
      %v1068 = vrot.slane %v1067, 1
      %v1069 = vadd.f32 %v1067, %v1068
      %v1070 = vsel %vm488, %v443, 0.0
      %v1071 = vrot.slane %v1070, 4
      %v1072 = vadd.f32 %v1070, %v1071
      %v1073 = vrot.slane %v1072, 2
      %v1074 = vadd.f32 %v1072, %v1073
      %v1075 = vrot.slane %v1074, 1
      %v1076 = vadd.f32 %v1074, %v1075
      %v1077 = vsel %vm488, %v444, 0.0
      %v1078 = vrot.slane %v1077, 4
      %v1079 = vadd.f32 %v1077, %v1078
      %v1080 = vrot.slane %v1079, 2
      %v1081 = vadd.f32 %v1079, %v1080
      %v1082 = vrot.slane %v1081, 1
      %v1083 = vadd.f32 %v1081, %v1082
      %v1084 = vsel %vm488, %v445, 0.0
      %v1085 = vrot.slane %v1084, 4
      %v1086 = vadd.f32 %v1084, %v1085
      %v1087 = vrot.slane %v1086, 2
      %v1088 = vadd.f32 %v1086, %v1087
      %v1089 = vrot.slane %v1088, 1
      %v1090 = vadd.f32 %v1088, %v1089
      %v1091 = vsel %vm488, %v446, 0.0
      %v1092 = vrot.slane %v1091, 4
      %v1093 = vadd.f32 %v1091, %v1092
      %v1094 = vrot.slane %v1093, 2
      %v1095 = vadd.f32 %v1093, %v1094
      %v1096 = vrot.slane %v1095, 1
      %v1097 = vadd.f32 %v1095, %v1096
      %v1098 = vsel %vm488, %v447, 0.0
      %v1099 = vrot.slane %v1098, 4
      %v1100 = vadd.f32 %v1098, %v1099
      %v1101 = vrot.slane %v1100, 2
      %v1102 = vadd.f32 %v1100, %v1101
      %v1103 = vrot.slane %v1102, 1
      %v1104 = vadd.f32 %v1102, %v1103
      %v1105 = vsel %vm488, %v448, 0.0
      %v1106 = vrot.slane %v1105, 4
      %v1107 = vadd.f32 %v1105, %v1106
      %v1108 = vrot.slane %v1107, 2
      %v1109 = vadd.f32 %v1107, %v1108
      %v1110 = vrot.slane %v1109, 1
      %v1111 = vadd.f32 %v1109, %v1110
      %v1112 = vsel %vm488, %v449, 0.0
      %v1113 = vrot.slane %v1112, 4
      %v1114 = vadd.f32 %v1112, %v1113
      %v1115 = vrot.slane %v1114, 2
      %v1116 = vadd.f32 %v1114, %v1115
      %v1117 = vrot.slane %v1116, 1
      %v1118 = vadd.f32 %v1116, %v1117
      %v1119 = vsel %vm488, %v450, 0.0
      %v1120 = vrot.slane %v1119, 4
      %v1121 = vadd.f32 %v1119, %v1120
      %v1122 = vrot.slane %v1121, 2
      %v1123 = vadd.f32 %v1121, %v1122
      %v1124 = vrot.slane %v1123, 1
      %v1125 = vadd.f32 %v1123, %v1124
      %v1126 = vsel %vm488, %v451, 0.0
      %v1127 = vrot.slane %v1126, 4
      %v1128 = vadd.f32 %v1126, %v1127
      %v1129 = vrot.slane %v1128, 2
      %v1130 = vadd.f32 %v1128, %v1129
      %v1131 = vrot.slane %v1130, 1
      %v1132 = vadd.f32 %v1130, %v1131
      %v1133 = vsel %vm488, %v452, 0.0
      %v1134 = vrot.slane %v1133, 4
      %v1135 = vadd.f32 %v1133, %v1134
      %v1136 = vrot.slane %v1135, 2
      %v1137 = vadd.f32 %v1135, %v1136
      %v1138 = vrot.slane %v1137, 1
      %v1139 = vadd.f32 %v1137, %v1138
      %v1140 = vsel %vm488, %v453, 0.0
      %v1141 = vrot.slane %v1140, 4
      %v1142 = vadd.f32 %v1140, %v1141
      %v1143 = vrot.slane %v1142, 2
      %v1144 = vadd.f32 %v1142, %v1143
      %v1145 = vrot.slane %v1144, 1
      %v1146 = vadd.f32 %v1144, %v1145
      %v1147 = vsel %vm488, %v454, 0.0
      %v1148 = vrot.slane %v1147, 4
      %v1149 = vadd.f32 %v1147, %v1148
      %v1150 = vrot.slane %v1149, 2
      %v1151 = vadd.f32 %v1149, %v1150
      %v1152 = vrot.slane %v1151, 1
      %v1153 = vadd.f32 %v1151, %v1152
      %v1154 = vsel %vm488, %v455, 0.0
      %v1155 = vrot.slane %v1154, 4
      %v1156 = vadd.f32 %v1154, %v1155
      %v1157 = vrot.slane %v1156, 2
      %v1158 = vadd.f32 %v1156, %v1157
      %v1159 = vrot.slane %v1158, 1
      %v1160 = vadd.f32 %v1158, %v1159
      %v1161 = vsel %vm488, %v456, 0.0
      %v1162 = vrot.slane %v1161, 4
      %v1163 = vadd.f32 %v1161, %v1162
      %v1164 = vrot.slane %v1163, 2
      %v1165 = vadd.f32 %v1163, %v1164
      %v1166 = vrot.slane %v1165, 1
      %v1167 = vadd.f32 %v1165, %v1166
      %v1168 = vsel %vm488, %v457, 0.0
      %v1169 = vrot.slane %v1168, 4
      %v1170 = vadd.f32 %v1168, %v1169
      %v1171 = vrot.slane %v1170, 2
      %v1172 = vadd.f32 %v1170, %v1171
      %v1173 = vrot.slane %v1172, 1
      %v1174 = vadd.f32 %v1172, %v1173
      %v1175 = vsel %vm488, %v458, 0.0
      %v1176 = vrot.slane %v1175, 4
      %v1177 = vadd.f32 %v1175, %v1176
      %v1178 = vrot.slane %v1177, 2
      %v1179 = vadd.f32 %v1177, %v1178
      %v1180 = vrot.slane %v1179, 1
      %v1181 = vadd.f32 %v1179, %v1180
      %v1182 = vsel %vm488, %v459, 0.0
      %v1183 = vrot.slane %v1182, 4
      %v1184 = vadd.f32 %v1182, %v1183
      %v1185 = vrot.slane %v1184, 2
      %v1186 = vadd.f32 %v1184, %v1185
      %v1187 = vrot.slane %v1186, 1
      %v1188 = vadd.f32 %v1186, %v1187
      %v1189 = vsel %vm488, %v460, 0.0
      %v1190 = vrot.slane %v1189, 4
      %v1191 = vadd.f32 %v1189, %v1190
      %v1192 = vrot.slane %v1191, 2
      %v1193 = vadd.f32 %v1191, %v1192
      %v1194 = vrot.slane %v1193, 1
      %v1195 = vadd.f32 %v1193, %v1194
      %v1196 = vsel %vm488, %v461, 0.0
      %v1197 = vrot.slane %v1196, 4
      %v1198 = vadd.f32 %v1196, %v1197
      %v1199 = vrot.slane %v1198, 2
      %v1200 = vadd.f32 %v1198, %v1199
      %v1201 = vrot.slane %v1200, 1
      %v1202 = vadd.f32 %v1200, %v1201
      %v1203 = vsel %vm488, %v462, 0.0
      %v1204 = vrot.slane %v1203, 4
      %v1205 = vadd.f32 %v1203, %v1204
      %v1206 = vrot.slane %v1205, 2
      %v1207 = vadd.f32 %v1205, %v1206
      %v1208 = vrot.slane %v1207, 1
      %v1209 = vadd.f32 %v1207, %v1208
      %v1210 = vsel %vm488, %v463, 0.0
      %v1211 = vrot.slane %v1210, 4
      %v1212 = vadd.f32 %v1210, %v1211
      %v1213 = vrot.slane %v1212, 2
      %v1214 = vadd.f32 %v1212, %v1213
      %v1215 = vrot.slane %v1214, 1
      %v1216 = vadd.f32 %v1214, %v1215
      %v1217 = vsel %vm488, %v464, 0.0
      %v1218 = vrot.slane %v1217, 4
      %v1219 = vadd.f32 %v1217, %v1218
      %v1220 = vrot.slane %v1219, 2
      %v1221 = vadd.f32 %v1219, %v1220
      %v1222 = vrot.slane %v1221, 1
      %v1223 = vadd.f32 %v1221, %v1222
      %v1224 = vsel %vm488, %v465, 0.0
      %v1225 = vrot.slane %v1224, 4
      %v1226 = vadd.f32 %v1224, %v1225
      %v1227 = vrot.slane %v1226, 2
      %v1228 = vadd.f32 %v1226, %v1227
      %v1229 = vrot.slane %v1228, 1
      %v1230 = vadd.f32 %v1228, %v1229
      %v1231 = vsel %vm488, %v466, 0.0
      %v1232 = vrot.slane %v1231, 4
      %v1233 = vadd.f32 %v1231, %v1232
      %v1234 = vrot.slane %v1233, 2
      %v1235 = vadd.f32 %v1233, %v1234
      %v1236 = vrot.slane %v1235, 1
      %v1237 = vadd.f32 %v1235, %v1236
      %v1238 = vsel %vm488, %v467, 0.0
      %v1239 = vrot.slane %v1238, 4
      %v1240 = vadd.f32 %v1238, %v1239
      %v1241 = vrot.slane %v1240, 2
      %v1242 = vadd.f32 %v1240, %v1241
      %v1243 = vrot.slane %v1242, 1
      %v1244 = vadd.f32 %v1242, %v1243
      %v1245 = vsel %vm488, %v468, 0.0
      %v1246 = vrot.slane %v1245, 4
      %v1247 = vadd.f32 %v1245, %v1246
      %v1248 = vrot.slane %v1247, 2
      %v1249 = vadd.f32 %v1247, %v1248
      %v1250 = vrot.slane %v1249, 1
      %v1251 = vadd.f32 %v1249, %v1250
      %v1252 = vsel %vm488, %v469, 0.0
      %v1253 = vrot.slane %v1252, 4
      %v1254 = vadd.f32 %v1252, %v1253
      %v1255 = vrot.slane %v1254, 2
      %v1256 = vadd.f32 %v1254, %v1255
      %v1257 = vrot.slane %v1256, 1
      %v1258 = vadd.f32 %v1256, %v1257
      %v1259 = vsel %vm488, %v470, 0.0
      %v1260 = vrot.slane %v1259, 4
      %v1261 = vadd.f32 %v1259, %v1260
      %v1262 = vrot.slane %v1261, 2
      %v1263 = vadd.f32 %v1261, %v1262
      %v1264 = vrot.slane %v1263, 1
      %v1265 = vadd.f32 %v1263, %v1264
      %v1266 = vsel %vm488, %v471, 0.0
      %v1267 = vrot.slane %v1266, 4
      %v1268 = vadd.f32 %v1266, %v1267
      %v1269 = vrot.slane %v1268, 2
      %v1270 = vadd.f32 %v1268, %v1269
      %v1271 = vrot.slane %v1270, 1
      %v1272 = vadd.f32 %v1270, %v1271
      %v1273 = vsel %vm488, %v472, 0.0
      %v1274 = vrot.slane %v1273, 4
      %v1275 = vadd.f32 %v1273, %v1274
      %v1276 = vrot.slane %v1275, 2
      %v1277 = vadd.f32 %v1275, %v1276
      %v1278 = vrot.slane %v1277, 1
      %v1279 = vadd.f32 %v1277, %v1278
      %v1280 = vsel %vm488, %v473, 0.0
      %v1281 = vrot.slane %v1280, 4
      %v1282 = vadd.f32 %v1280, %v1281
      %v1283 = vrot.slane %v1282, 2
      %v1284 = vadd.f32 %v1282, %v1283
      %v1285 = vrot.slane %v1284, 1
      %v1286 = vadd.f32 %v1284, %v1285
      %v1287 = vsel %vm488, %v474, 0.0
      %v1288 = vrot.slane %v1287, 4
      %v1289 = vadd.f32 %v1287, %v1288
      %v1290 = vrot.slane %v1289, 2
      %v1291 = vadd.f32 %v1289, %v1290
      %v1292 = vrot.slane %v1291, 1
      %v1293 = vadd.f32 %v1291, %v1292
      %v1294 = vsel %vm488, %v475, 0.0
      %v1295 = vrot.slane %v1294, 4
      %v1296 = vadd.f32 %v1294, %v1295
      %v1297 = vrot.slane %v1296, 2
      %v1298 = vadd.f32 %v1296, %v1297
      %v1299 = vrot.slane %v1298, 1
      %v1300 = vadd.f32 %v1298, %v1299
      %v1301 = vsel %vm488, %v476, 0.0
      %v1302 = vrot.slane %v1301, 4
      %v1303 = vadd.f32 %v1301, %v1302
      %v1304 = vrot.slane %v1303, 2
      %v1305 = vadd.f32 %v1303, %v1304
      %v1306 = vrot.slane %v1305, 1
      %v1307 = vadd.f32 %v1305, %v1306
      %v1308 = vsel %vm488, %v477, 0.0
      %v1309 = vrot.slane %v1308, 4
      %v1310 = vadd.f32 %v1308, %v1309
      %v1311 = vrot.slane %v1310, 2
      %v1312 = vadd.f32 %v1310, %v1311
      %v1313 = vrot.slane %v1312, 1
      %v1314 = vadd.f32 %v1312, %v1313
      %v1315 = vsel %vm488, %v478, 0.0
      %v1316 = vrot.slane %v1315, 4
      %v1317 = vadd.f32 %v1315, %v1316
      %v1318 = vrot.slane %v1317, 2
      %v1319 = vadd.f32 %v1317, %v1318
      %v1320 = vrot.slane %v1319, 1
      %v1321 = vadd.f32 %v1319, %v1320
      %v1322 = vsel %vm488, %v479, 0.0
      %v1323 = vrot.slane %v1322, 4
      %v1324 = vadd.f32 %v1322, %v1323
      %v1325 = vrot.slane %v1324, 2
      %v1326 = vadd.f32 %v1324, %v1325
      %v1327 = vrot.slane %v1326, 1
      %v1328 = vadd.f32 %v1326, %v1327
      %v1329 = vsel %vm488, %v480, 0.0
      %v1330 = vrot.slane %v1329, 4
      %v1331 = vadd.f32 %v1329, %v1330
      %v1332 = vrot.slane %v1331, 2
      %v1333 = vadd.f32 %v1331, %v1332
      %v1334 = vrot.slane %v1333, 1
      %v1335 = vadd.f32 %v1333, %v1334
      %v1336 = vsel %vm488, %v481, 0.0
      %v1337 = vrot.slane %v1336, 4
      %v1338 = vadd.f32 %v1336, %v1337
      %v1339 = vrot.slane %v1338, 2
      %v1340 = vadd.f32 %v1338, %v1339
      %v1341 = vrot.slane %v1340, 1
      %v1342 = vadd.f32 %v1340, %v1341
      %v1343 = vsel %vm488, %v482, 0.0
      %v1344 = vrot.slane %v1343, 4
      %v1345 = vadd.f32 %v1343, %v1344
      %v1346 = vrot.slane %v1345, 2
      %v1347 = vadd.f32 %v1345, %v1346
      %v1348 = vrot.slane %v1347, 1
      %v1349 = vadd.f32 %v1347, %v1348
      %v1350 = vsel %vm488, %v483, 0.0
      %v1351 = vrot.slane %v1350, 4
      %v1352 = vadd.f32 %v1350, %v1351
      %v1353 = vrot.slane %v1352, 2
      %v1354 = vadd.f32 %v1352, %v1353
      %v1355 = vrot.slane %v1354, 1
      %v1356 = vadd.f32 %v1354, %v1355
      %v1357 = vsel %vm488, %v484, 0.0
      %v1358 = vrot.slane %v1357, 4
      %v1359 = vadd.f32 %v1357, %v1358
      %v1360 = vrot.slane %v1359, 2
      %v1361 = vadd.f32 %v1359, %v1360
      %v1362 = vrot.slane %v1361, 1
      %v1363 = vadd.f32 %v1361, %v1362
      %v1364 = vsel %vm488, %v485, 0.0
      %v1365 = vrot.slane %v1364, 4
      %v1366 = vadd.f32 %v1364, %v1365
      %v1367 = vrot.slane %v1366, 2
      %v1368 = vadd.f32 %v1366, %v1367
      %v1369 = vrot.slane %v1368, 1
      %v1370 = vadd.f32 %v1368, %v1369
      %v1371 = vsel %vm488, %v486, 0.0
      %v1372 = vrot.slane %v1371, 4
      %v1373 = vadd.f32 %v1371, %v1372
      %v1374 = vrot.slane %v1373, 2
      %v1375 = vadd.f32 %v1373, %v1374
      %v1376 = vrot.slane %v1375, 1
      %v1377 = vadd.f32 %v1375, %v1376
      %v1378 = vsel %vm488, %v487, 0.0
      %v1379 = vrot.slane %v1378, 4
      %v1380 = vadd.f32 %v1378, %v1379
      %v1381 = vrot.slane %v1380, 2
      %v1382 = vadd.f32 %v1380, %v1381
      %v1383 = vrot.slane %v1382, 1
      %v1384 = vadd.f32 %v1382, %v1383
      %v1385 = vmul.f32 %v360, %v360
      %v1386 = vmul.f32 %v361, %v361
      %v1387 = vmul.f32 %v362, %v362
      %v1388 = vmul.f32 %v363, %v363
      %v1389 = vmul.f32 %v364, %v364
      %v1390 = vmul.f32 %v365, %v365
      %v1391 = vmul.f32 %v366, %v366
      %v1392 = vmul.f32 %v367, %v367
      %v1393 = vmul.f32 %v368, %v368
      %v1394 = vmul.f32 %v369, %v369
      %v1395 = vmul.f32 %v370, %v370
      %v1396 = vmul.f32 %v371, %v371
      %v1397 = vmul.f32 %v372, %v372
      %v1398 = vmul.f32 %v373, %v373
      %v1399 = vmul.f32 %v374, %v374
      %v1400 = vmul.f32 %v375, %v375
      %v1401 = vmul.f32 %v376, %v376
      %v1402 = vmul.f32 %v377, %v377
      %v1403 = vmul.f32 %v378, %v378
      %v1404 = vmul.f32 %v379, %v379
      %v1405 = vmul.f32 %v380, %v380
      %v1406 = vmul.f32 %v381, %v381
      %v1407 = vmul.f32 %v382, %v382
      %v1408 = vmul.f32 %v383, %v383
      %v1409 = vmul.f32 %v384, %v384
      %v1410 = vmul.f32 %v385, %v385
      %v1411 = vmul.f32 %v386, %v386
      %v1412 = vmul.f32 %v387, %v387
      %v1413 = vmul.f32 %v388, %v388
      %v1414 = vmul.f32 %v389, %v389
      %v1415 = vmul.f32 %v390, %v390
      %v1416 = vmul.f32 %v391, %v391
      %v1417 = vmul.f32 %v392, %v392
      %v1418 = vmul.f32 %v393, %v393
      %v1419 = vmul.f32 %v394, %v394
      %v1420 = vmul.f32 %v395, %v395
      %v1421 = vmul.f32 %v396, %v396
      %v1422 = vmul.f32 %v397, %v397
      %v1423 = vmul.f32 %v398, %v398
      %v1424 = vmul.f32 %v399, %v399
      %v1425 = vmul.f32 %v400, %v400
      %v1426 = vmul.f32 %v401, %v401
      %v1427 = vmul.f32 %v402, %v402
      %v1428 = vmul.f32 %v403, %v403
      %v1429 = vmul.f32 %v404, %v404
      %v1430 = vmul.f32 %v405, %v405
      %v1431 = vmul.f32 %v406, %v406
      %v1432 = vmul.f32 %v407, %v407
      %v1433 = vmul.f32 %v408, %v408
      %v1434 = vmul.f32 %v409, %v409
      %v1435 = vmul.f32 %v410, %v410
      %v1436 = vmul.f32 %v411, %v411
      %v1437 = vmul.f32 %v412, %v412
      %v1438 = vmul.f32 %v413, %v413
      %v1439 = vmul.f32 %v414, %v414
      %v1440 = vmul.f32 %v415, %v415
      %v1441 = vmul.f32 %v416, %v416
      %v1442 = vmul.f32 %v417, %v417
      %v1443 = vmul.f32 %v418, %v418
      %v1444 = vmul.f32 %v419, %v419
      %v1445 = vmul.f32 %v420, %v420
      %v1446 = vmul.f32 %v421, %v421
      %v1447 = vmul.f32 %v422, %v422
      %v1448 = vmul.f32 %v423, %v423
      %v1449 = vmul.f32 %v424, %v424
      %v1450 = vmul.f32 %v425, %v425
      %v1451 = vmul.f32 %v426, %v426
      %v1452 = vmul.f32 %v427, %v427
      %v1453 = vmul.f32 %v428, %v428
      %v1454 = vmul.f32 %v429, %v429
      %v1455 = vmul.f32 %v430, %v430
      %v1456 = vmul.f32 %v431, %v431
      %v1457 = vmul.f32 %v432, %v432
      %v1458 = vmul.f32 %v433, %v433
      %v1459 = vmul.f32 %v434, %v434
      %v1460 = vmul.f32 %v435, %v435
      %v1461 = vmul.f32 %v436, %v436
      %v1462 = vmul.f32 %v437, %v437
      %v1463 = vmul.f32 %v438, %v438
      %v1464 = vmul.f32 %v439, %v439
      %v1465 = vmul.f32 %v440, %v440
      %v1466 = vmul.f32 %v441, %v441
      %v1467 = vmul.f32 %v442, %v442
      %v1468 = vmul.f32 %v443, %v443
      %v1469 = vmul.f32 %v444, %v444
      %v1470 = vmul.f32 %v445, %v445
      %v1471 = vmul.f32 %v446, %v446
      %v1472 = vmul.f32 %v447, %v447
      %v1473 = vmul.f32 %v448, %v448
      %v1474 = vmul.f32 %v449, %v449
      %v1475 = vmul.f32 %v450, %v450
      %v1476 = vmul.f32 %v451, %v451
      %v1477 = vmul.f32 %v452, %v452
      %v1478 = vmul.f32 %v453, %v453
      %v1479 = vmul.f32 %v454, %v454
      %v1480 = vmul.f32 %v455, %v455
      %v1481 = vmul.f32 %v456, %v456
      %v1482 = vmul.f32 %v457, %v457
      %v1483 = vmul.f32 %v458, %v458
      %v1484 = vmul.f32 %v459, %v459
      %v1485 = vmul.f32 %v460, %v460
      %v1486 = vmul.f32 %v461, %v461
      %v1487 = vmul.f32 %v462, %v462
      %v1488 = vmul.f32 %v463, %v463
      %v1489 = vmul.f32 %v464, %v464
      %v1490 = vmul.f32 %v465, %v465
      %v1491 = vmul.f32 %v466, %v466
      %v1492 = vmul.f32 %v467, %v467
      %v1493 = vmul.f32 %v468, %v468
      %v1494 = vmul.f32 %v469, %v469
      %v1495 = vmul.f32 %v470, %v470
      %v1496 = vmul.f32 %v471, %v471
      %v1497 = vmul.f32 %v472, %v472
      %v1498 = vmul.f32 %v473, %v473
      %v1499 = vmul.f32 %v474, %v474
      %v1500 = vmul.f32 %v475, %v475
      %v1501 = vmul.f32 %v476, %v476
      %v1502 = vmul.f32 %v477, %v477
      %v1503 = vmul.f32 %v478, %v478
      %v1504 = vmul.f32 %v479, %v479
      %v1505 = vmul.f32 %v480, %v480
      %v1506 = vmul.f32 %v481, %v481
      %v1507 = vmul.f32 %v482, %v482
      %v1508 = vmul.f32 %v483, %v483
      %v1509 = vmul.f32 %v484, %v484
      %v1510 = vmul.f32 %v485, %v485
      %v1511 = vmul.f32 %v486, %v486
      %v1512 = vmul.f32 %v487, %v487
      %v1513 = vsel %vm488, %v1385, 0.0
      %v1514 = vrot.slane %v1513, 4
      %v1515 = vadd.f32 %v1513, %v1514
      %v1516 = vrot.slane %v1515, 2
      %v1517 = vadd.f32 %v1515, %v1516
      %v1518 = vrot.slane %v1517, 1
      %v1519 = vadd.f32 %v1517, %v1518
      %v1520 = vsel %vm488, %v1386, 0.0
      %v1521 = vrot.slane %v1520, 4
      %v1522 = vadd.f32 %v1520, %v1521
      %v1523 = vrot.slane %v1522, 2
      %v1524 = vadd.f32 %v1522, %v1523
      %v1525 = vrot.slane %v1524, 1
      %v1526 = vadd.f32 %v1524, %v1525
      %v1527 = vsel %vm488, %v1387, 0.0
      %v1528 = vrot.slane %v1527, 4
      %v1529 = vadd.f32 %v1527, %v1528
      %v1530 = vrot.slane %v1529, 2
      %v1531 = vadd.f32 %v1529, %v1530
      %v1532 = vrot.slane %v1531, 1
      %v1533 = vadd.f32 %v1531, %v1532
      %v1534 = vsel %vm488, %v1388, 0.0
      %v1535 = vrot.slane %v1534, 4
      %v1536 = vadd.f32 %v1534, %v1535
      %v1537 = vrot.slane %v1536, 2
      %v1538 = vadd.f32 %v1536, %v1537
      %v1539 = vrot.slane %v1538, 1
      %v1540 = vadd.f32 %v1538, %v1539
      %v1541 = vsel %vm488, %v1389, 0.0
      %v1542 = vrot.slane %v1541, 4
      %v1543 = vadd.f32 %v1541, %v1542
      %v1544 = vrot.slane %v1543, 2
      %v1545 = vadd.f32 %v1543, %v1544
      %v1546 = vrot.slane %v1545, 1
      %v1547 = vadd.f32 %v1545, %v1546
      %v1548 = vsel %vm488, %v1390, 0.0
      %v1549 = vrot.slane %v1548, 4
      %v1550 = vadd.f32 %v1548, %v1549
      %v1551 = vrot.slane %v1550, 2
      %v1552 = vadd.f32 %v1550, %v1551
      %v1553 = vrot.slane %v1552, 1
      %v1554 = vadd.f32 %v1552, %v1553
      %v1555 = vsel %vm488, %v1391, 0.0
      %v1556 = vrot.slane %v1555, 4
      %v1557 = vadd.f32 %v1555, %v1556
      %v1558 = vrot.slane %v1557, 2
      %v1559 = vadd.f32 %v1557, %v1558
      %v1560 = vrot.slane %v1559, 1
      %v1561 = vadd.f32 %v1559, %v1560
      %v1562 = vsel %vm488, %v1392, 0.0
      %v1563 = vrot.slane %v1562, 4
      %v1564 = vadd.f32 %v1562, %v1563
      %v1565 = vrot.slane %v1564, 2
      %v1566 = vadd.f32 %v1564, %v1565
      %v1567 = vrot.slane %v1566, 1
      %v1568 = vadd.f32 %v1566, %v1567
      %v1569 = vsel %vm488, %v1393, 0.0
      %v1570 = vrot.slane %v1569, 4
      %v1571 = vadd.f32 %v1569, %v1570
      %v1572 = vrot.slane %v1571, 2
      %v1573 = vadd.f32 %v1571, %v1572
      %v1574 = vrot.slane %v1573, 1
      %v1575 = vadd.f32 %v1573, %v1574
      %v1576 = vsel %vm488, %v1394, 0.0
      %v1577 = vrot.slane %v1576, 4
      %v1578 = vadd.f32 %v1576, %v1577
      %v1579 = vrot.slane %v1578, 2
      %v1580 = vadd.f32 %v1578, %v1579
      %v1581 = vrot.slane %v1580, 1
      %v1582 = vadd.f32 %v1580, %v1581
      %v1583 = vsel %vm488, %v1395, 0.0
      %v1584 = vrot.slane %v1583, 4
      %v1585 = vadd.f32 %v1583, %v1584
      %v1586 = vrot.slane %v1585, 2
      %v1587 = vadd.f32 %v1585, %v1586
      %v1588 = vrot.slane %v1587, 1
      %v1589 = vadd.f32 %v1587, %v1588
      %v1590 = vsel %vm488, %v1396, 0.0
      %v1591 = vrot.slane %v1590, 4
      %v1592 = vadd.f32 %v1590, %v1591
      %v1593 = vrot.slane %v1592, 2
      %v1594 = vadd.f32 %v1592, %v1593
      %v1595 = vrot.slane %v1594, 1
      %v1596 = vadd.f32 %v1594, %v1595
      %v1597 = vsel %vm488, %v1397, 0.0
      %v1598 = vrot.slane %v1597, 4
      %v1599 = vadd.f32 %v1597, %v1598
      %v1600 = vrot.slane %v1599, 2
      %v1601 = vadd.f32 %v1599, %v1600
      %v1602 = vrot.slane %v1601, 1
      %v1603 = vadd.f32 %v1601, %v1602
      %v1604 = vsel %vm488, %v1398, 0.0
      %v1605 = vrot.slane %v1604, 4
      %v1606 = vadd.f32 %v1604, %v1605
      %v1607 = vrot.slane %v1606, 2
      %v1608 = vadd.f32 %v1606, %v1607
      %v1609 = vrot.slane %v1608, 1
      %v1610 = vadd.f32 %v1608, %v1609
      %v1611 = vsel %vm488, %v1399, 0.0
      %v1612 = vrot.slane %v1611, 4
      %v1613 = vadd.f32 %v1611, %v1612
      %v1614 = vrot.slane %v1613, 2
      %v1615 = vadd.f32 %v1613, %v1614
      %v1616 = vrot.slane %v1615, 1
      %v1617 = vadd.f32 %v1615, %v1616
      %v1618 = vsel %vm488, %v1400, 0.0
      %v1619 = vrot.slane %v1618, 4
      %v1620 = vadd.f32 %v1618, %v1619
      %v1621 = vrot.slane %v1620, 2
      %v1622 = vadd.f32 %v1620, %v1621
      %v1623 = vrot.slane %v1622, 1
      %v1624 = vadd.f32 %v1622, %v1623
      %v1625 = vsel %vm488, %v1401, 0.0
      %v1626 = vrot.slane %v1625, 4
      %v1627 = vadd.f32 %v1625, %v1626
      %v1628 = vrot.slane %v1627, 2
      %v1629 = vadd.f32 %v1627, %v1628
      %v1630 = vrot.slane %v1629, 1
      %v1631 = vadd.f32 %v1629, %v1630
      %v1632 = vsel %vm488, %v1402, 0.0
      %v1633 = vrot.slane %v1632, 4
      %v1634 = vadd.f32 %v1632, %v1633
      %v1635 = vrot.slane %v1634, 2
      %v1636 = vadd.f32 %v1634, %v1635
      %v1637 = vrot.slane %v1636, 1
      %v1638 = vadd.f32 %v1636, %v1637
      %v1639 = vsel %vm488, %v1403, 0.0
      %v1640 = vrot.slane %v1639, 4
      %v1641 = vadd.f32 %v1639, %v1640
      %v1642 = vrot.slane %v1641, 2
      %v1643 = vadd.f32 %v1641, %v1642
      %v1644 = vrot.slane %v1643, 1
      %v1645 = vadd.f32 %v1643, %v1644
      %v1646 = vsel %vm488, %v1404, 0.0
      %v1647 = vrot.slane %v1646, 4
      %v1648 = vadd.f32 %v1646, %v1647
      %v1649 = vrot.slane %v1648, 2
      %v1650 = vadd.f32 %v1648, %v1649
      %v1651 = vrot.slane %v1650, 1
      %v1652 = vadd.f32 %v1650, %v1651
      %v1653 = vsel %vm488, %v1405, 0.0
      %v1654 = vrot.slane %v1653, 4
      %v1655 = vadd.f32 %v1653, %v1654
      %v1656 = vrot.slane %v1655, 2
      %v1657 = vadd.f32 %v1655, %v1656
      %v1658 = vrot.slane %v1657, 1
      %v1659 = vadd.f32 %v1657, %v1658
      %v1660 = vsel %vm488, %v1406, 0.0
      %v1661 = vrot.slane %v1660, 4
      %v1662 = vadd.f32 %v1660, %v1661
      %v1663 = vrot.slane %v1662, 2
      %v1664 = vadd.f32 %v1662, %v1663
      %v1665 = vrot.slane %v1664, 1
      %v1666 = vadd.f32 %v1664, %v1665
      %v1667 = vsel %vm488, %v1407, 0.0
      %v1668 = vrot.slane %v1667, 4
      %v1669 = vadd.f32 %v1667, %v1668
      %v1670 = vrot.slane %v1669, 2
      %v1671 = vadd.f32 %v1669, %v1670
      %v1672 = vrot.slane %v1671, 1
      %v1673 = vadd.f32 %v1671, %v1672
      %v1674 = vsel %vm488, %v1408, 0.0
      %v1675 = vrot.slane %v1674, 4
      %v1676 = vadd.f32 %v1674, %v1675
      %v1677 = vrot.slane %v1676, 2
      %v1678 = vadd.f32 %v1676, %v1677
      %v1679 = vrot.slane %v1678, 1
      %v1680 = vadd.f32 %v1678, %v1679
      %v1681 = vsel %vm488, %v1409, 0.0
      %v1682 = vrot.slane %v1681, 4
      %v1683 = vadd.f32 %v1681, %v1682
      %v1684 = vrot.slane %v1683, 2
      %v1685 = vadd.f32 %v1683, %v1684
      %v1686 = vrot.slane %v1685, 1
      %v1687 = vadd.f32 %v1685, %v1686
      %v1688 = vsel %vm488, %v1410, 0.0
      %v1689 = vrot.slane %v1688, 4
      %v1690 = vadd.f32 %v1688, %v1689
      %v1691 = vrot.slane %v1690, 2
      %v1692 = vadd.f32 %v1690, %v1691
      %v1693 = vrot.slane %v1692, 1
      %v1694 = vadd.f32 %v1692, %v1693
      %v1695 = vsel %vm488, %v1411, 0.0
      %v1696 = vrot.slane %v1695, 4
      %v1697 = vadd.f32 %v1695, %v1696
      %v1698 = vrot.slane %v1697, 2
      %v1699 = vadd.f32 %v1697, %v1698
      %v1700 = vrot.slane %v1699, 1
      %v1701 = vadd.f32 %v1699, %v1700
      %v1702 = vsel %vm488, %v1412, 0.0
      %v1703 = vrot.slane %v1702, 4
      %v1704 = vadd.f32 %v1702, %v1703
      %v1705 = vrot.slane %v1704, 2
      %v1706 = vadd.f32 %v1704, %v1705
      %v1707 = vrot.slane %v1706, 1
      %v1708 = vadd.f32 %v1706, %v1707
      %v1709 = vsel %vm488, %v1413, 0.0
      %v1710 = vrot.slane %v1709, 4
      %v1711 = vadd.f32 %v1709, %v1710
      %v1712 = vrot.slane %v1711, 2
      %v1713 = vadd.f32 %v1711, %v1712
      %v1714 = vrot.slane %v1713, 1
      %v1715 = vadd.f32 %v1713, %v1714
      %v1716 = vsel %vm488, %v1414, 0.0
      %v1717 = vrot.slane %v1716, 4
      %v1718 = vadd.f32 %v1716, %v1717
      %v1719 = vrot.slane %v1718, 2
      %v1720 = vadd.f32 %v1718, %v1719
      %v1721 = vrot.slane %v1720, 1
      %v1722 = vadd.f32 %v1720, %v1721
      %v1723 = vsel %vm488, %v1415, 0.0
      %v1724 = vrot.slane %v1723, 4
      %v1725 = vadd.f32 %v1723, %v1724
      %v1726 = vrot.slane %v1725, 2
      %v1727 = vadd.f32 %v1725, %v1726
      %v1728 = vrot.slane %v1727, 1
      %v1729 = vadd.f32 %v1727, %v1728
      %v1730 = vsel %vm488, %v1416, 0.0
      %v1731 = vrot.slane %v1730, 4
      %v1732 = vadd.f32 %v1730, %v1731
      %v1733 = vrot.slane %v1732, 2
      %v1734 = vadd.f32 %v1732, %v1733
      %v1735 = vrot.slane %v1734, 1
      %v1736 = vadd.f32 %v1734, %v1735
      %v1737 = vsel %vm488, %v1417, 0.0
      %v1738 = vrot.slane %v1737, 4
      %v1739 = vadd.f32 %v1737, %v1738
      %v1740 = vrot.slane %v1739, 2
      %v1741 = vadd.f32 %v1739, %v1740
      %v1742 = vrot.slane %v1741, 1
      %v1743 = vadd.f32 %v1741, %v1742
      %v1744 = vsel %vm488, %v1418, 0.0
      %v1745 = vrot.slane %v1744, 4
      %v1746 = vadd.f32 %v1744, %v1745
      %v1747 = vrot.slane %v1746, 2
      %v1748 = vadd.f32 %v1746, %v1747
      %v1749 = vrot.slane %v1748, 1
      %v1750 = vadd.f32 %v1748, %v1749
      %v1751 = vsel %vm488, %v1419, 0.0
      %v1752 = vrot.slane %v1751, 4
      %v1753 = vadd.f32 %v1751, %v1752
      %v1754 = vrot.slane %v1753, 2
      %v1755 = vadd.f32 %v1753, %v1754
      %v1756 = vrot.slane %v1755, 1
      %v1757 = vadd.f32 %v1755, %v1756
      %v1758 = vsel %vm488, %v1420, 0.0
      %v1759 = vrot.slane %v1758, 4
      %v1760 = vadd.f32 %v1758, %v1759
      %v1761 = vrot.slane %v1760, 2
      %v1762 = vadd.f32 %v1760, %v1761
      %v1763 = vrot.slane %v1762, 1
      %v1764 = vadd.f32 %v1762, %v1763
      %v1765 = vsel %vm488, %v1421, 0.0
      %v1766 = vrot.slane %v1765, 4
      %v1767 = vadd.f32 %v1765, %v1766
      %v1768 = vrot.slane %v1767, 2
      %v1769 = vadd.f32 %v1767, %v1768
      %v1770 = vrot.slane %v1769, 1
      %v1771 = vadd.f32 %v1769, %v1770
      %v1772 = vsel %vm488, %v1422, 0.0
      %v1773 = vrot.slane %v1772, 4
      %v1774 = vadd.f32 %v1772, %v1773
      %v1775 = vrot.slane %v1774, 2
      %v1776 = vadd.f32 %v1774, %v1775
      %v1777 = vrot.slane %v1776, 1
      %v1778 = vadd.f32 %v1776, %v1777
      %v1779 = vsel %vm488, %v1423, 0.0
      %v1780 = vrot.slane %v1779, 4
      %v1781 = vadd.f32 %v1779, %v1780
      %v1782 = vrot.slane %v1781, 2
      %v1783 = vadd.f32 %v1781, %v1782
      %v1784 = vrot.slane %v1783, 1
      %v1785 = vadd.f32 %v1783, %v1784
      %v1786 = vsel %vm488, %v1424, 0.0
      %v1787 = vrot.slane %v1786, 4
      %v1788 = vadd.f32 %v1786, %v1787
      %v1789 = vrot.slane %v1788, 2
      %v1790 = vadd.f32 %v1788, %v1789
      %v1791 = vrot.slane %v1790, 1
      %v1792 = vadd.f32 %v1790, %v1791
      %v1793 = vsel %vm488, %v1425, 0.0
      %v1794 = vrot.slane %v1793, 4
      %v1795 = vadd.f32 %v1793, %v1794
      %v1796 = vrot.slane %v1795, 2
      %v1797 = vadd.f32 %v1795, %v1796
      %v1798 = vrot.slane %v1797, 1
      %v1799 = vadd.f32 %v1797, %v1798
      %v1800 = vsel %vm488, %v1426, 0.0
      %v1801 = vrot.slane %v1800, 4
      %v1802 = vadd.f32 %v1800, %v1801
      %v1803 = vrot.slane %v1802, 2
      %v1804 = vadd.f32 %v1802, %v1803
      %v1805 = vrot.slane %v1804, 1
      %v1806 = vadd.f32 %v1804, %v1805
      %v1807 = vsel %vm488, %v1427, 0.0
      %v1808 = vrot.slane %v1807, 4
      %v1809 = vadd.f32 %v1807, %v1808
      %v1810 = vrot.slane %v1809, 2
      %v1811 = vadd.f32 %v1809, %v1810
      %v1812 = vrot.slane %v1811, 1
      %v1813 = vadd.f32 %v1811, %v1812
      %v1814 = vsel %vm488, %v1428, 0.0
      %v1815 = vrot.slane %v1814, 4
      %v1816 = vadd.f32 %v1814, %v1815
      %v1817 = vrot.slane %v1816, 2
      %v1818 = vadd.f32 %v1816, %v1817
      %v1819 = vrot.slane %v1818, 1
      %v1820 = vadd.f32 %v1818, %v1819
      %v1821 = vsel %vm488, %v1429, 0.0
      %v1822 = vrot.slane %v1821, 4
      %v1823 = vadd.f32 %v1821, %v1822
      %v1824 = vrot.slane %v1823, 2
      %v1825 = vadd.f32 %v1823, %v1824
      %v1826 = vrot.slane %v1825, 1
      %v1827 = vadd.f32 %v1825, %v1826
      %v1828 = vsel %vm488, %v1430, 0.0
      %v1829 = vrot.slane %v1828, 4
      %v1830 = vadd.f32 %v1828, %v1829
      %v1831 = vrot.slane %v1830, 2
      %v1832 = vadd.f32 %v1830, %v1831
      %v1833 = vrot.slane %v1832, 1
      %v1834 = vadd.f32 %v1832, %v1833
      %v1835 = vsel %vm488, %v1431, 0.0
      %v1836 = vrot.slane %v1835, 4
      %v1837 = vadd.f32 %v1835, %v1836
      %v1838 = vrot.slane %v1837, 2
      %v1839 = vadd.f32 %v1837, %v1838
      %v1840 = vrot.slane %v1839, 1
      %v1841 = vadd.f32 %v1839, %v1840
      %v1842 = vsel %vm488, %v1432, 0.0
      %v1843 = vrot.slane %v1842, 4
      %v1844 = vadd.f32 %v1842, %v1843
      %v1845 = vrot.slane %v1844, 2
      %v1846 = vadd.f32 %v1844, %v1845
      %v1847 = vrot.slane %v1846, 1
      %v1848 = vadd.f32 %v1846, %v1847
      %v1849 = vsel %vm488, %v1433, 0.0
      %v1850 = vrot.slane %v1849, 4
      %v1851 = vadd.f32 %v1849, %v1850
      %v1852 = vrot.slane %v1851, 2
      %v1853 = vadd.f32 %v1851, %v1852
      %v1854 = vrot.slane %v1853, 1
      %v1855 = vadd.f32 %v1853, %v1854
      %v1856 = vsel %vm488, %v1434, 0.0
      %v1857 = vrot.slane %v1856, 4
      %v1858 = vadd.f32 %v1856, %v1857
      %v1859 = vrot.slane %v1858, 2
      %v1860 = vadd.f32 %v1858, %v1859
      %v1861 = vrot.slane %v1860, 1
      %v1862 = vadd.f32 %v1860, %v1861
      %v1863 = vsel %vm488, %v1435, 0.0
      %v1864 = vrot.slane %v1863, 4
      %v1865 = vadd.f32 %v1863, %v1864
      %v1866 = vrot.slane %v1865, 2
      %v1867 = vadd.f32 %v1865, %v1866
      %v1868 = vrot.slane %v1867, 1
      %v1869 = vadd.f32 %v1867, %v1868
      %v1870 = vsel %vm488, %v1436, 0.0
      %v1871 = vrot.slane %v1870, 4
      %v1872 = vadd.f32 %v1870, %v1871
      %v1873 = vrot.slane %v1872, 2
      %v1874 = vadd.f32 %v1872, %v1873
      %v1875 = vrot.slane %v1874, 1
      %v1876 = vadd.f32 %v1874, %v1875
      %v1877 = vsel %vm488, %v1437, 0.0
      %v1878 = vrot.slane %v1877, 4
      %v1879 = vadd.f32 %v1877, %v1878
      %v1880 = vrot.slane %v1879, 2
      %v1881 = vadd.f32 %v1879, %v1880
      %v1882 = vrot.slane %v1881, 1
      %v1883 = vadd.f32 %v1881, %v1882
      %v1884 = vsel %vm488, %v1438, 0.0
      %v1885 = vrot.slane %v1884, 4
      %v1886 = vadd.f32 %v1884, %v1885
      %v1887 = vrot.slane %v1886, 2
      %v1888 = vadd.f32 %v1886, %v1887
      %v1889 = vrot.slane %v1888, 1
      %v1890 = vadd.f32 %v1888, %v1889
      %v1891 = vsel %vm488, %v1439, 0.0
      %v1892 = vrot.slane %v1891, 4
      %v1893 = vadd.f32 %v1891, %v1892
      %v1894 = vrot.slane %v1893, 2
      %v1895 = vadd.f32 %v1893, %v1894
      %v1896 = vrot.slane %v1895, 1
      %v1897 = vadd.f32 %v1895, %v1896
      %v1898 = vsel %vm488, %v1440, 0.0
      %v1899 = vrot.slane %v1898, 4
      %v1900 = vadd.f32 %v1898, %v1899
      %v1901 = vrot.slane %v1900, 2
      %v1902 = vadd.f32 %v1900, %v1901
      %v1903 = vrot.slane %v1902, 1
      %v1904 = vadd.f32 %v1902, %v1903
      %v1905 = vsel %vm488, %v1441, 0.0
      %v1906 = vrot.slane %v1905, 4
      %v1907 = vadd.f32 %v1905, %v1906
      %v1908 = vrot.slane %v1907, 2
      %v1909 = vadd.f32 %v1907, %v1908
      %v1910 = vrot.slane %v1909, 1
      %v1911 = vadd.f32 %v1909, %v1910
      %v1912 = vsel %vm488, %v1442, 0.0
      %v1913 = vrot.slane %v1912, 4
      %v1914 = vadd.f32 %v1912, %v1913
      %v1915 = vrot.slane %v1914, 2
      %v1916 = vadd.f32 %v1914, %v1915
      %v1917 = vrot.slane %v1916, 1
      %v1918 = vadd.f32 %v1916, %v1917
      %v1919 = vsel %vm488, %v1443, 0.0
      %v1920 = vrot.slane %v1919, 4
      %v1921 = vadd.f32 %v1919, %v1920
      %v1922 = vrot.slane %v1921, 2
      %v1923 = vadd.f32 %v1921, %v1922
      %v1924 = vrot.slane %v1923, 1
      %v1925 = vadd.f32 %v1923, %v1924
      %v1926 = vsel %vm488, %v1444, 0.0
      %v1927 = vrot.slane %v1926, 4
      %v1928 = vadd.f32 %v1926, %v1927
      %v1929 = vrot.slane %v1928, 2
      %v1930 = vadd.f32 %v1928, %v1929
      %v1931 = vrot.slane %v1930, 1
      %v1932 = vadd.f32 %v1930, %v1931
      %v1933 = vsel %vm488, %v1445, 0.0
      %v1934 = vrot.slane %v1933, 4
      %v1935 = vadd.f32 %v1933, %v1934
      %v1936 = vrot.slane %v1935, 2
      %v1937 = vadd.f32 %v1935, %v1936
      %v1938 = vrot.slane %v1937, 1
      %v1939 = vadd.f32 %v1937, %v1938
      %v1940 = vsel %vm488, %v1446, 0.0
      %v1941 = vrot.slane %v1940, 4
      %v1942 = vadd.f32 %v1940, %v1941
      %v1943 = vrot.slane %v1942, 2
      %v1944 = vadd.f32 %v1942, %v1943
      %v1945 = vrot.slane %v1944, 1
      %v1946 = vadd.f32 %v1944, %v1945
      %v1947 = vsel %vm488, %v1447, 0.0
      %v1948 = vrot.slane %v1947, 4
      %v1949 = vadd.f32 %v1947, %v1948
      %v1950 = vrot.slane %v1949, 2
      %v1951 = vadd.f32 %v1949, %v1950
      %v1952 = vrot.slane %v1951, 1
      %v1953 = vadd.f32 %v1951, %v1952
      %v1954 = vsel %vm488, %v1448, 0.0
      %v1955 = vrot.slane %v1954, 4
      %v1956 = vadd.f32 %v1954, %v1955
      %v1957 = vrot.slane %v1956, 2
      %v1958 = vadd.f32 %v1956, %v1957
      %v1959 = vrot.slane %v1958, 1
      %v1960 = vadd.f32 %v1958, %v1959
      %v1961 = vsel %vm488, %v1449, 0.0
      %v1962 = vrot.slane %v1961, 4
      %v1963 = vadd.f32 %v1961, %v1962
      %v1964 = vrot.slane %v1963, 2
      %v1965 = vadd.f32 %v1963, %v1964
      %v1966 = vrot.slane %v1965, 1
      %v1967 = vadd.f32 %v1965, %v1966
      %v1968 = vsel %vm488, %v1450, 0.0
      %v1969 = vrot.slane %v1968, 4
      %v1970 = vadd.f32 %v1968, %v1969
      %v1971 = vrot.slane %v1970, 2
      %v1972 = vadd.f32 %v1970, %v1971
      %v1973 = vrot.slane %v1972, 1
      %v1974 = vadd.f32 %v1972, %v1973
      %v1975 = vsel %vm488, %v1451, 0.0
      %v1976 = vrot.slane %v1975, 4
      %v1977 = vadd.f32 %v1975, %v1976
      %v1978 = vrot.slane %v1977, 2
      %v1979 = vadd.f32 %v1977, %v1978
      %v1980 = vrot.slane %v1979, 1
      %v1981 = vadd.f32 %v1979, %v1980
      %v1982 = vsel %vm488, %v1452, 0.0
      %v1983 = vrot.slane %v1982, 4
      %v1984 = vadd.f32 %v1982, %v1983
      %v1985 = vrot.slane %v1984, 2
      %v1986 = vadd.f32 %v1984, %v1985
      %v1987 = vrot.slane %v1986, 1
      %v1988 = vadd.f32 %v1986, %v1987
      %v1989 = vsel %vm488, %v1453, 0.0
      %v1990 = vrot.slane %v1989, 4
      %v1991 = vadd.f32 %v1989, %v1990
      %v1992 = vrot.slane %v1991, 2
      %v1993 = vadd.f32 %v1991, %v1992
      %v1994 = vrot.slane %v1993, 1
      %v1995 = vadd.f32 %v1993, %v1994
      %v1996 = vsel %vm488, %v1454, 0.0
      %v1997 = vrot.slane %v1996, 4
      %v1998 = vadd.f32 %v1996, %v1997
      %v1999 = vrot.slane %v1998, 2
      %v2000 = vadd.f32 %v1998, %v1999
      %v2001 = vrot.slane %v2000, 1
      %v2002 = vadd.f32 %v2000, %v2001
      %v2003 = vsel %vm488, %v1455, 0.0
      %v2004 = vrot.slane %v2003, 4
      %v2005 = vadd.f32 %v2003, %v2004
      %v2006 = vrot.slane %v2005, 2
      %v2007 = vadd.f32 %v2005, %v2006
      %v2008 = vrot.slane %v2007, 1
      %v2009 = vadd.f32 %v2007, %v2008
      %v2010 = vsel %vm488, %v1456, 0.0
      %v2011 = vrot.slane %v2010, 4
      %v2012 = vadd.f32 %v2010, %v2011
      %v2013 = vrot.slane %v2012, 2
      %v2014 = vadd.f32 %v2012, %v2013
      %v2015 = vrot.slane %v2014, 1
      %v2016 = vadd.f32 %v2014, %v2015
      %v2017 = vsel %vm488, %v1457, 0.0
      %v2018 = vrot.slane %v2017, 4
      %v2019 = vadd.f32 %v2017, %v2018
      %v2020 = vrot.slane %v2019, 2
      %v2021 = vadd.f32 %v2019, %v2020
      %v2022 = vrot.slane %v2021, 1
      %v2023 = vadd.f32 %v2021, %v2022
      %v2024 = vsel %vm488, %v1458, 0.0
      %v2025 = vrot.slane %v2024, 4
      %v2026 = vadd.f32 %v2024, %v2025
      %v2027 = vrot.slane %v2026, 2
      %v2028 = vadd.f32 %v2026, %v2027
      %v2029 = vrot.slane %v2028, 1
      %v2030 = vadd.f32 %v2028, %v2029
      %v2031 = vsel %vm488, %v1459, 0.0
      %v2032 = vrot.slane %v2031, 4
      %v2033 = vadd.f32 %v2031, %v2032
      %v2034 = vrot.slane %v2033, 2
      %v2035 = vadd.f32 %v2033, %v2034
      %v2036 = vrot.slane %v2035, 1
      %v2037 = vadd.f32 %v2035, %v2036
      %v2038 = vsel %vm488, %v1460, 0.0
      %v2039 = vrot.slane %v2038, 4
      %v2040 = vadd.f32 %v2038, %v2039
      %v2041 = vrot.slane %v2040, 2
      %v2042 = vadd.f32 %v2040, %v2041
      %v2043 = vrot.slane %v2042, 1
      %v2044 = vadd.f32 %v2042, %v2043
      %v2045 = vsel %vm488, %v1461, 0.0
      %v2046 = vrot.slane %v2045, 4
      %v2047 = vadd.f32 %v2045, %v2046
      %v2048 = vrot.slane %v2047, 2
      %v2049 = vadd.f32 %v2047, %v2048
      %v2050 = vrot.slane %v2049, 1
      %v2051 = vadd.f32 %v2049, %v2050
      %v2052 = vsel %vm488, %v1462, 0.0
      %v2053 = vrot.slane %v2052, 4
      %v2054 = vadd.f32 %v2052, %v2053
      %v2055 = vrot.slane %v2054, 2
      %v2056 = vadd.f32 %v2054, %v2055
      %v2057 = vrot.slane %v2056, 1
      %v2058 = vadd.f32 %v2056, %v2057
      %v2059 = vsel %vm488, %v1463, 0.0
      %v2060 = vrot.slane %v2059, 4
      %v2061 = vadd.f32 %v2059, %v2060
      %v2062 = vrot.slane %v2061, 2
      %v2063 = vadd.f32 %v2061, %v2062
      %v2064 = vrot.slane %v2063, 1
      %v2065 = vadd.f32 %v2063, %v2064
      %v2066 = vsel %vm488, %v1464, 0.0
      %v2067 = vrot.slane %v2066, 4
      %v2068 = vadd.f32 %v2066, %v2067
      %v2069 = vrot.slane %v2068, 2
      %v2070 = vadd.f32 %v2068, %v2069
      %v2071 = vrot.slane %v2070, 1
      %v2072 = vadd.f32 %v2070, %v2071
      %v2073 = vsel %vm488, %v1465, 0.0
      %v2074 = vrot.slane %v2073, 4
      %v2075 = vadd.f32 %v2073, %v2074
      %v2076 = vrot.slane %v2075, 2
      %v2077 = vadd.f32 %v2075, %v2076
      %v2078 = vrot.slane %v2077, 1
      %v2079 = vadd.f32 %v2077, %v2078
      %v2080 = vsel %vm488, %v1466, 0.0
      %v2081 = vrot.slane %v2080, 4
      %v2082 = vadd.f32 %v2080, %v2081
      %v2083 = vrot.slane %v2082, 2
      %v2084 = vadd.f32 %v2082, %v2083
      %v2085 = vrot.slane %v2084, 1
      %v2086 = vadd.f32 %v2084, %v2085
      %v2087 = vsel %vm488, %v1467, 0.0
      %v2088 = vrot.slane %v2087, 4
      %v2089 = vadd.f32 %v2087, %v2088
      %v2090 = vrot.slane %v2089, 2
      %v2091 = vadd.f32 %v2089, %v2090
      %v2092 = vrot.slane %v2091, 1
      %v2093 = vadd.f32 %v2091, %v2092
      %v2094 = vsel %vm488, %v1468, 0.0
      %v2095 = vrot.slane %v2094, 4
      %v2096 = vadd.f32 %v2094, %v2095
      %v2097 = vrot.slane %v2096, 2
      %v2098 = vadd.f32 %v2096, %v2097
      %v2099 = vrot.slane %v2098, 1
      %v2100 = vadd.f32 %v2098, %v2099
      %v2101 = vsel %vm488, %v1469, 0.0
      %v2102 = vrot.slane %v2101, 4
      %v2103 = vadd.f32 %v2101, %v2102
      %v2104 = vrot.slane %v2103, 2
      %v2105 = vadd.f32 %v2103, %v2104
      %v2106 = vrot.slane %v2105, 1
      %v2107 = vadd.f32 %v2105, %v2106
      %v2108 = vsel %vm488, %v1470, 0.0
      %v2109 = vrot.slane %v2108, 4
      %v2110 = vadd.f32 %v2108, %v2109
      %v2111 = vrot.slane %v2110, 2
      %v2112 = vadd.f32 %v2110, %v2111
      %v2113 = vrot.slane %v2112, 1
      %v2114 = vadd.f32 %v2112, %v2113
      %v2115 = vsel %vm488, %v1471, 0.0
      %v2116 = vrot.slane %v2115, 4
      %v2117 = vadd.f32 %v2115, %v2116
      %v2118 = vrot.slane %v2117, 2
      %v2119 = vadd.f32 %v2117, %v2118
      %v2120 = vrot.slane %v2119, 1
      %v2121 = vadd.f32 %v2119, %v2120
      %v2122 = vsel %vm488, %v1472, 0.0
      %v2123 = vrot.slane %v2122, 4
      %v2124 = vadd.f32 %v2122, %v2123
      %v2125 = vrot.slane %v2124, 2
      %v2126 = vadd.f32 %v2124, %v2125
      %v2127 = vrot.slane %v2126, 1
      %v2128 = vadd.f32 %v2126, %v2127
      %v2129 = vsel %vm488, %v1473, 0.0
      %v2130 = vrot.slane %v2129, 4
      %v2131 = vadd.f32 %v2129, %v2130
      %v2132 = vrot.slane %v2131, 2
      %v2133 = vadd.f32 %v2131, %v2132
      %v2134 = vrot.slane %v2133, 1
      %v2135 = vadd.f32 %v2133, %v2134
      %v2136 = vsel %vm488, %v1474, 0.0
      %v2137 = vrot.slane %v2136, 4
      %v2138 = vadd.f32 %v2136, %v2137
      %v2139 = vrot.slane %v2138, 2
      %v2140 = vadd.f32 %v2138, %v2139
      %v2141 = vrot.slane %v2140, 1
      %v2142 = vadd.f32 %v2140, %v2141
      %v2143 = vsel %vm488, %v1475, 0.0
      %v2144 = vrot.slane %v2143, 4
      %v2145 = vadd.f32 %v2143, %v2144
      %v2146 = vrot.slane %v2145, 2
      %v2147 = vadd.f32 %v2145, %v2146
      %v2148 = vrot.slane %v2147, 1
      %v2149 = vadd.f32 %v2147, %v2148
      %v2150 = vsel %vm488, %v1476, 0.0
      %v2151 = vrot.slane %v2150, 4
      %v2152 = vadd.f32 %v2150, %v2151
      %v2153 = vrot.slane %v2152, 2
      %v2154 = vadd.f32 %v2152, %v2153
      %v2155 = vrot.slane %v2154, 1
      %v2156 = vadd.f32 %v2154, %v2155
      %v2157 = vsel %vm488, %v1477, 0.0
      %v2158 = vrot.slane %v2157, 4
      %v2159 = vadd.f32 %v2157, %v2158
      %v2160 = vrot.slane %v2159, 2
      %v2161 = vadd.f32 %v2159, %v2160
      %v2162 = vrot.slane %v2161, 1
      %v2163 = vadd.f32 %v2161, %v2162
      %v2164 = vsel %vm488, %v1478, 0.0
      %v2165 = vrot.slane %v2164, 4
      %v2166 = vadd.f32 %v2164, %v2165
      %v2167 = vrot.slane %v2166, 2
      %v2168 = vadd.f32 %v2166, %v2167
      %v2169 = vrot.slane %v2168, 1
      %v2170 = vadd.f32 %v2168, %v2169
      %v2171 = vsel %vm488, %v1479, 0.0
      %v2172 = vrot.slane %v2171, 4
      %v2173 = vadd.f32 %v2171, %v2172
      %v2174 = vrot.slane %v2173, 2
      %v2175 = vadd.f32 %v2173, %v2174
      %v2176 = vrot.slane %v2175, 1
      %v2177 = vadd.f32 %v2175, %v2176
      %v2178 = vsel %vm488, %v1480, 0.0
      %v2179 = vrot.slane %v2178, 4
      %v2180 = vadd.f32 %v2178, %v2179
      %v2181 = vrot.slane %v2180, 2
      %v2182 = vadd.f32 %v2180, %v2181
      %v2183 = vrot.slane %v2182, 1
      %v2184 = vadd.f32 %v2182, %v2183
      %v2185 = vsel %vm488, %v1481, 0.0
      %v2186 = vrot.slane %v2185, 4
      %v2187 = vadd.f32 %v2185, %v2186
      %v2188 = vrot.slane %v2187, 2
      %v2189 = vadd.f32 %v2187, %v2188
      %v2190 = vrot.slane %v2189, 1
      %v2191 = vadd.f32 %v2189, %v2190
      %v2192 = vsel %vm488, %v1482, 0.0
      %v2193 = vrot.slane %v2192, 4
      %v2194 = vadd.f32 %v2192, %v2193
      %v2195 = vrot.slane %v2194, 2
      %v2196 = vadd.f32 %v2194, %v2195
      %v2197 = vrot.slane %v2196, 1
      %v2198 = vadd.f32 %v2196, %v2197
      %v2199 = vsel %vm488, %v1483, 0.0
      %v2200 = vrot.slane %v2199, 4
      %v2201 = vadd.f32 %v2199, %v2200
      %v2202 = vrot.slane %v2201, 2
      %v2203 = vadd.f32 %v2201, %v2202
      %v2204 = vrot.slane %v2203, 1
      %v2205 = vadd.f32 %v2203, %v2204
      %v2206 = vsel %vm488, %v1484, 0.0
      %v2207 = vrot.slane %v2206, 4
      %v2208 = vadd.f32 %v2206, %v2207
      %v2209 = vrot.slane %v2208, 2
      %v2210 = vadd.f32 %v2208, %v2209
      %v2211 = vrot.slane %v2210, 1
      %v2212 = vadd.f32 %v2210, %v2211
      %v2213 = vsel %vm488, %v1485, 0.0
      %v2214 = vrot.slane %v2213, 4
      %v2215 = vadd.f32 %v2213, %v2214
      %v2216 = vrot.slane %v2215, 2
      %v2217 = vadd.f32 %v2215, %v2216
      %v2218 = vrot.slane %v2217, 1
      %v2219 = vadd.f32 %v2217, %v2218
      %v2220 = vsel %vm488, %v1486, 0.0
      %v2221 = vrot.slane %v2220, 4
      %v2222 = vadd.f32 %v2220, %v2221
      %v2223 = vrot.slane %v2222, 2
      %v2224 = vadd.f32 %v2222, %v2223
      %v2225 = vrot.slane %v2224, 1
      %v2226 = vadd.f32 %v2224, %v2225
      %v2227 = vsel %vm488, %v1487, 0.0
      %v2228 = vrot.slane %v2227, 4
      %v2229 = vadd.f32 %v2227, %v2228
      %v2230 = vrot.slane %v2229, 2
      %v2231 = vadd.f32 %v2229, %v2230
      %v2232 = vrot.slane %v2231, 1
      %v2233 = vadd.f32 %v2231, %v2232
      %v2234 = vsel %vm488, %v1488, 0.0
      %v2235 = vrot.slane %v2234, 4
      %v2236 = vadd.f32 %v2234, %v2235
      %v2237 = vrot.slane %v2236, 2
      %v2238 = vadd.f32 %v2236, %v2237
      %v2239 = vrot.slane %v2238, 1
      %v2240 = vadd.f32 %v2238, %v2239
      %v2241 = vsel %vm488, %v1489, 0.0
      %v2242 = vrot.slane %v2241, 4
      %v2243 = vadd.f32 %v2241, %v2242
      %v2244 = vrot.slane %v2243, 2
      %v2245 = vadd.f32 %v2243, %v2244
      %v2246 = vrot.slane %v2245, 1
      %v2247 = vadd.f32 %v2245, %v2246
      %v2248 = vsel %vm488, %v1490, 0.0
      %v2249 = vrot.slane %v2248, 4
      %v2250 = vadd.f32 %v2248, %v2249
      %v2251 = vrot.slane %v2250, 2
      %v2252 = vadd.f32 %v2250, %v2251
      %v2253 = vrot.slane %v2252, 1
      %v2254 = vadd.f32 %v2252, %v2253
      %v2255 = vsel %vm488, %v1491, 0.0
      %v2256 = vrot.slane %v2255, 4
      %v2257 = vadd.f32 %v2255, %v2256
      %v2258 = vrot.slane %v2257, 2
      %v2259 = vadd.f32 %v2257, %v2258
      %v2260 = vrot.slane %v2259, 1
      %v2261 = vadd.f32 %v2259, %v2260
      %v2262 = vsel %vm488, %v1492, 0.0
      %v2263 = vrot.slane %v2262, 4
      %v2264 = vadd.f32 %v2262, %v2263
      %v2265 = vrot.slane %v2264, 2
      %v2266 = vadd.f32 %v2264, %v2265
      %v2267 = vrot.slane %v2266, 1
      %v2268 = vadd.f32 %v2266, %v2267
      %v2269 = vsel %vm488, %v1493, 0.0
      %v2270 = vrot.slane %v2269, 4
      %v2271 = vadd.f32 %v2269, %v2270
      %v2272 = vrot.slane %v2271, 2
      %v2273 = vadd.f32 %v2271, %v2272
      %v2274 = vrot.slane %v2273, 1
      %v2275 = vadd.f32 %v2273, %v2274
      %v2276 = vsel %vm488, %v1494, 0.0
      %v2277 = vrot.slane %v2276, 4
      %v2278 = vadd.f32 %v2276, %v2277
      %v2279 = vrot.slane %v2278, 2
      %v2280 = vadd.f32 %v2278, %v2279
      %v2281 = vrot.slane %v2280, 1
      %v2282 = vadd.f32 %v2280, %v2281
      %v2283 = vsel %vm488, %v1495, 0.0
      %v2284 = vrot.slane %v2283, 4
      %v2285 = vadd.f32 %v2283, %v2284
      %v2286 = vrot.slane %v2285, 2
      %v2287 = vadd.f32 %v2285, %v2286
      %v2288 = vrot.slane %v2287, 1
      %v2289 = vadd.f32 %v2287, %v2288
      %v2290 = vsel %vm488, %v1496, 0.0
      %v2291 = vrot.slane %v2290, 4
      %v2292 = vadd.f32 %v2290, %v2291
      %v2293 = vrot.slane %v2292, 2
      %v2294 = vadd.f32 %v2292, %v2293
      %v2295 = vrot.slane %v2294, 1
      %v2296 = vadd.f32 %v2294, %v2295
      %v2297 = vsel %vm488, %v1497, 0.0
      %v2298 = vrot.slane %v2297, 4
      %v2299 = vadd.f32 %v2297, %v2298
      %v2300 = vrot.slane %v2299, 2
      %v2301 = vadd.f32 %v2299, %v2300
      %v2302 = vrot.slane %v2301, 1
      %v2303 = vadd.f32 %v2301, %v2302
      %v2304 = vsel %vm488, %v1498, 0.0
      %v2305 = vrot.slane %v2304, 4
      %v2306 = vadd.f32 %v2304, %v2305
      %v2307 = vrot.slane %v2306, 2
      %v2308 = vadd.f32 %v2306, %v2307
      %v2309 = vrot.slane %v2308, 1
      %v2310 = vadd.f32 %v2308, %v2309
      %v2311 = vsel %vm488, %v1499, 0.0
      %v2312 = vrot.slane %v2311, 4
      %v2313 = vadd.f32 %v2311, %v2312
      %v2314 = vrot.slane %v2313, 2
      %v2315 = vadd.f32 %v2313, %v2314
      %v2316 = vrot.slane %v2315, 1
      %v2317 = vadd.f32 %v2315, %v2316
      %v2318 = vsel %vm488, %v1500, 0.0
      %v2319 = vrot.slane %v2318, 4
      %v2320 = vadd.f32 %v2318, %v2319
      %v2321 = vrot.slane %v2320, 2
      %v2322 = vadd.f32 %v2320, %v2321
      %v2323 = vrot.slane %v2322, 1
      %v2324 = vadd.f32 %v2322, %v2323
      %v2325 = vsel %vm488, %v1501, 0.0
      %v2326 = vrot.slane %v2325, 4
      %v2327 = vadd.f32 %v2325, %v2326
      %v2328 = vrot.slane %v2327, 2
      %v2329 = vadd.f32 %v2327, %v2328
      %v2330 = vrot.slane %v2329, 1
      %v2331 = vadd.f32 %v2329, %v2330
      %v2332 = vsel %vm488, %v1502, 0.0
      %v2333 = vrot.slane %v2332, 4
      %v2334 = vadd.f32 %v2332, %v2333
      %v2335 = vrot.slane %v2334, 2
      %v2336 = vadd.f32 %v2334, %v2335
      %v2337 = vrot.slane %v2336, 1
      %v2338 = vadd.f32 %v2336, %v2337
      %v2339 = vsel %vm488, %v1503, 0.0
      %v2340 = vrot.slane %v2339, 4
      %v2341 = vadd.f32 %v2339, %v2340
      %v2342 = vrot.slane %v2341, 2
      %v2343 = vadd.f32 %v2341, %v2342
      %v2344 = vrot.slane %v2343, 1
      %v2345 = vadd.f32 %v2343, %v2344
      %v2346 = vsel %vm488, %v1504, 0.0
      %v2347 = vrot.slane %v2346, 4
      %v2348 = vadd.f32 %v2346, %v2347
      %v2349 = vrot.slane %v2348, 2
      %v2350 = vadd.f32 %v2348, %v2349
      %v2351 = vrot.slane %v2350, 1
      %v2352 = vadd.f32 %v2350, %v2351
      %v2353 = vsel %vm488, %v1505, 0.0
      %v2354 = vrot.slane %v2353, 4
      %v2355 = vadd.f32 %v2353, %v2354
      %v2356 = vrot.slane %v2355, 2
      %v2357 = vadd.f32 %v2355, %v2356
      %v2358 = vrot.slane %v2357, 1
      %v2359 = vadd.f32 %v2357, %v2358
      %v2360 = vsel %vm488, %v1506, 0.0
      %v2361 = vrot.slane %v2360, 4
      %v2362 = vadd.f32 %v2360, %v2361
      %v2363 = vrot.slane %v2362, 2
      %v2364 = vadd.f32 %v2362, %v2363
      %v2365 = vrot.slane %v2364, 1
      %v2366 = vadd.f32 %v2364, %v2365
      %v2367 = vsel %vm488, %v1507, 0.0
      %v2368 = vrot.slane %v2367, 4
      %v2369 = vadd.f32 %v2367, %v2368
      %v2370 = vrot.slane %v2369, 2
      %v2371 = vadd.f32 %v2369, %v2370
      %v2372 = vrot.slane %v2371, 1
      %v2373 = vadd.f32 %v2371, %v2372
      %v2374 = vsel %vm488, %v1508, 0.0
      %v2375 = vrot.slane %v2374, 4
      %v2376 = vadd.f32 %v2374, %v2375
      %v2377 = vrot.slane %v2376, 2
      %v2378 = vadd.f32 %v2376, %v2377
      %v2379 = vrot.slane %v2378, 1
      %v2380 = vadd.f32 %v2378, %v2379
      %v2381 = vsel %vm488, %v1509, 0.0
      %v2382 = vrot.slane %v2381, 4
      %v2383 = vadd.f32 %v2381, %v2382
      %v2384 = vrot.slane %v2383, 2
      %v2385 = vadd.f32 %v2383, %v2384
      %v2386 = vrot.slane %v2385, 1
      %v2387 = vadd.f32 %v2385, %v2386
      %v2388 = vsel %vm488, %v1510, 0.0
      %v2389 = vrot.slane %v2388, 4
      %v2390 = vadd.f32 %v2388, %v2389
      %v2391 = vrot.slane %v2390, 2
      %v2392 = vadd.f32 %v2390, %v2391
      %v2393 = vrot.slane %v2392, 1
      %v2394 = vadd.f32 %v2392, %v2393
      %v2395 = vsel %vm488, %v1511, 0.0
      %v2396 = vrot.slane %v2395, 4
      %v2397 = vadd.f32 %v2395, %v2396
      %v2398 = vrot.slane %v2397, 2
      %v2399 = vadd.f32 %v2397, %v2398
      %v2400 = vrot.slane %v2399, 1
      %v2401 = vadd.f32 %v2399, %v2400
      %v2402 = vsel %vm488, %v1512, 0.0
      %v2403 = vrot.slane %v2402, 4
      %v2404 = vadd.f32 %v2402, %v2403
      %v2405 = vrot.slane %v2404, 2
      %v2406 = vadd.f32 %v2404, %v2405
      %v2407 = vrot.slane %v2406, 1
      %v2408 = vadd.f32 %v2406, %v2407
      %v2409 = vmul.f32 %v495, 0.5
      %v2410 = vmul.f32 %v502, 0.5
      %v2411 = vmul.f32 %v509, 0.5
      %v2412 = vmul.f32 %v516, 0.5
      %v2413 = vmul.f32 %v523, 0.5
      %v2414 = vmul.f32 %v530, 0.5
      %v2415 = vmul.f32 %v537, 0.5
      %v2416 = vmul.f32 %v544, 0.5
      %v2417 = vmul.f32 %v551, 0.5
      %v2418 = vmul.f32 %v558, 0.5
      %v2419 = vmul.f32 %v565, 0.5
      %v2420 = vmul.f32 %v572, 0.5
      %v2421 = vmul.f32 %v579, 0.5
      %v2422 = vmul.f32 %v586, 0.5
      %v2423 = vmul.f32 %v593, 0.5
      %v2424 = vmul.f32 %v600, 0.5
      %v2425 = vmul.f32 %v607, 0.5
      %v2426 = vmul.f32 %v614, 0.5
      %v2427 = vmul.f32 %v621, 0.5
      %v2428 = vmul.f32 %v628, 0.5
      %v2429 = vmul.f32 %v635, 0.5
      %v2430 = vmul.f32 %v642, 0.5
      %v2431 = vmul.f32 %v649, 0.5
      %v2432 = vmul.f32 %v656, 0.5
      %v2433 = vmul.f32 %v663, 0.5
      %v2434 = vmul.f32 %v670, 0.5
      %v2435 = vmul.f32 %v677, 0.5
      %v2436 = vmul.f32 %v684, 0.5
      %v2437 = vmul.f32 %v691, 0.5
      %v2438 = vmul.f32 %v698, 0.5
      %v2439 = vmul.f32 %v705, 0.5
      %v2440 = vmul.f32 %v712, 0.5
      %v2441 = vmul.f32 %v719, 0.5
      %v2442 = vmul.f32 %v726, 0.5
      %v2443 = vmul.f32 %v733, 0.5
      %v2444 = vmul.f32 %v740, 0.5
      %v2445 = vmul.f32 %v747, 0.5
      %v2446 = vmul.f32 %v754, 0.5
      %v2447 = vmul.f32 %v761, 0.5
      %v2448 = vmul.f32 %v768, 0.5
      %v2449 = vmul.f32 %v775, 0.5
      %v2450 = vmul.f32 %v782, 0.5
      %v2451 = vmul.f32 %v789, 0.5
      %v2452 = vmul.f32 %v796, 0.5
      %v2453 = vmul.f32 %v803, 0.5
      %v2454 = vmul.f32 %v810, 0.5
      %v2455 = vmul.f32 %v817, 0.5
      %v2456 = vmul.f32 %v824, 0.5
      %v2457 = vmul.f32 %v831, 0.5
      %v2458 = vmul.f32 %v838, 0.5
      %v2459 = vmul.f32 %v845, 0.5
      %v2460 = vmul.f32 %v852, 0.5
      %v2461 = vmul.f32 %v859, 0.5
      %v2462 = vmul.f32 %v866, 0.5
      %v2463 = vmul.f32 %v873, 0.5
      %v2464 = vmul.f32 %v880, 0.5
      %v2465 = vmul.f32 %v887, 0.5
      %v2466 = vmul.f32 %v894, 0.5
      %v2467 = vmul.f32 %v901, 0.5
      %v2468 = vmul.f32 %v908, 0.5
      %v2469 = vmul.f32 %v915, 0.5
      %v2470 = vmul.f32 %v922, 0.5
      %v2471 = vmul.f32 %v929, 0.5
      %v2472 = vmul.f32 %v936, 0.5
      %v2473 = vmul.f32 %v943, 0.5
      %v2474 = vmul.f32 %v950, 0.5
      %v2475 = vmul.f32 %v957, 0.5
      %v2476 = vmul.f32 %v964, 0.5
      %v2477 = vmul.f32 %v971, 0.5
      %v2478 = vmul.f32 %v978, 0.5
      %v2479 = vmul.f32 %v985, 0.5
      %v2480 = vmul.f32 %v992, 0.5
      %v2481 = vmul.f32 %v999, 0.5
      %v2482 = vmul.f32 %v1006, 0.5
      %v2483 = vmul.f32 %v1013, 0.5
      %v2484 = vmul.f32 %v1020, 0.5
      %v2485 = vmul.f32 %v1027, 0.5
      %v2486 = vmul.f32 %v1034, 0.5
      %v2487 = vmul.f32 %v1041, 0.5
      %v2488 = vmul.f32 %v1048, 0.5
      %v2489 = vmul.f32 %v1055, 0.5
      %v2490 = vmul.f32 %v1062, 0.5
      %v2491 = vmul.f32 %v1069, 0.5
      %v2492 = vmul.f32 %v1076, 0.5
      %v2493 = vmul.f32 %v1083, 0.5
      %v2494 = vmul.f32 %v1090, 0.5
      %v2495 = vmul.f32 %v1097, 0.5
      %v2496 = vmul.f32 %v1104, 0.5
      %v2497 = vmul.f32 %v1111, 0.5
      %v2498 = vmul.f32 %v1118, 0.5
      %v2499 = vmul.f32 %v1125, 0.5
      %v2500 = vmul.f32 %v1132, 0.5
      %v2501 = vmul.f32 %v1139, 0.5
      %v2502 = vmul.f32 %v1146, 0.5
      %v2503 = vmul.f32 %v1153, 0.5
      %v2504 = vmul.f32 %v1160, 0.5
      %v2505 = vmul.f32 %v1167, 0.5
      %v2506 = vmul.f32 %v1174, 0.5
      %v2507 = vmul.f32 %v1181, 0.5
      %v2508 = vmul.f32 %v1188, 0.5
      %v2509 = vmul.f32 %v1195, 0.5
      %v2510 = vmul.f32 %v1202, 0.5
      %v2511 = vmul.f32 %v1209, 0.5
      %v2512 = vmul.f32 %v1216, 0.5
      %v2513 = vmul.f32 %v1223, 0.5
      %v2514 = vmul.f32 %v1230, 0.5
      %v2515 = vmul.f32 %v1237, 0.5
      %v2516 = vmul.f32 %v1244, 0.5
      %v2517 = vmul.f32 %v1251, 0.5
      %v2518 = vmul.f32 %v1258, 0.5
      %v2519 = vmul.f32 %v1265, 0.5
      %v2520 = vmul.f32 %v1272, 0.5
      %v2521 = vmul.f32 %v1279, 0.5
      %v2522 = vmul.f32 %v1286, 0.5
      %v2523 = vmul.f32 %v1293, 0.5
      %v2524 = vmul.f32 %v1300, 0.5
      %v2525 = vmul.f32 %v1307, 0.5
      %v2526 = vmul.f32 %v1314, 0.5
      %v2527 = vmul.f32 %v1321, 0.5
      %v2528 = vmul.f32 %v1328, 0.5
      %v2529 = vmul.f32 %v1335, 0.5
      %v2530 = vmul.f32 %v1342, 0.5
      %v2531 = vmul.f32 %v1349, 0.5
      %v2532 = vmul.f32 %v1356, 0.5
      %v2533 = vmul.f32 %v1363, 0.5
      %v2534 = vmul.f32 %v1370, 0.5
      %v2535 = vmul.f32 %v1377, 0.5
      %v2536 = vmul.f32 %v1384, 0.5
      %v2537 = vmul.f32 %v2409, %v495
      %v2538 = vmul.f32 %v2410, %v502
      %v2539 = vmul.f32 %v2411, %v509
      %v2540 = vmul.f32 %v2412, %v516
      %v2541 = vmul.f32 %v2413, %v523
      %v2542 = vmul.f32 %v2414, %v530
      %v2543 = vmul.f32 %v2415, %v537
      %v2544 = vmul.f32 %v2416, %v544
      %v2545 = vmul.f32 %v2417, %v551
      %v2546 = vmul.f32 %v2418, %v558
      %v2547 = vmul.f32 %v2419, %v565
      %v2548 = vmul.f32 %v2420, %v572
      %v2549 = vmul.f32 %v2421, %v579
      %v2550 = vmul.f32 %v2422, %v586
      %v2551 = vmul.f32 %v2423, %v593
      %v2552 = vmul.f32 %v2424, %v600
      %v2553 = vmul.f32 %v2425, %v607
      %v2554 = vmul.f32 %v2426, %v614
      %v2555 = vmul.f32 %v2427, %v621
      %v2556 = vmul.f32 %v2428, %v628
      %v2557 = vmul.f32 %v2429, %v635
      %v2558 = vmul.f32 %v2430, %v642
      %v2559 = vmul.f32 %v2431, %v649
      %v2560 = vmul.f32 %v2432, %v656
      %v2561 = vmul.f32 %v2433, %v663
      %v2562 = vmul.f32 %v2434, %v670
      %v2563 = vmul.f32 %v2435, %v677
      %v2564 = vmul.f32 %v2436, %v684
      %v2565 = vmul.f32 %v2437, %v691
      %v2566 = vmul.f32 %v2438, %v698
      %v2567 = vmul.f32 %v2439, %v705
      %v2568 = vmul.f32 %v2440, %v712
      %v2569 = vmul.f32 %v2441, %v719
      %v2570 = vmul.f32 %v2442, %v726
      %v2571 = vmul.f32 %v2443, %v733
      %v2572 = vmul.f32 %v2444, %v740
      %v2573 = vmul.f32 %v2445, %v747
      %v2574 = vmul.f32 %v2446, %v754
      %v2575 = vmul.f32 %v2447, %v761
      %v2576 = vmul.f32 %v2448, %v768
      %v2577 = vmul.f32 %v2449, %v775
      %v2578 = vmul.f32 %v2450, %v782
      %v2579 = vmul.f32 %v2451, %v789
      %v2580 = vmul.f32 %v2452, %v796
      %v2581 = vmul.f32 %v2453, %v803
      %v2582 = vmul.f32 %v2454, %v810
      %v2583 = vmul.f32 %v2455, %v817
      %v2584 = vmul.f32 %v2456, %v824
      %v2585 = vmul.f32 %v2457, %v831
      %v2586 = vmul.f32 %v2458, %v838
      %v2587 = vmul.f32 %v2459, %v845
      %v2588 = vmul.f32 %v2460, %v852
      %v2589 = vmul.f32 %v2461, %v859
      %v2590 = vmul.f32 %v2462, %v866
      %v2591 = vmul.f32 %v2463, %v873
      %v2592 = vmul.f32 %v2464, %v880
      %v2593 = vmul.f32 %v2465, %v887
      %v2594 = vmul.f32 %v2466, %v894
      %v2595 = vmul.f32 %v2467, %v901
      %v2596 = vmul.f32 %v2468, %v908
      %v2597 = vmul.f32 %v2469, %v915
      %v2598 = vmul.f32 %v2470, %v922
      %v2599 = vmul.f32 %v2471, %v929
      %v2600 = vmul.f32 %v2472, %v936
      %v2601 = vmul.f32 %v2473, %v943
      %v2602 = vmul.f32 %v2474, %v950
      %v2603 = vmul.f32 %v2475, %v957
      %v2604 = vmul.f32 %v2476, %v964
      %v2605 = vmul.f32 %v2477, %v971
      %v2606 = vmul.f32 %v2478, %v978
      %v2607 = vmul.f32 %v2479, %v985
      %v2608 = vmul.f32 %v2480, %v992
      %v2609 = vmul.f32 %v2481, %v999
      %v2610 = vmul.f32 %v2482, %v1006
      %v2611 = vmul.f32 %v2483, %v1013
      %v2612 = vmul.f32 %v2484, %v1020
      %v2613 = vmul.f32 %v2485, %v1027
      %v2614 = vmul.f32 %v2486, %v1034
      %v2615 = vmul.f32 %v2487, %v1041
      %v2616 = vmul.f32 %v2488, %v1048
      %v2617 = vmul.f32 %v2489, %v1055
      %v2618 = vmul.f32 %v2490, %v1062
      %v2619 = vmul.f32 %v2491, %v1069
      %v2620 = vmul.f32 %v2492, %v1076
      %v2621 = vmul.f32 %v2493, %v1083
      %v2622 = vmul.f32 %v2494, %v1090
      %v2623 = vmul.f32 %v2495, %v1097
      %v2624 = vmul.f32 %v2496, %v1104
      %v2625 = vmul.f32 %v2497, %v1111
      %v2626 = vmul.f32 %v2498, %v1118
      %v2627 = vmul.f32 %v2499, %v1125
      %v2628 = vmul.f32 %v2500, %v1132
      %v2629 = vmul.f32 %v2501, %v1139
      %v2630 = vmul.f32 %v2502, %v1146
      %v2631 = vmul.f32 %v2503, %v1153
      %v2632 = vmul.f32 %v2504, %v1160
      %v2633 = vmul.f32 %v2505, %v1167
      %v2634 = vmul.f32 %v2506, %v1174
      %v2635 = vmul.f32 %v2507, %v1181
      %v2636 = vmul.f32 %v2508, %v1188
      %v2637 = vmul.f32 %v2509, %v1195
      %v2638 = vmul.f32 %v2510, %v1202
      %v2639 = vmul.f32 %v2511, %v1209
      %v2640 = vmul.f32 %v2512, %v1216
      %v2641 = vmul.f32 %v2513, %v1223
      %v2642 = vmul.f32 %v2514, %v1230
      %v2643 = vmul.f32 %v2515, %v1237
      %v2644 = vmul.f32 %v2516, %v1244
      %v2645 = vmul.f32 %v2517, %v1251
      %v2646 = vmul.f32 %v2518, %v1258
      %v2647 = vmul.f32 %v2519, %v1265
      %v2648 = vmul.f32 %v2520, %v1272
      %v2649 = vmul.f32 %v2521, %v1279
      %v2650 = vmul.f32 %v2522, %v1286
      %v2651 = vmul.f32 %v2523, %v1293
      %v2652 = vmul.f32 %v2524, %v1300
      %v2653 = vmul.f32 %v2525, %v1307
      %v2654 = vmul.f32 %v2526, %v1314
      %v2655 = vmul.f32 %v2527, %v1321
      %v2656 = vmul.f32 %v2528, %v1328
      %v2657 = vmul.f32 %v2529, %v1335
      %v2658 = vmul.f32 %v2530, %v1342
      %v2659 = vmul.f32 %v2531, %v1349
      %v2660 = vmul.f32 %v2532, %v1356
      %v2661 = vmul.f32 %v2533, %v1363
      %v2662 = vmul.f32 %v2534, %v1370
      %v2663 = vmul.f32 %v2535, %v1377
      %v2664 = vmul.f32 %v2536, %v1384
      %v2665 = vsub.f32 %v2537, %v1519
      %v2666 = vsub.f32 %v2538, %v1526
      %v2667 = vsub.f32 %v2539, %v1533
      %v2668 = vsub.f32 %v2540, %v1540
      %v2669 = vsub.f32 %v2541, %v1547
      %v2670 = vsub.f32 %v2542, %v1554
      %v2671 = vsub.f32 %v2543, %v1561
      %v2672 = vsub.f32 %v2544, %v1568
      %v2673 = vsub.f32 %v2545, %v1575
      %v2674 = vsub.f32 %v2546, %v1582
      %v2675 = vsub.f32 %v2547, %v1589
      %v2676 = vsub.f32 %v2548, %v1596
      %v2677 = vsub.f32 %v2549, %v1603
      %v2678 = vsub.f32 %v2550, %v1610
      %v2679 = vsub.f32 %v2551, %v1617
      %v2680 = vsub.f32 %v2552, %v1624
      %v2681 = vsub.f32 %v2553, %v1631
      %v2682 = vsub.f32 %v2554, %v1638
      %v2683 = vsub.f32 %v2555, %v1645
      %v2684 = vsub.f32 %v2556, %v1652
      %v2685 = vsub.f32 %v2557, %v1659
      %v2686 = vsub.f32 %v2558, %v1666
      %v2687 = vsub.f32 %v2559, %v1673
      %v2688 = vsub.f32 %v2560, %v1680
      %v2689 = vsub.f32 %v2561, %v1687
      %v2690 = vsub.f32 %v2562, %v1694
      %v2691 = vsub.f32 %v2563, %v1701
      %v2692 = vsub.f32 %v2564, %v1708
      %v2693 = vsub.f32 %v2565, %v1715
      %v2694 = vsub.f32 %v2566, %v1722
      %v2695 = vsub.f32 %v2567, %v1729
      %v2696 = vsub.f32 %v2568, %v1736
      %v2697 = vsub.f32 %v2569, %v1743
      %v2698 = vsub.f32 %v2570, %v1750
      %v2699 = vsub.f32 %v2571, %v1757
      %v2700 = vsub.f32 %v2572, %v1764
      %v2701 = vsub.f32 %v2573, %v1771
      %v2702 = vsub.f32 %v2574, %v1778
      %v2703 = vsub.f32 %v2575, %v1785
      %v2704 = vsub.f32 %v2576, %v1792
      %v2705 = vsub.f32 %v2577, %v1799
      %v2706 = vsub.f32 %v2578, %v1806
      %v2707 = vsub.f32 %v2579, %v1813
      %v2708 = vsub.f32 %v2580, %v1820
      %v2709 = vsub.f32 %v2581, %v1827
      %v2710 = vsub.f32 %v2582, %v1834
      %v2711 = vsub.f32 %v2583, %v1841
      %v2712 = vsub.f32 %v2584, %v1848
      %v2713 = vsub.f32 %v2585, %v1855
      %v2714 = vsub.f32 %v2586, %v1862
      %v2715 = vsub.f32 %v2587, %v1869
      %v2716 = vsub.f32 %v2588, %v1876
      %v2717 = vsub.f32 %v2589, %v1883
      %v2718 = vsub.f32 %v2590, %v1890
      %v2719 = vsub.f32 %v2591, %v1897
      %v2720 = vsub.f32 %v2592, %v1904
      %v2721 = vsub.f32 %v2593, %v1911
      %v2722 = vsub.f32 %v2594, %v1918
      %v2723 = vsub.f32 %v2595, %v1925
      %v2724 = vsub.f32 %v2596, %v1932
      %v2725 = vsub.f32 %v2597, %v1939
      %v2726 = vsub.f32 %v2598, %v1946
      %v2727 = vsub.f32 %v2599, %v1953
      %v2728 = vsub.f32 %v2600, %v1960
      %v2729 = vsub.f32 %v2601, %v1967
      %v2730 = vsub.f32 %v2602, %v1974
      %v2731 = vsub.f32 %v2603, %v1981
      %v2732 = vsub.f32 %v2604, %v1988
      %v2733 = vsub.f32 %v2605, %v1995
      %v2734 = vsub.f32 %v2606, %v2002
      %v2735 = vsub.f32 %v2607, %v2009
      %v2736 = vsub.f32 %v2608, %v2016
      %v2737 = vsub.f32 %v2609, %v2023
      %v2738 = vsub.f32 %v2610, %v2030
      %v2739 = vsub.f32 %v2611, %v2037
      %v2740 = vsub.f32 %v2612, %v2044
      %v2741 = vsub.f32 %v2613, %v2051
      %v2742 = vsub.f32 %v2614, %v2058
      %v2743 = vsub.f32 %v2615, %v2065
      %v2744 = vsub.f32 %v2616, %v2072
      %v2745 = vsub.f32 %v2617, %v2079
      %v2746 = vsub.f32 %v2618, %v2086
      %v2747 = vsub.f32 %v2619, %v2093
      %v2748 = vsub.f32 %v2620, %v2100
      %v2749 = vsub.f32 %v2621, %v2107
      %v2750 = vsub.f32 %v2622, %v2114
      %v2751 = vsub.f32 %v2623, %v2121
      %v2752 = vsub.f32 %v2624, %v2128
      %v2753 = vsub.f32 %v2625, %v2135
      %v2754 = vsub.f32 %v2626, %v2142
      %v2755 = vsub.f32 %v2627, %v2149
      %v2756 = vsub.f32 %v2628, %v2156
      %v2757 = vsub.f32 %v2629, %v2163
      %v2758 = vsub.f32 %v2630, %v2170
      %v2759 = vsub.f32 %v2631, %v2177
      %v2760 = vsub.f32 %v2632, %v2184
      %v2761 = vsub.f32 %v2633, %v2191
      %v2762 = vsub.f32 %v2634, %v2198
      %v2763 = vsub.f32 %v2635, %v2205
      %v2764 = vsub.f32 %v2636, %v2212
      %v2765 = vsub.f32 %v2637, %v2219
      %v2766 = vsub.f32 %v2638, %v2226
      %v2767 = vsub.f32 %v2639, %v2233
      %v2768 = vsub.f32 %v2640, %v2240
      %v2769 = vsub.f32 %v2641, %v2247
      %v2770 = vsub.f32 %v2642, %v2254
      %v2771 = vsub.f32 %v2643, %v2261
      %v2772 = vsub.f32 %v2644, %v2268
      %v2773 = vsub.f32 %v2645, %v2275
      %v2774 = vsub.f32 %v2646, %v2282
      %v2775 = vsub.f32 %v2647, %v2289
      %v2776 = vsub.f32 %v2648, %v2296
      %v2777 = vsub.f32 %v2649, %v2303
      %v2778 = vsub.f32 %v2650, %v2310
      %v2779 = vsub.f32 %v2651, %v2317
      %v2780 = vsub.f32 %v2652, %v2324
      %v2781 = vsub.f32 %v2653, %v2331
      %v2782 = vsub.f32 %v2654, %v2338
      %v2783 = vsub.f32 %v2655, %v2345
      %v2784 = vsub.f32 %v2656, %v2352
      %v2785 = vsub.f32 %v2657, %v2359
      %v2786 = vsub.f32 %v2658, %v2366
      %v2787 = vsub.f32 %v2659, %v2373
      %v2788 = vsub.f32 %v2660, %v2380
      %v2789 = vsub.f32 %v2661, %v2387
      %v2790 = vsub.f32 %v2662, %v2394
      %v2791 = vsub.f32 %v2663, %v2401
      %v2792 = vsub.f32 %v2664, %v2408
      %v2793 = vld [vmem:[%s352] sm:$0xff]
      %v2794 = vld [vmem:[%s352 + $0x8] sm:$0xff]
      %v2795 = vld [vmem:[%s352 + $0x10] sm:$0xff]
      %v2796 = vld [vmem:[%s352 + $0x18] sm:$0xff]
      %v2797 = vld [vmem:[%s352 + $0x20] sm:$0xff]
      %v2798 = vld [vmem:[%s352 + $0x28] sm:$0xff]
      %v2799 = vld [vmem:[%s352 + $0x30] sm:$0xff]
      %v2800 = vld [vmem:[%s352 + $0x38] sm:$0xff]
      %v2801 = vld [vmem:[%s352 + $0x40] sm:$0xff]
      %v2802 = vld [vmem:[%s352 + $0x48] sm:$0xff]
      %v2803 = vld [vmem:[%s352 + $0x50] sm:$0xff]
      %v2804 = vld [vmem:[%s352 + $0x58] sm:$0xff]
      %v2805 = vld [vmem:[%s352 + $0x60] sm:$0xff]
      %v2806 = vld [vmem:[%s352 + $0x68] sm:$0xff]
      %v2807 = vld [vmem:[%s352 + $0x70] sm:$0xff]
      %v2808 = vld [vmem:[%s352 + $0x78] sm:$0xff]
      %v2809 = vld [vmem:[%s2] sm:$0xff]
      %v2810 = vld [vmem:[%s3] sm:$0xff]
      %v2811 = vld [vmem:[%s3 + $0x8] sm:$0xff]
      %vm2940 = vcmask 1041409
      %v2941 = vsel %vm2940, %v2666, %v2665
      %vm2942 = vcmask 1042434
      %v2943 = vsel %vm2942, %v2667, %v2941
      %vm2944 = vcmask 1043459
      %v2945 = vsel %vm2944, %v2668, %v2943
      %vm2946 = vcmask 1044484
      %v2947 = vsel %vm2946, %v2669, %v2945
      %vm2948 = vcmask 1045509
      %v2949 = vsel %vm2948, %v2670, %v2947
      %vm2950 = vcmask 1046534
      %v2951 = vsel %vm2950, %v2671, %v2949
      %vm2952 = vcmask 1047559
      %v2953 = vsel %vm2952, %v2672, %v2951
      %v2954 = vsel %vm2940, %v2674, %v2673
      %v2955 = vsel %vm2942, %v2675, %v2954
      %v2956 = vsel %vm2944, %v2676, %v2955
      %v2957 = vsel %vm2946, %v2677, %v2956
      %v2958 = vsel %vm2948, %v2678, %v2957
      %v2959 = vsel %vm2950, %v2679, %v2958
      %v2960 = vsel %vm2952, %v2680, %v2959
      %v2961 = vsel %vm2940, %v2682, %v2681
      %v2962 = vsel %vm2942, %v2683, %v2961
      %v2963 = vsel %vm2944, %v2684, %v2962
      %v2964 = vsel %vm2946, %v2685, %v2963
      %v2965 = vsel %vm2948, %v2686, %v2964
      %v2966 = vsel %vm2950, %v2687, %v2965
      %v2967 = vsel %vm2952, %v2688, %v2966
      %v2968 = vsel %vm2940, %v2690, %v2689
      %v2969 = vsel %vm2942, %v2691, %v2968
      %v2970 = vsel %vm2944, %v2692, %v2969
      %v2971 = vsel %vm2946, %v2693, %v2970
      %v2972 = vsel %vm2948, %v2694, %v2971
      %v2973 = vsel %vm2950, %v2695, %v2972
      %v2974 = vsel %vm2952, %v2696, %v2973
      %v2975 = vsel %vm2940, %v2698, %v2697
      %v2976 = vsel %vm2942, %v2699, %v2975
      %v2977 = vsel %vm2944, %v2700, %v2976
      %v2978 = vsel %vm2946, %v2701, %v2977
      %v2979 = vsel %vm2948, %v2702, %v2978
      %v2980 = vsel %vm2950, %v2703, %v2979
      %v2981 = vsel %vm2952, %v2704, %v2980
      %v2982 = vsel %vm2940, %v2706, %v2705
      %v2983 = vsel %vm2942, %v2707, %v2982
      %v2984 = vsel %vm2944, %v2708, %v2983
      %v2985 = vsel %vm2946, %v2709, %v2984
      %v2986 = vsel %vm2948, %v2710, %v2985
      %v2987 = vsel %vm2950, %v2711, %v2986
      %v2988 = vsel %vm2952, %v2712, %v2987
      %v2989 = vsel %vm2940, %v2714, %v2713
      %v2990 = vsel %vm2942, %v2715, %v2989
      %v2991 = vsel %vm2944, %v2716, %v2990
      %v2992 = vsel %vm2946, %v2717, %v2991
      %v2993 = vsel %vm2948, %v2718, %v2992
      %v2994 = vsel %vm2950, %v2719, %v2993
      %v2995 = vsel %vm2952, %v2720, %v2994
      %v2996 = vsel %vm2940, %v2722, %v2721
      %v2997 = vsel %vm2942, %v2723, %v2996
      %v2998 = vsel %vm2944, %v2724, %v2997
      %v2999 = vsel %vm2946, %v2725, %v2998
      %v3000 = vsel %vm2948, %v2726, %v2999
      %v3001 = vsel %vm2950, %v2727, %v3000
      %v3002 = vsel %vm2952, %v2728, %v3001
      %v3003 = vsel %vm2940, %v2730, %v2729
      %v3004 = vsel %vm2942, %v2731, %v3003
      %v3005 = vsel %vm2944, %v2732, %v3004
      %v3006 = vsel %vm2946, %v2733, %v3005
      %v3007 = vsel %vm2948, %v2734, %v3006
      %v3008 = vsel %vm2950, %v2735, %v3007
      %v3009 = vsel %vm2952, %v2736, %v3008
      %v3010 = vsel %vm2940, %v2738, %v2737
      %v3011 = vsel %vm2942, %v2739, %v3010
      %v3012 = vsel %vm2944, %v2740, %v3011
      %v3013 = vsel %vm2946, %v2741, %v3012
      %v3014 = vsel %vm2948, %v2742, %v3013
      %v3015 = vsel %vm2950, %v2743, %v3014
      %v3016 = vsel %vm2952, %v2744, %v3015
      %v3017 = vsel %vm2940, %v2746, %v2745
      %v3018 = vsel %vm2942, %v2747, %v3017
      %v3019 = vsel %vm2944, %v2748, %v3018
      %v3020 = vsel %vm2946, %v2749, %v3019
      %v3021 = vsel %vm2948, %v2750, %v3020
      %v3022 = vsel %vm2950, %v2751, %v3021
      %v3023 = vsel %vm2952, %v2752, %v3022
      %v3024 = vsel %vm2940, %v2754, %v2753
      %v3025 = vsel %vm2942, %v2755, %v3024
      %v3026 = vsel %vm2944, %v2756, %v3025
      %v3027 = vsel %vm2946, %v2757, %v3026
      %v3028 = vsel %vm2948, %v2758, %v3027
      %v3029 = vsel %vm2950, %v2759, %v3028
      %v3030 = vsel %vm2952, %v2760, %v3029
      %v3031 = vsel %vm2940, %v2762, %v2761
      %v3032 = vsel %vm2942, %v2763, %v3031
      %v3033 = vsel %vm2944, %v2764, %v3032
      %v3034 = vsel %vm2946, %v2765, %v3033
      %v3035 = vsel %vm2948, %v2766, %v3034
      %v3036 = vsel %vm2950, %v2767, %v3035
      %v3037 = vsel %vm2952, %v2768, %v3036
      %v3038 = vsel %vm2940, %v2770, %v2769
      %v3039 = vsel %vm2942, %v2771, %v3038
      %v3040 = vsel %vm2944, %v2772, %v3039
      %v3041 = vsel %vm2946, %v2773, %v3040
      %v3042 = vsel %vm2948, %v2774, %v3041
      %v3043 = vsel %vm2950, %v2775, %v3042
      %v3044 = vsel %vm2952, %v2776, %v3043
      %v3045 = vsel %vm2940, %v2778, %v2777
      %v3046 = vsel %vm2942, %v2779, %v3045
      %v3047 = vsel %vm2944, %v2780, %v3046
      %v3048 = vsel %vm2946, %v2781, %v3047
      %v3049 = vsel %vm2948, %v2782, %v3048
      %v3050 = vsel %vm2950, %v2783, %v3049
      %v3051 = vsel %vm2952, %v2784, %v3050
      %v3052 = vsel %vm2940, %v2786, %v2785
      %v3053 = vsel %vm2942, %v2787, %v3052
      %v3054 = vsel %vm2944, %v2788, %v3053
      %v3055 = vsel %vm2946, %v2789, %v3054
      %v3056 = vsel %vm2948, %v2790, %v3055
      %v3057 = vsel %vm2950, %v2791, %v3056
      %v3058 = vsel %vm2952, %v2792, %v3057
      %v3059 = vsel %vm488, %v2953, 0
      %v3061 = vsel %vm488, %v2960, 0
      %v3063 = vsel %vm488, %v2967, 0
      %v3065 = vsel %vm488, %v2974, 0
      %v3067 = vsel %vm488, %v2981, 0
      %v3069 = vsel %vm488, %v2988, 0
      %v3071 = vsel %vm488, %v2995, 0
      %v3073 = vsel %vm488, %v3002, 0
      %v3075 = vsel %vm488, %v3009, 0
      %v3077 = vsel %vm488, %v3016, 0
      %v3079 = vsel %vm488, %v3023, 0
      %v3081 = vsel %vm488, %v3030, 0
      %v3083 = vsel %vm488, %v3037, 0
      %v3085 = vsel %vm488, %v3044, 0
      %v3087 = vsel %vm488, %v3051, 0
      %v3089 = vsel %vm488, %v3058, 0
      %3091 = vmatpush.msra.mxu0 0.0
      %3092 = vmatpush.msra.mxu0 0.0
      %3093 = vmatpush.msra.mxu0 0.0
      %3094 = vmatpush.msra.mxu0 0.0
      %3095 = vmatpush.msra.mxu0 0.0
      %3096 = vmatpush.msra.mxu0 0.0
      %3097 = vmatpush.msra.mxu0 0.0
      %3098 = vmatpush.msra.mxu0 0.0
      %3099 = vmatpush.msra.mxu0 0.0
      %3100 = vmatpush.msra.mxu0 0.0
      %3101 = vmatpush.msra.mxu0 0.0
      %3102 = vmatpush.msra.mxu0 0.0
      %3103 = vmatpush.msra.mxu0 0.0
      %3104 = vmatpush.msra.mxu0 0.0
      %3105 = vmatpush.msra.mxu0 0.0
      %3106 = vmatpush.msra.mxu0 %v2810
      %3107 = vmatmul.f32.gmra.mxu0 %v3059
      %v3108 = vpop.f32.mrf.mxu0
      %v3109 = vadd.f32 0.0, %v3108
      %3110 = vmatmul.f32.gmra.mxu0 %v3061
      %v3111 = vpop.f32.mrf.mxu0
      %v3112 = vadd.f32 0.0, %v3111
      %3113 = vmatmul.f32.gmra.mxu0 %v3063
      %v3114 = vpop.f32.mrf.mxu0
      %v3115 = vadd.f32 0.0, %v3114
      %3116 = vmatmul.f32.gmra.mxu0 %v3065
      %v3117 = vpop.f32.mrf.mxu0
      %v3118 = vadd.f32 0.0, %v3117
      %3119 = vmatmul.f32.gmra.mxu0 %v3067
      %v3120 = vpop.f32.mrf.mxu0
      %v3121 = vadd.f32 0.0, %v3120
      %3122 = vmatmul.f32.gmra.mxu0 %v3069
      %v3123 = vpop.f32.mrf.mxu0
      %v3124 = vadd.f32 0.0, %v3123
      %3125 = vmatmul.f32.gmra.mxu0 %v3071
      %v3126 = vpop.f32.mrf.mxu0
      %v3127 = vadd.f32 0.0, %v3126
      %3128 = vmatmul.f32.gmra.mxu0 %v3073
      %v3129 = vpop.f32.mrf.mxu0
      %v3130 = vadd.f32 0.0, %v3129
      %3131 = vmatmul.f32.gmra.mxu0 %v3075
      %v3132 = vpop.f32.mrf.mxu0
      %v3133 = vadd.f32 0.0, %v3132
      %3134 = vmatmul.f32.gmra.mxu0 %v3077
      %v3135 = vpop.f32.mrf.mxu0
      %v3136 = vadd.f32 0.0, %v3135
      %3137 = vmatmul.f32.gmra.mxu0 %v3079
      %v3138 = vpop.f32.mrf.mxu0
      %v3139 = vadd.f32 0.0, %v3138
      %3140 = vmatmul.f32.gmra.mxu0 %v3081
      %v3141 = vpop.f32.mrf.mxu0
      %v3142 = vadd.f32 0.0, %v3141
      %3143 = vmatmul.f32.gmra.mxu0 %v3083
      %v3144 = vpop.f32.mrf.mxu0
      %v3145 = vadd.f32 0.0, %v3144
      %3146 = vmatmul.f32.gmra.mxu0 %v3085
      %v3147 = vpop.f32.mrf.mxu0
      %v3148 = vadd.f32 0.0, %v3147
      %3149 = vmatmul.f32.gmra.mxu0 %v3087
      %v3150 = vpop.f32.mrf.mxu0
      %v3151 = vadd.f32 0.0, %v3150
      %3152 = vmatmul.f32.gmra.mxu0 %v3089
      %v3153 = vpop.f32.mrf.mxu0
      %v3154 = vadd.f32 0.0, %v3153
      %3155 = vdwg.mxu0
      %3156 = vmatpush.msra.mxu0 0.0
      %3157 = vmatpush.msra.mxu0 0.0
      %3158 = vmatpush.msra.mxu0 0.0
      %3159 = vmatpush.msra.mxu0 0.0
      %3160 = vmatpush.msra.mxu0 0.0
      %3161 = vmatpush.msra.mxu0 0.0
      %3162 = vmatpush.msra.mxu0 0.0
      %3163 = vmatpush.msra.mxu0 0.0
      %3164 = vmatpush.msra.mxu0 0.0
      %3165 = vmatpush.msra.mxu0 0.0
      %3166 = vmatpush.msra.mxu0 0.0
      %3167 = vmatpush.msra.mxu0 0.0
      %3168 = vmatpush.msra.mxu0 0.0
      %3169 = vmatpush.msra.mxu0 0.0
      %3170 = vmatpush.msra.mxu0 0.0
      %3171 = vmatpush.msra.mxu0 %v2811
      %3172 = vmatmul.f32.gmra.mxu0 %v3059
      %v3173 = vpop.f32.mrf.mxu0
      %v3174 = vadd.f32 0.0, %v3173
      %3175 = vmatmul.f32.gmra.mxu0 %v3061
      %v3176 = vpop.f32.mrf.mxu0
      %v3177 = vadd.f32 0.0, %v3176
      %3178 = vmatmul.f32.gmra.mxu0 %v3063
      %v3179 = vpop.f32.mrf.mxu0
      %v3180 = vadd.f32 0.0, %v3179
      %3181 = vmatmul.f32.gmra.mxu0 %v3065
      %v3182 = vpop.f32.mrf.mxu0
      %v3183 = vadd.f32 0.0, %v3182
      %3184 = vmatmul.f32.gmra.mxu0 %v3067
      %v3185 = vpop.f32.mrf.mxu0
      %v3186 = vadd.f32 0.0, %v3185
      %3187 = vmatmul.f32.gmra.mxu0 %v3069
      %v3188 = vpop.f32.mrf.mxu0
      %v3189 = vadd.f32 0.0, %v3188
      %3190 = vmatmul.f32.gmra.mxu0 %v3071
      %v3191 = vpop.f32.mrf.mxu0
      %v3192 = vadd.f32 0.0, %v3191
      %3193 = vmatmul.f32.gmra.mxu0 %v3073
      %v3194 = vpop.f32.mrf.mxu0
      %v3195 = vadd.f32 0.0, %v3194
      %3196 = vmatmul.f32.gmra.mxu0 %v3075
      %v3197 = vpop.f32.mrf.mxu0
      %v3198 = vadd.f32 0.0, %v3197
      %3199 = vmatmul.f32.gmra.mxu0 %v3077
      %v3200 = vpop.f32.mrf.mxu0
      %v3201 = vadd.f32 0.0, %v3200
      %3202 = vmatmul.f32.gmra.mxu0 %v3079
      %v3203 = vpop.f32.mrf.mxu0
      %v3204 = vadd.f32 0.0, %v3203
      %3205 = vmatmul.f32.gmra.mxu0 %v3081
      %v3206 = vpop.f32.mrf.mxu0
      %v3207 = vadd.f32 0.0, %v3206
      %3208 = vmatmul.f32.gmra.mxu0 %v3083
      %v3209 = vpop.f32.mrf.mxu0
      %v3210 = vadd.f32 0.0, %v3209
      %3211 = vmatmul.f32.gmra.mxu0 %v3085
      %v3212 = vpop.f32.mrf.mxu0
      %v3213 = vadd.f32 0.0, %v3212
      %3214 = vmatmul.f32.gmra.mxu0 %v3087
      %v3215 = vpop.f32.mrf.mxu0
      %v3216 = vadd.f32 0.0, %v3215
      %3217 = vmatmul.f32.gmra.mxu0 %v3089
      %v3218 = vpop.f32.mrf.mxu0
      %v3219 = vadd.f32 0.0, %v3218
      %3220 = vdwg.mxu0
      %3222 = vst [vmem:[#allocation1] ss:$2 sm:$0xff] %v2809
      %v3223 = vld.sshfl [vmem:[#allocation1] sm:$0xff pattern:$0x75316420]
      %v3224 = vld.sshfl [vmem:[#allocation1 + $0x8] sm:$0xff pattern:$0x75316420]
      %vm3225 = vcmask 31744
      %v3227 = vsel %vm3225, %v2793, 0
      %v3230 = vsel %vm3225, %v2794, 0
      %v3233 = vsel %vm3225, %v2795, 0
      %v3236 = vsel %vm3225, %v2796, 0
      %v3239 = vsel %vm3225, %v2797, 0
      %v3242 = vsel %vm3225, %v2798, 0
      %v3245 = vsel %vm3225, %v2799, 0
      %v3248 = vsel %vm3225, %v2800, 0
      %v3251 = vsel %vm3225, %v2801, 0
      %v3254 = vsel %vm3225, %v2802, 0
      %v3257 = vsel %vm3225, %v2803, 0
      %v3260 = vsel %vm3225, %v2804, 0
      %v3263 = vsel %vm3225, %v2805, 0
      %v3266 = vsel %vm3225, %v2806, 0
      %v3269 = vsel %vm3225, %v2807, 0
      %v3272 = vsel %vm3225, %v2808, 0
      %vm3274 = vcmask 1043456
      %v3275 = vsel %vm3274, %v3223, 0
      %v3277 = vsel %vm3274, %v3224, 0
      %3279 = vmatpush.msra.mxu0 0.0
      %3280 = vmatpush.msra.mxu0 0.0
      %3281 = vmatpush.msra.mxu0 0.0
      %3282 = vmatpush.msra.mxu0 0.0
      %3283 = vmatpush.msra.mxu0 0.0
      %3284 = vmatpush.msra.mxu0 0.0
      %3285 = vmatpush.msra.mxu0 0.0
      %3286 = vmatpush.msra.mxu0 0.0
      %3287 = vmatpush.msra.mxu0 0.0
      %3288 = vmatpush.msra.mxu0 0.0
      %3289 = vmatpush.msra.mxu0 0.0
      %3290 = vmatpush.msra.mxu0 0.0
      %3291 = vmatpush.msra.mxu0 0.0
      %3292 = vmatpush.msra.mxu0 0.0
      %3293 = vmatpush.msra.mxu0 0.0
      %3294 = vmatpush.msra.mxu0 %v3275
      %3295 = vmatmul.f32.gmra.mxu0 %v3227
      %v3296 = vpop.f32.mrf.mxu0
      %v3297 = vadd.f32 %v3109, %v3296
      %3298 = vmatmul.f32.gmra.mxu0 %v3230
      %v3299 = vpop.f32.mrf.mxu0
      %v3300 = vadd.f32 %v3112, %v3299
      %3301 = vmatmul.f32.gmra.mxu0 %v3233
      %v3302 = vpop.f32.mrf.mxu0
      %v3303 = vadd.f32 %v3115, %v3302
      %3304 = vmatmul.f32.gmra.mxu0 %v3236
      %v3305 = vpop.f32.mrf.mxu0
      %v3306 = vadd.f32 %v3118, %v3305
      %3307 = vmatmul.f32.gmra.mxu0 %v3239
      %v3308 = vpop.f32.mrf.mxu0
      %v3309 = vadd.f32 %v3121, %v3308
      %3310 = vmatmul.f32.gmra.mxu0 %v3242
      %v3311 = vpop.f32.mrf.mxu0
      %v3312 = vadd.f32 %v3124, %v3311
      %3313 = vmatmul.f32.gmra.mxu0 %v3245
      %v3314 = vpop.f32.mrf.mxu0
      %v3315 = vadd.f32 %v3127, %v3314
      %3316 = vmatmul.f32.gmra.mxu0 %v3248
      %v3317 = vpop.f32.mrf.mxu0
      %v3318 = vadd.f32 %v3130, %v3317
      %3319 = vmatmul.f32.gmra.mxu0 %v3251
      %v3320 = vpop.f32.mrf.mxu0
      %v3321 = vadd.f32 %v3133, %v3320
      %3322 = vmatmul.f32.gmra.mxu0 %v3254
      %v3323 = vpop.f32.mrf.mxu0
      %v3324 = vadd.f32 %v3136, %v3323
      %3325 = vmatmul.f32.gmra.mxu0 %v3257
      %v3326 = vpop.f32.mrf.mxu0
      %v3327 = vadd.f32 %v3139, %v3326
      %3328 = vmatmul.f32.gmra.mxu0 %v3260
      %v3329 = vpop.f32.mrf.mxu0
      %v3330 = vadd.f32 %v3142, %v3329
      %3331 = vmatmul.f32.gmra.mxu0 %v3263
      %v3332 = vpop.f32.mrf.mxu0
      %v3333 = vadd.f32 %v3145, %v3332
      %3334 = vmatmul.f32.gmra.mxu0 %v3266
      %v3335 = vpop.f32.mrf.mxu0
      %v3336 = vadd.f32 %v3148, %v3335
      %3337 = vmatmul.f32.gmra.mxu0 %v3269
      %v3338 = vpop.f32.mrf.mxu0
      %v3339 = vadd.f32 %v3151, %v3338
      %3340 = vmatmul.f32.gmra.mxu0 %v3272
      %v3341 = vpop.f32.mrf.mxu0
      %v3342 = vadd.f32 %v3154, %v3341
      %3343 = vdwg.mxu0
      %3344 = vmatpush.msra.mxu0 0.0
      %3345 = vmatpush.msra.mxu0 0.0
      %3346 = vmatpush.msra.mxu0 0.0
      %3347 = vmatpush.msra.mxu0 0.0
      %3348 = vmatpush.msra.mxu0 0.0
      %3349 = vmatpush.msra.mxu0 0.0
      %3350 = vmatpush.msra.mxu0 0.0
      %3351 = vmatpush.msra.mxu0 0.0
      %3352 = vmatpush.msra.mxu0 0.0
      %3353 = vmatpush.msra.mxu0 0.0
      %3354 = vmatpush.msra.mxu0 0.0
      %3355 = vmatpush.msra.mxu0 0.0
      %3356 = vmatpush.msra.mxu0 0.0
      %3357 = vmatpush.msra.mxu0 0.0
      %3358 = vmatpush.msra.mxu0 0.0
      %3359 = vmatpush.msra.mxu0 %v3277
      %3360 = vmatmul.f32.gmra.mxu0 %v3227
      %v3361 = vpop.f32.mrf.mxu0
      %v3362 = vadd.f32 %v3174, %v3361
      %3363 = vmatmul.f32.gmra.mxu0 %v3230
      %v3364 = vpop.f32.mrf.mxu0
      %v3365 = vadd.f32 %v3177, %v3364
      %3366 = vmatmul.f32.gmra.mxu0 %v3233
      %v3367 = vpop.f32.mrf.mxu0
      %v3368 = vadd.f32 %v3180, %v3367
      %3369 = vmatmul.f32.gmra.mxu0 %v3236
      %v3370 = vpop.f32.mrf.mxu0
      %v3371 = vadd.f32 %v3183, %v3370
      %3372 = vmatmul.f32.gmra.mxu0 %v3239
      %v3373 = vpop.f32.mrf.mxu0
      %v3374 = vadd.f32 %v3186, %v3373
      %3375 = vmatmul.f32.gmra.mxu0 %v3242
      %v3376 = vpop.f32.mrf.mxu0
      %v3377 = vadd.f32 %v3189, %v3376
      %3378 = vmatmul.f32.gmra.mxu0 %v3245
      %v3379 = vpop.f32.mrf.mxu0
      %v3380 = vadd.f32 %v3192, %v3379
      %3381 = vmatmul.f32.gmra.mxu0 %v3248
      %v3382 = vpop.f32.mrf.mxu0
      %v3383 = vadd.f32 %v3195, %v3382
      %3384 = vmatmul.f32.gmra.mxu0 %v3251
      %v3385 = vpop.f32.mrf.mxu0
      %v3386 = vadd.f32 %v3198, %v3385
      %3387 = vmatmul.f32.gmra.mxu0 %v3254
      %v3388 = vpop.f32.mrf.mxu0
      %v3389 = vadd.f32 %v3201, %v3388
      %3390 = vmatmul.f32.gmra.mxu0 %v3257
      %v3391 = vpop.f32.mrf.mxu0
      %v3392 = vadd.f32 %v3204, %v3391
      %3393 = vmatmul.f32.gmra.mxu0 %v3260
      %v3394 = vpop.f32.mrf.mxu0
      %v3395 = vadd.f32 %v3207, %v3394
      %3396 = vmatmul.f32.gmra.mxu0 %v3263
      %v3397 = vpop.f32.mrf.mxu0
      %v3398 = vadd.f32 %v3210, %v3397
      %3399 = vmatmul.f32.gmra.mxu0 %v3266
      %v3400 = vpop.f32.mrf.mxu0
      %v3401 = vadd.f32 %v3213, %v3400
      %3402 = vmatmul.f32.gmra.mxu0 %v3269
      %v3403 = vpop.f32.mrf.mxu0
      %v3404 = vadd.f32 %v3216, %v3403
      %3405 = vmatmul.f32.gmra.mxu0 %v3272
      %v3406 = vpop.f32.mrf.mxu0
      %v3407 = vadd.f32 %v3219, %v3406
      %3408 = vdwg.mxu0
      %v3409 = vld [vmem:[%s4] sm:$0x3]
      %v3411 = vperm.slane %v3409, 0
      %v3412 = vperm.slane %v3409, 1
      %v3415 = vadd.f32 %v3297, %v3411
      %v3416 = vadd.f32 %v3362, %v3412
      %v3417 = vadd.f32 %v3300, %v3411
      %v3418 = vadd.f32 %v3365, %v3412
      %v3419 = vadd.f32 %v3303, %v3411
      %v3420 = vadd.f32 %v3368, %v3412
      %v3421 = vadd.f32 %v3306, %v3411
      %v3422 = vadd.f32 %v3371, %v3412
      %v3423 = vadd.f32 %v3309, %v3411
      %v3424 = vadd.f32 %v3374, %v3412
      %v3425 = vadd.f32 %v3312, %v3411
      %v3426 = vadd.f32 %v3377, %v3412
      %v3427 = vadd.f32 %v3315, %v3411
      %v3428 = vadd.f32 %v3380, %v3412
      %v3429 = vadd.f32 %v3318, %v3411
      %v3430 = vadd.f32 %v3383, %v3412
      %v3431 = vadd.f32 %v3321, %v3411
      %v3432 = vadd.f32 %v3386, %v3412
      %v3433 = vadd.f32 %v3324, %v3411
      %v3434 = vadd.f32 %v3389, %v3412
      %v3435 = vadd.f32 %v3327, %v3411
      %v3436 = vadd.f32 %v3392, %v3412
      %v3437 = vadd.f32 %v3330, %v3411
      %v3438 = vadd.f32 %v3395, %v3412
      %v3439 = vadd.f32 %v3333, %v3411
      %v3440 = vadd.f32 %v3398, %v3412
      %v3441 = vadd.f32 %v3336, %v3411
      %v3442 = vadd.f32 %v3401, %v3412
      %v3443 = vadd.f32 %v3339, %v3411
      %v3444 = vadd.f32 %v3404, %v3412
      %v3445 = vadd.f32 %v3342, %v3411
      %v3446 = vadd.f32 %v3407, %v3412
      %v3447 = vmax.f32 %v3415, 0.0
      %v3448 = vmax.f32 %v3416, 0.0
      %v3449 = vmax.f32 %v3417, 0.0
      %v3450 = vmax.f32 %v3418, 0.0
      %v3451 = vmax.f32 %v3419, 0.0
      %v3452 = vmax.f32 %v3420, 0.0
      %v3453 = vmax.f32 %v3421, 0.0
      %v3454 = vmax.f32 %v3422, 0.0
      %v3455 = vmax.f32 %v3423, 0.0
      %v3456 = vmax.f32 %v3424, 0.0
      %v3457 = vmax.f32 %v3425, 0.0
      %v3458 = vmax.f32 %v3426, 0.0
      %v3459 = vmax.f32 %v3427, 0.0
      %v3460 = vmax.f32 %v3428, 0.0
      %v3461 = vmax.f32 %v3429, 0.0
      %v3462 = vmax.f32 %v3430, 0.0
      %v3463 = vmax.f32 %v3431, 0.0
      %v3464 = vmax.f32 %v3432, 0.0
      %v3465 = vmax.f32 %v3433, 0.0
      %v3466 = vmax.f32 %v3434, 0.0
      %v3467 = vmax.f32 %v3435, 0.0
      %v3468 = vmax.f32 %v3436, 0.0
      %v3469 = vmax.f32 %v3437, 0.0
      %v3470 = vmax.f32 %v3438, 0.0
      %v3471 = vmax.f32 %v3439, 0.0
      %v3472 = vmax.f32 %v3440, 0.0
      %v3473 = vmax.f32 %v3441, 0.0
      %v3474 = vmax.f32 %v3442, 0.0
      %v3475 = vmax.f32 %v3443, 0.0
      %v3476 = vmax.f32 %v3444, 0.0
      %v3477 = vmax.f32 %v3445, 0.0
      %v3478 = vmax.f32 %v3446, 0.0
      %v3479 = vld [vmem:[%s5] sm:$0xff]
      %v3480 = vld [vmem:[%s5 + $0x8] sm:$0xff]
      %v3481 = vld [vmem:[%s5 + $0x10] sm:$0xff]
      %v3482 = vld [vmem:[%s5 + $0x18] sm:$0xff]
      %v3483 = vld [vmem:[%s5 + $0x20] sm:$0xff]
      %v3484 = vld [vmem:[%s5 + $0x28] sm:$0xff]
      %v3485 = vld [vmem:[%s5 + $0x30] sm:$0xff]
      %v3486 = vld [vmem:[%s5 + $0x38] sm:$0xff]
      %v3487 = vld [vmem:[%s5 + $0x40] sm:$0xff]
      %v3488 = vld [vmem:[%s5 + $0x48] sm:$0xff]
      %v3489 = vld [vmem:[%s5 + $0x50] sm:$0xff]
      %v3490 = vld [vmem:[%s5 + $0x58] sm:$0xff]
      %v3491 = vld [vmem:[%s5 + $0x60] sm:$0xff]
      %v3492 = vld [vmem:[%s5 + $0x68] sm:$0xff]
      %v3493 = vld [vmem:[%s5 + $0x70] sm:$0xff]
      %v3494 = vld [vmem:[%s5 + $0x78] sm:$0xff]
      %v3495 = vld [vmem:[%s5 + $0x80] sm:$0xff]
      %v3496 = vld [vmem:[%s5 + $0x88] sm:$0xff]
      %v3497 = vld [vmem:[%s5 + $0x90] sm:$0xff]
      %v3498 = vld [vmem:[%s5 + $0x98] sm:$0xff]
      %v3499 = vld [vmem:[%s5 + $0xa0] sm:$0xff]
      %v3500 = vld [vmem:[%s5 + $0xa8] sm:$0xff]
      %v3501 = vld [vmem:[%s5 + $0xb0] sm:$0xff]
      %v3502 = vld [vmem:[%s5 + $0xb8] sm:$0xff]
      %v3503 = vld [vmem:[%s5 + $0xc0] sm:$0xff]
      %v3504 = vld [vmem:[%s5 + $0xc8] sm:$0xff]
      %v3505 = vld [vmem:[%s5 + $0xd0] sm:$0xff]
      %v3506 = vld [vmem:[%s5 + $0xd8] sm:$0xff]
      %v3507 = vld [vmem:[%s5 + $0xe0] sm:$0xff]
      %v3508 = vld [vmem:[%s5 + $0xe8] sm:$0xff]
      %v3509 = vld [vmem:[%s5 + $0xf0] sm:$0xff]
      %v3510 = vld [vmem:[%s5 + $0xf8] sm:$0xff]
      %v3511 = vld [vmem:[%s6] sm:$0x1]
      %v3513 = vperm.slane %v3511, 0
      %3515 = vmatpush.msra.mxu0 %v3494
      %3516 = vmatpush.msra.mxu0 %v3493
      %3517 = vmatpush.msra.mxu0 %v3492
      %3518 = vmatpush.msra.mxu0 %v3491
      %3519 = vmatpush.msra.mxu0 %v3490
      %3520 = vmatpush.msra.mxu0 %v3489
      %3521 = vmatpush.msra.mxu0 %v3488
      %3522 = vmatpush.msra.mxu0 %v3487
      %3523 = vmatpush.msra.mxu0 %v3486
      %3524 = vmatpush.msra.mxu0 %v3485
      %3525 = vmatpush.msra.mxu0 %v3484
      %3526 = vmatpush.msra.mxu0 %v3483
      %3527 = vmatpush.msra.mxu0 %v3482
      %3528 = vmatpush.msra.mxu0 %v3481
      %3529 = vmatpush.msra.mxu0 %v3480
      %3530 = vmatpush.msra.mxu0 %v3479
      %3531 = vmatmul.f32.gmra.mxu0 %v3447
      %v3532 = vpop.f32.mrf.mxu0
      %v3533 = vadd.f32 %v3513, %v3532
      %3534 = vmatmul.f32.gmra.mxu0 %v3449
      %v3535 = vpop.f32.mrf.mxu0
      %v3536 = vadd.f32 %v3513, %v3535
      %3537 = vmatmul.f32.gmra.mxu0 %v3451
      %v3538 = vpop.f32.mrf.mxu0
      %v3539 = vadd.f32 %v3513, %v3538
      %3540 = vmatmul.f32.gmra.mxu0 %v3453
      %v3541 = vpop.f32.mrf.mxu0
      %v3542 = vadd.f32 %v3513, %v3541
      %3543 = vmatmul.f32.gmra.mxu0 %v3455
      %v3544 = vpop.f32.mrf.mxu0
      %v3545 = vadd.f32 %v3513, %v3544
      %3546 = vmatmul.f32.gmra.mxu0 %v3457
      %v3547 = vpop.f32.mrf.mxu0
      %v3548 = vadd.f32 %v3513, %v3547
      %3549 = vmatmul.f32.gmra.mxu0 %v3459
      %v3550 = vpop.f32.mrf.mxu0
      %v3551 = vadd.f32 %v3513, %v3550
      %3552 = vmatmul.f32.gmra.mxu0 %v3461
      %v3553 = vpop.f32.mrf.mxu0
      %v3554 = vadd.f32 %v3513, %v3553
      %3555 = vmatmul.f32.gmra.mxu0 %v3463
      %v3556 = vpop.f32.mrf.mxu0
      %v3557 = vadd.f32 %v3513, %v3556
      %3558 = vmatmul.f32.gmra.mxu0 %v3465
      %v3559 = vpop.f32.mrf.mxu0
      %v3560 = vadd.f32 %v3513, %v3559
      %3561 = vmatmul.f32.gmra.mxu0 %v3467
      %v3562 = vpop.f32.mrf.mxu0
      %v3563 = vadd.f32 %v3513, %v3562
      %3564 = vmatmul.f32.gmra.mxu0 %v3469
      %v3565 = vpop.f32.mrf.mxu0
      %v3566 = vadd.f32 %v3513, %v3565
      %3567 = vmatmul.f32.gmra.mxu0 %v3471
      %v3568 = vpop.f32.mrf.mxu0
      %v3569 = vadd.f32 %v3513, %v3568
      %3570 = vmatmul.f32.gmra.mxu0 %v3473
      %v3571 = vpop.f32.mrf.mxu0
      %v3572 = vadd.f32 %v3513, %v3571
      %3573 = vmatmul.f32.gmra.mxu0 %v3475
      %v3574 = vpop.f32.mrf.mxu0
      %v3575 = vadd.f32 %v3513, %v3574
      %3576 = vmatmul.f32.gmra.mxu0 %v3477
      %v3577 = vpop.f32.mrf.mxu0
      %v3578 = vadd.f32 %v3513, %v3577
      %3579 = vdwg.mxu0
      %3580 = vmatpush.msra.mxu0 %v3510
      %3581 = vmatpush.msra.mxu0 %v3509
      %3582 = vmatpush.msra.mxu0 %v3508
      %3583 = vmatpush.msra.mxu0 %v3507
      %3584 = vmatpush.msra.mxu0 %v3506
      %3585 = vmatpush.msra.mxu0 %v3505
      %3586 = vmatpush.msra.mxu0 %v3504
      %3587 = vmatpush.msra.mxu0 %v3503
      %3588 = vmatpush.msra.mxu0 %v3502
      %3589 = vmatpush.msra.mxu0 %v3501
      %3590 = vmatpush.msra.mxu0 %v3500
      %3591 = vmatpush.msra.mxu0 %v3499
      %3592 = vmatpush.msra.mxu0 %v3498
      %3593 = vmatpush.msra.mxu0 %v3497
      %3594 = vmatpush.msra.mxu0 %v3496
      %3595 = vmatpush.msra.mxu0 %v3495
      %3596 = vmatmul.f32.gmra.mxu0 %v3448
      %v3597 = vpop.f32.mrf.mxu0
      %v3598 = vadd.f32 %v3533, %v3597
      %3599 = vmatmul.f32.gmra.mxu0 %v3450
      %v3600 = vpop.f32.mrf.mxu0
      %v3601 = vadd.f32 %v3536, %v3600
      %3602 = vmatmul.f32.gmra.mxu0 %v3452
      %v3603 = vpop.f32.mrf.mxu0
      %v3604 = vadd.f32 %v3539, %v3603
      %3605 = vmatmul.f32.gmra.mxu0 %v3454
      %v3606 = vpop.f32.mrf.mxu0
      %v3607 = vadd.f32 %v3542, %v3606
      %3608 = vmatmul.f32.gmra.mxu0 %v3456
      %v3609 = vpop.f32.mrf.mxu0
      %v3610 = vadd.f32 %v3545, %v3609
      %3611 = vmatmul.f32.gmra.mxu0 %v3458
      %v3612 = vpop.f32.mrf.mxu0
      %v3613 = vadd.f32 %v3548, %v3612
      %3614 = vmatmul.f32.gmra.mxu0 %v3460
      %v3615 = vpop.f32.mrf.mxu0
      %v3616 = vadd.f32 %v3551, %v3615
      %3617 = vmatmul.f32.gmra.mxu0 %v3462
      %v3618 = vpop.f32.mrf.mxu0
      %v3619 = vadd.f32 %v3554, %v3618
      %3620 = vmatmul.f32.gmra.mxu0 %v3464
      %v3621 = vpop.f32.mrf.mxu0
      %v3622 = vadd.f32 %v3557, %v3621
      %3623 = vmatmul.f32.gmra.mxu0 %v3466
      %v3624 = vpop.f32.mrf.mxu0
      %v3625 = vadd.f32 %v3560, %v3624
      %3626 = vmatmul.f32.gmra.mxu0 %v3468
      %v3627 = vpop.f32.mrf.mxu0
      %v3628 = vadd.f32 %v3563, %v3627
      %3629 = vmatmul.f32.gmra.mxu0 %v3470
      %v3630 = vpop.f32.mrf.mxu0
      %v3631 = vadd.f32 %v3566, %v3630
      %3632 = vmatmul.f32.gmra.mxu0 %v3472
      %v3633 = vpop.f32.mrf.mxu0
      %v3634 = vadd.f32 %v3569, %v3633
      %3635 = vmatmul.f32.gmra.mxu0 %v3474
      %v3636 = vpop.f32.mrf.mxu0
      %v3637 = vadd.f32 %v3572, %v3636
      %3638 = vmatmul.f32.gmra.mxu0 %v3476
      %v3639 = vpop.f32.mrf.mxu0
      %v3640 = vadd.f32 %v3575, %v3639
      %3641 = vmatmul.f32.gmra.mxu0 %v3478
      %v3642 = vpop.f32.mrf.mxu0
      %v3643 = vadd.f32 %v3578, %v3642
      %3644 = vdwg.mxu0
      %v3645 = vmax.f32 %v3598, 0.0
      %v3646 = vmax.f32 %v3601, 0.0
      %v3647 = vmax.f32 %v3604, 0.0
      %v3648 = vmax.f32 %v3607, 0.0
      %v3649 = vmax.f32 %v3610, 0.0
      %v3650 = vmax.f32 %v3613, 0.0
      %v3651 = vmax.f32 %v3616, 0.0
      %v3652 = vmax.f32 %v3619, 0.0
      %v3653 = vmax.f32 %v3622, 0.0
      %v3654 = vmax.f32 %v3625, 0.0
      %v3655 = vmax.f32 %v3628, 0.0
      %v3656 = vmax.f32 %v3631, 0.0
      %v3657 = vmax.f32 %v3634, 0.0
      %v3658 = vmax.f32 %v3637, 0.0
      %v3659 = vmax.f32 %v3640, 0.0
      %v3660 = vmax.f32 %v3643, 0.0
      %v3661 = vld [vmem:[%s7] sm:$0x1]
      %v3663 = vperm.slane %v3661, 0
      %v3665 = vmul.f32 %v3645, %v3663
      %v3666 = vmul.f32 %v3646, %v3663
      %v3667 = vmul.f32 %v3647, %v3663
      %v3668 = vmul.f32 %v3648, %v3663
      %v3669 = vmul.f32 %v3649, %v3663
      %v3670 = vmul.f32 %v3650, %v3663
      %v3671 = vmul.f32 %v3651, %v3663
      %v3672 = vmul.f32 %v3652, %v3663
      %v3673 = vmul.f32 %v3653, %v3663
      %v3674 = vmul.f32 %v3654, %v3663
      %v3675 = vmul.f32 %v3655, %v3663
      %v3676 = vmul.f32 %v3656, %v3663
      %v3677 = vmul.f32 %v3657, %v3663
      %v3678 = vmul.f32 %v3658, %v3663
      %v3679 = vmul.f32 %v3659, %v3663
      %v3680 = vmul.f32 %v3660, %v3663
      %3681 = vadd.xlane.f32.xlu0 %v3665
      %v3682 = vpop.xlane.xlu0 %3681
      %3683 = vadd.xlane.f32.xlu0 %v3666
      %v3684 = vpop.xlane.xlu0 %3683
      %3685 = vadd.xlane.f32.xlu0 %v3667
      %v3686 = vpop.xlane.xlu0 %3685
      %3687 = vadd.xlane.f32.xlu0 %v3668
      %v3688 = vpop.xlane.xlu0 %3687
      %3689 = vadd.xlane.f32.xlu0 %v3669
      %v3690 = vpop.xlane.xlu0 %3689
      %3691 = vadd.xlane.f32.xlu0 %v3670
      %v3692 = vpop.xlane.xlu0 %3691
      %3693 = vadd.xlane.f32.xlu0 %v3671
      %v3694 = vpop.xlane.xlu0 %3693
      %3695 = vadd.xlane.f32.xlu0 %v3672
      %v3696 = vpop.xlane.xlu0 %3695
      %3697 = vadd.xlane.f32.xlu0 %v3673
      %v3698 = vpop.xlane.xlu0 %3697
      %3699 = vadd.xlane.f32.xlu0 %v3674
      %v3700 = vpop.xlane.xlu0 %3699
      %3701 = vadd.xlane.f32.xlu0 %v3675
      %v3702 = vpop.xlane.xlu0 %3701
      %3703 = vadd.xlane.f32.xlu0 %v3676
      %v3704 = vpop.xlane.xlu0 %3703
      %3705 = vadd.xlane.f32.xlu0 %v3677
      %v3706 = vpop.xlane.xlu0 %3705
      %3707 = vadd.xlane.f32.xlu0 %v3678
      %v3708 = vpop.xlane.xlu0 %3707
      %3709 = vadd.xlane.f32.xlu0 %v3679
      %v3710 = vpop.xlane.xlu0 %3709
      %3711 = vadd.xlane.f32.xlu0 %v3680
      %v3712 = vpop.xlane.xlu0 %3711
      %v3713 = vld [vmem:[#allocation2] sm:$0x1]
      %v3715 = vperm.slane %v3713, 0
      %v3717 = vadd.f32 %v3682, %v3715
      %v3718 = vadd.f32 %v3684, %v3715
      %v3719 = vadd.f32 %v3686, %v3715
      %v3720 = vadd.f32 %v3688, %v3715
      %v3721 = vadd.f32 %v3690, %v3715
      %v3722 = vadd.f32 %v3692, %v3715
      %v3723 = vadd.f32 %v3694, %v3715
      %v3724 = vadd.f32 %v3696, %v3715
      %v3725 = vadd.f32 %v3698, %v3715
      %v3726 = vadd.f32 %v3700, %v3715
      %v3727 = vadd.f32 %v3702, %v3715
      %v3728 = vadd.f32 %v3704, %v3715
      %v3729 = vadd.f32 %v3706, %v3715
      %v3730 = vadd.f32 %v3708, %v3715
      %v3731 = vadd.f32 %v3710, %v3715
      %v3732 = vadd.f32 %v3712, %v3715
      %v3733 = vsub.f32 0.0, %v3717
      %v3734 = vsub.f32 0.0, %v3718
      %v3735 = vsub.f32 0.0, %v3719
      %v3736 = vsub.f32 0.0, %v3720
      %v3737 = vsub.f32 0.0, %v3721
      %v3738 = vsub.f32 0.0, %v3722
      %v3739 = vsub.f32 0.0, %v3723
      %v3740 = vsub.f32 0.0, %v3724
      %v3741 = vsub.f32 0.0, %v3725
      %v3742 = vsub.f32 0.0, %v3726
      %v3743 = vsub.f32 0.0, %v3727
      %v3744 = vsub.f32 0.0, %v3728
      %v3745 = vsub.f32 0.0, %v3729
      %v3746 = vsub.f32 0.0, %v3730
      %v3747 = vsub.f32 0.0, %v3731
      %v3748 = vsub.f32 0.0, %v3732
      %v3749 = vmul.f32 %v3733, 1.442695
      %v3750 = vpow.pop %v3749
      %v3751 = vmul.f32 %v3734, 1.442695
      %v3752 = vpow.pop %v3751
      %v3753 = vmul.f32 %v3735, 1.442695
      %v3754 = vpow.pop %v3753
      %v3755 = vmul.f32 %v3736, 1.442695
      %v3756 = vpow.pop %v3755
      %v3757 = vmul.f32 %v3737, 1.442695
      %v3758 = vpow.pop %v3757
      %v3759 = vmul.f32 %v3738, 1.442695
      %v3760 = vpow.pop %v3759
      %v3761 = vmul.f32 %v3739, 1.442695
      %v3762 = vpow.pop %v3761
      %v3763 = vmul.f32 %v3740, 1.442695
      %v3764 = vpow.pop %v3763
      %v3765 = vmul.f32 %v3741, 1.442695
      %v3766 = vpow.pop %v3765
      %v3767 = vmul.f32 %v3742, 1.442695
      %v3768 = vpow.pop %v3767
      %v3769 = vmul.f32 %v3743, 1.442695
      %v3770 = vpow.pop %v3769
      %v3771 = vmul.f32 %v3744, 1.442695
      %v3772 = vpow.pop %v3771
      %v3773 = vmul.f32 %v3745, 1.442695
      %v3774 = vpow.pop %v3773
      %v3775 = vmul.f32 %v3746, 1.442695
      %v3776 = vpow.pop %v3775
      %v3777 = vmul.f32 %v3747, 1.442695
      %v3778 = vpow.pop %v3777
      %v3779 = vmul.f32 %v3748, 1.442695
      %v3780 = vpow.pop %v3779
      %v3781 = vadd.f32 %v3750, 1.0
      %v3782 = vadd.f32 %v3752, 1.0
      %v3783 = vadd.f32 %v3754, 1.0
      %v3784 = vadd.f32 %v3756, 1.0
      %v3785 = vadd.f32 %v3758, 1.0
      %v3786 = vadd.f32 %v3760, 1.0
      %v3787 = vadd.f32 %v3762, 1.0
      %v3788 = vadd.f32 %v3764, 1.0
      %v3789 = vadd.f32 %v3766, 1.0
      %v3790 = vadd.f32 %v3768, 1.0
      %v3791 = vadd.f32 %v3770, 1.0
      %v3792 = vadd.f32 %v3772, 1.0
      %v3793 = vadd.f32 %v3774, 1.0
      %v3794 = vadd.f32 %v3776, 1.0
      %v3795 = vadd.f32 %v3778, 1.0
      %v3796 = vadd.f32 %v3780, 1.0
      %v3797 = vrcp.pop %v3781
      %v3798 = vmul.f32 %v3781, %v3797
      %v3799 = vsub.f32 1.0, %v3798
      %v3800 = vmul.f32 %v3797, %v3799
      %v3801 = vadd.f32 %v3797, %v3800
      %vm3802 = vweird.f32 %v3781
      %vm3803 = vweird.f32 %v3797
      %vm3804 = vmor %vm3802, %vm3803
      %v3805 = vsel %vm3804, %v3797, %v3801
      %v3806 = vand.u32 2147483647, %v3781
      %vm3807 = vcmp.eq.f32.partialorder %v3806, 8.507059e+37
      %v3808 = vand.u32 %v3781, 2147483648
      %v3809 = vor.u32 1.1754944e-38, %v3808
      %v3810 = vsel %vm3807, %v3809, %v3805
      %v3811 = vmul.f32 1.0, %v3810
      %v3812 = vrcp.pop %v3782
      %v3813 = vmul.f32 %v3782, %v3812
      %v3814 = vsub.f32 1.0, %v3813
      %v3815 = vmul.f32 %v3812, %v3814
      %v3816 = vadd.f32 %v3812, %v3815
      %vm3817 = vweird.f32 %v3782
      %vm3818 = vweird.f32 %v3812
      %vm3819 = vmor %vm3817, %vm3818
      %v3820 = vsel %vm3819, %v3812, %v3816
      %v3821 = vand.u32 2147483647, %v3782
      %vm3822 = vcmp.eq.f32.partialorder %v3821, 8.507059e+37
      %v3823 = vand.u32 %v3782, 2147483648
      %v3824 = vor.u32 1.1754944e-38, %v3823
      %v3825 = vsel %vm3822, %v3824, %v3820
      %v3826 = vmul.f32 1.0, %v3825
      %v3827 = vrcp.pop %v3783
      %v3828 = vmul.f32 %v3783, %v3827
      %v3829 = vsub.f32 1.0, %v3828
      %v3830 = vmul.f32 %v3827, %v3829
      %v3831 = vadd.f32 %v3827, %v3830
      %vm3832 = vweird.f32 %v3783
      %vm3833 = vweird.f32 %v3827
      %vm3834 = vmor %vm3832, %vm3833
      %v3835 = vsel %vm3834, %v3827, %v3831
      %v3836 = vand.u32 2147483647, %v3783
      %vm3837 = vcmp.eq.f32.partialorder %v3836, 8.507059e+37
      %v3838 = vand.u32 %v3783, 2147483648
      %v3839 = vor.u32 1.1754944e-38, %v3838
      %v3840 = vsel %vm3837, %v3839, %v3835
      %v3841 = vmul.f32 1.0, %v3840
      %v3842 = vrcp.pop %v3784
      %v3843 = vmul.f32 %v3784, %v3842
      %v3844 = vsub.f32 1.0, %v3843
      %v3845 = vmul.f32 %v3842, %v3844
      %v3846 = vadd.f32 %v3842, %v3845
      %vm3847 = vweird.f32 %v3784
      %vm3848 = vweird.f32 %v3842
      %vm3849 = vmor %vm3847, %vm3848
      %v3850 = vsel %vm3849, %v3842, %v3846
      %v3851 = vand.u32 2147483647, %v3784
      %vm3852 = vcmp.eq.f32.partialorder %v3851, 8.507059e+37
      %v3853 = vand.u32 %v3784, 2147483648
      %v3854 = vor.u32 1.1754944e-38, %v3853
      %v3855 = vsel %vm3852, %v3854, %v3850
      %v3856 = vmul.f32 1.0, %v3855
      %v3857 = vrcp.pop %v3785
      %v3858 = vmul.f32 %v3785, %v3857
      %v3859 = vsub.f32 1.0, %v3858
      %v3860 = vmul.f32 %v3857, %v3859
      %v3861 = vadd.f32 %v3857, %v3860
      %vm3862 = vweird.f32 %v3785
      %vm3863 = vweird.f32 %v3857
      %vm3864 = vmor %vm3862, %vm3863
      %v3865 = vsel %vm3864, %v3857, %v3861
      %v3866 = vand.u32 2147483647, %v3785
      %vm3867 = vcmp.eq.f32.partialorder %v3866, 8.507059e+37
      %v3868 = vand.u32 %v3785, 2147483648
      %v3869 = vor.u32 1.1754944e-38, %v3868
      %v3870 = vsel %vm3867, %v3869, %v3865
      %v3871 = vmul.f32 1.0, %v3870
      %v3872 = vrcp.pop %v3786
      %v3873 = vmul.f32 %v3786, %v3872
      %v3874 = vsub.f32 1.0, %v3873
      %v3875 = vmul.f32 %v3872, %v3874
      %v3876 = vadd.f32 %v3872, %v3875
      %vm3877 = vweird.f32 %v3786
      %vm3878 = vweird.f32 %v3872
      %vm3879 = vmor %vm3877, %vm3878
      %v3880 = vsel %vm3879, %v3872, %v3876
      %v3881 = vand.u32 2147483647, %v3786
      %vm3882 = vcmp.eq.f32.partialorder %v3881, 8.507059e+37
      %v3883 = vand.u32 %v3786, 2147483648
      %v3884 = vor.u32 1.1754944e-38, %v3883
      %v3885 = vsel %vm3882, %v3884, %v3880
      %v3886 = vmul.f32 1.0, %v3885
      %v3887 = vrcp.pop %v3787
      %v3888 = vmul.f32 %v3787, %v3887
      %v3889 = vsub.f32 1.0, %v3888
      %v3890 = vmul.f32 %v3887, %v3889
      %v3891 = vadd.f32 %v3887, %v3890
      %vm3892 = vweird.f32 %v3787
      %vm3893 = vweird.f32 %v3887
      %vm3894 = vmor %vm3892, %vm3893
      %v3895 = vsel %vm3894, %v3887, %v3891
      %v3896 = vand.u32 2147483647, %v3787
      %vm3897 = vcmp.eq.f32.partialorder %v3896, 8.507059e+37
      %v3898 = vand.u32 %v3787, 2147483648
      %v3899 = vor.u32 1.1754944e-38, %v3898
      %v3900 = vsel %vm3897, %v3899, %v3895
      %v3901 = vmul.f32 1.0, %v3900
      %v3902 = vrcp.pop %v3788
      %v3903 = vmul.f32 %v3788, %v3902
      %v3904 = vsub.f32 1.0, %v3903
      %v3905 = vmul.f32 %v3902, %v3904
      %v3906 = vadd.f32 %v3902, %v3905
      %vm3907 = vweird.f32 %v3788
      %vm3908 = vweird.f32 %v3902
      %vm3909 = vmor %vm3907, %vm3908
      %v3910 = vsel %vm3909, %v3902, %v3906
      %v3911 = vand.u32 2147483647, %v3788
      %vm3912 = vcmp.eq.f32.partialorder %v3911, 8.507059e+37
      %v3913 = vand.u32 %v3788, 2147483648
      %v3914 = vor.u32 1.1754944e-38, %v3913
      %v3915 = vsel %vm3912, %v3914, %v3910
      %v3916 = vmul.f32 1.0, %v3915
      %v3917 = vrcp.pop %v3789
      %v3918 = vmul.f32 %v3789, %v3917
      %v3919 = vsub.f32 1.0, %v3918
      %v3920 = vmul.f32 %v3917, %v3919
      %v3921 = vadd.f32 %v3917, %v3920
      %vm3922 = vweird.f32 %v3789
      %vm3923 = vweird.f32 %v3917
      %vm3924 = vmor %vm3922, %vm3923
      %v3925 = vsel %vm3924, %v3917, %v3921
      %v3926 = vand.u32 2147483647, %v3789
      %vm3927 = vcmp.eq.f32.partialorder %v3926, 8.507059e+37
      %v3928 = vand.u32 %v3789, 2147483648
      %v3929 = vor.u32 1.1754944e-38, %v3928
      %v3930 = vsel %vm3927, %v3929, %v3925
      %v3931 = vmul.f32 1.0, %v3930
      %v3932 = vrcp.pop %v3790
      %v3933 = vmul.f32 %v3790, %v3932
      %v3934 = vsub.f32 1.0, %v3933
      %v3935 = vmul.f32 %v3932, %v3934
      %v3936 = vadd.f32 %v3932, %v3935
      %vm3937 = vweird.f32 %v3790
      %vm3938 = vweird.f32 %v3932
      %vm3939 = vmor %vm3937, %vm3938
      %v3940 = vsel %vm3939, %v3932, %v3936
      %v3941 = vand.u32 2147483647, %v3790
      %vm3942 = vcmp.eq.f32.partialorder %v3941, 8.507059e+37
      %v3943 = vand.u32 %v3790, 2147483648
      %v3944 = vor.u32 1.1754944e-38, %v3943
      %v3945 = vsel %vm3942, %v3944, %v3940
      %v3946 = vmul.f32 1.0, %v3945
      %v3947 = vrcp.pop %v3791
      %v3948 = vmul.f32 %v3791, %v3947
      %v3949 = vsub.f32 1.0, %v3948
      %v3950 = vmul.f32 %v3947, %v3949
      %v3951 = vadd.f32 %v3947, %v3950
      %vm3952 = vweird.f32 %v3791
      %vm3953 = vweird.f32 %v3947
      %vm3954 = vmor %vm3952, %vm3953
      %v3955 = vsel %vm3954, %v3947, %v3951
      %v3956 = vand.u32 2147483647, %v3791
      %vm3957 = vcmp.eq.f32.partialorder %v3956, 8.507059e+37
      %v3958 = vand.u32 %v3791, 2147483648
      %v3959 = vor.u32 1.1754944e-38, %v3958
      %v3960 = vsel %vm3957, %v3959, %v3955
      %v3961 = vmul.f32 1.0, %v3960
      %v3962 = vrcp.pop %v3792
      %v3963 = vmul.f32 %v3792, %v3962
      %v3964 = vsub.f32 1.0, %v3963
      %v3965 = vmul.f32 %v3962, %v3964
      %v3966 = vadd.f32 %v3962, %v3965
      %vm3967 = vweird.f32 %v3792
      %vm3968 = vweird.f32 %v3962
      %vm3969 = vmor %vm3967, %vm3968
      %v3970 = vsel %vm3969, %v3962, %v3966
      %v3971 = vand.u32 2147483647, %v3792
      %vm3972 = vcmp.eq.f32.partialorder %v3971, 8.507059e+37
      %v3973 = vand.u32 %v3792, 2147483648
      %v3974 = vor.u32 1.1754944e-38, %v3973
      %v3975 = vsel %vm3972, %v3974, %v3970
      %v3976 = vmul.f32 1.0, %v3975
      %v3977 = vrcp.pop %v3793
      %v3978 = vmul.f32 %v3793, %v3977
      %v3979 = vsub.f32 1.0, %v3978
      %v3980 = vmul.f32 %v3977, %v3979
      %v3981 = vadd.f32 %v3977, %v3980
      %vm3982 = vweird.f32 %v3793
      %vm3983 = vweird.f32 %v3977
      %vm3984 = vmor %vm3982, %vm3983
      %v3985 = vsel %vm3984, %v3977, %v3981
      %v3986 = vand.u32 2147483647, %v3793
      %vm3987 = vcmp.eq.f32.partialorder %v3986, 8.507059e+37
      %v3988 = vand.u32 %v3793, 2147483648
      %v3989 = vor.u32 1.1754944e-38, %v3988
      %v3990 = vsel %vm3987, %v3989, %v3985
      %v3991 = vmul.f32 1.0, %v3990
      %v3992 = vrcp.pop %v3794
      %v3993 = vmul.f32 %v3794, %v3992
      %v3994 = vsub.f32 1.0, %v3993
      %v3995 = vmul.f32 %v3992, %v3994
      %v3996 = vadd.f32 %v3992, %v3995
      %vm3997 = vweird.f32 %v3794
      %vm3998 = vweird.f32 %v3992
      %vm3999 = vmor %vm3997, %vm3998
      %v4000 = vsel %vm3999, %v3992, %v3996
      %v4001 = vand.u32 2147483647, %v3794
      %vm4002 = vcmp.eq.f32.partialorder %v4001, 8.507059e+37
      %v4003 = vand.u32 %v3794, 2147483648
      %v4004 = vor.u32 1.1754944e-38, %v4003
      %v4005 = vsel %vm4002, %v4004, %v4000
      %v4006 = vmul.f32 1.0, %v4005
      %v4007 = vrcp.pop %v3795
      %v4008 = vmul.f32 %v3795, %v4007
      %v4009 = vsub.f32 1.0, %v4008
      %v4010 = vmul.f32 %v4007, %v4009
      %v4011 = vadd.f32 %v4007, %v4010
      %vm4012 = vweird.f32 %v3795
      %vm4013 = vweird.f32 %v4007
      %vm4014 = vmor %vm4012, %vm4013
      %v4015 = vsel %vm4014, %v4007, %v4011
      %v4016 = vand.u32 2147483647, %v3795
      %vm4017 = vcmp.eq.f32.partialorder %v4016, 8.507059e+37
      %v4018 = vand.u32 %v3795, 2147483648
      %v4019 = vor.u32 1.1754944e-38, %v4018
      %v4020 = vsel %vm4017, %v4019, %v4015
      %v4021 = vmul.f32 1.0, %v4020
      %v4022 = vrcp.pop %v3796
      %v4023 = vmul.f32 %v3796, %v4022
      %v4024 = vsub.f32 1.0, %v4023
      %v4025 = vmul.f32 %v4022, %v4024
      %v4026 = vadd.f32 %v4022, %v4025
      %vm4027 = vweird.f32 %v3796
      %vm4028 = vweird.f32 %v4022
      %vm4029 = vmor %vm4027, %vm4028
      %v4030 = vsel %vm4029, %v4022, %v4026
      %v4031 = vand.u32 2147483647, %v3796
      %vm4032 = vcmp.eq.f32.partialorder %v4031, 8.507059e+37
      %v4033 = vand.u32 %v3796, 2147483648
      %v4034 = vor.u32 1.1754944e-38, %v4033
      %v4035 = vsel %vm4032, %v4034, %v4030
      %v4036 = vmul.f32 1.0, %v4035
      %vm4037 = vcmask 7168
      %4038 = vst.msk [vmem:[%s358] sm:$0xff] %vm4037, %v3811
      %4039 = vst.msk [vmem:[%s358 + $0x8] sm:$0xff] %vm4037, %v3826
      %4040 = vst.msk [vmem:[%s358 + $0x10] sm:$0xff] %vm4037, %v3841
      %4041 = vst.msk [vmem:[%s358 + $0x18] sm:$0xff] %vm4037, %v3856
      %4042 = vst.msk [vmem:[%s358 + $0x20] sm:$0xff] %vm4037, %v3871
      %4043 = vst.msk [vmem:[%s358 + $0x28] sm:$0xff] %vm4037, %v3886
      %4044 = vst.msk [vmem:[%s358 + $0x30] sm:$0xff] %vm4037, %v3901
      %4045 = vst.msk [vmem:[%s358 + $0x38] sm:$0xff] %vm4037, %v3916
      %4046 = vst.msk [vmem:[%s358 + $0x40] sm:$0xff] %vm4037, %v3931
      %4047 = vst.msk [vmem:[%s358 + $0x48] sm:$0xff] %vm4037, %v3946
      %4048 = vst.msk [vmem:[%s358 + $0x50] sm:$0xff] %vm4037, %v3961
      %4049 = vst.msk [vmem:[%s358 + $0x58] sm:$0xff] %vm4037, %v3976
      %4050 = vst.msk [vmem:[%s358 + $0x60] sm:$0xff] %vm4037, %v3991
      %4051 = vst.msk [vmem:[%s358 + $0x68] sm:$0xff] %vm4037, %v4006
      %4052 = vst.msk [vmem:[%s358 + $0x70] sm:$0xff] %vm4037, %v4021
      %4053 = vst.msk [vmem:[%s358 + $0x78] sm:$0xff] %vm4037, %v4036
      %s4054 = smul.u32 16, %s22
      %p4055 = scmp.lt.s32.totalorder %s4054, 31
      %s4056 = scalar_select %p4055, %s4054, 31
      %s4057 = smul.addr %s4056, 8
      %s4058 = scalar_lea.vmem %s9, %s4057
      // Predicated region
      $region57: #{tpu_custom_call.1} parent=55 // pred_check
        %p4059 = pneg %p239
      $region58: #{tpu_custom_call.1} parent=55 // pred_check_branch
        %4061 = sbr.rel (%p4059) target = $region60
      $region59: #{tpu_custom_call.1} parent=55 // pred_region
        %s4062 = smul.u32 16, %s22
      $region60: #{tpu_custom_call.1} parent=55 // pred_fallthru
        _
    $region56: #{tpu_custom_call.1} parent=5 // pred_fallthru
      _
    %p4063 = scmp.le.s32.totalorder 2, %s17
    // Predicated region
    $region61: #{tpu_custom_call.1} parent=5 // pred_check
      %p4064 = pneg %p4063
    $region62: #{tpu_custom_call.1} parent=5 // pred_check_branch
      %4066 = sbr.rel (%p4064) target = $region64
    $region63: #{tpu_custom_call.1} parent=5 // pred_region
      %s4067 = ssub.s32 %s17, 2
      // Predicated region
      $region65: #{tpu_custom_call.1} parent=63 // pred_check
        %p4068 = pneg %p245
      $region66: #{tpu_custom_call.1} parent=63 // pred_check_branch
        %4070 = sbr.rel (%p4068) target = $region68
      $region67: #{tpu_custom_call.1} parent=63 // pred_region
        %s4071 = smul.u32 16, %s23
        %p4072 = scmp.lt.s32.totalorder %s4071, 31
        %s4073 = scalar_select %p4072, %s4071, 31
        %s4074 = smul.addr %s4073, 8
        %s4075 = scalar_lea.vmem %s9, %s4074
      $region68: #{tpu_custom_call.1} parent=63 // pred_fallthru
        _
    $region64: #{tpu_custom_call.1} parent=5 // pred_fallthru
      _
  $region6: #{tpu_custom_call.1} parent=0 // loop_footer
    %s21 = sadd.s32 1, %s17
  $region7: #{tpu_custom_call.1} parent=0 // loop_footer_branch
    %16 = sbr.rel target = $region3
  $region8: #{tpu_custom_call.1} parent=0 // loop_exit
    _

</llo_original>
